<compile_context>
chip_gen: v7x
topology: tpu7x:2x2x1
jax: 0.10.0
libtpu: 0.0.40
codegen_flags: <defaults>
</compile_context>

<pallas_src>
import numpy as np

import jax
import jax.numpy as jnp
from jax import lax
from jax.experimental import pallas as pl
from jax.experimental.pallas import tpu as pltpu  # noqa: F401

LRELU_SLOPE = 0.2
DOWN_CHANNELS = [(3, 32), (32, 64), (64, 128), (128, 256)]
CIN_PAD0 = 8          # pad the 3 input channels to 8 -> every tap block is lane aligned
FINAL_COUT_PAD = 128  # lane-dense final output block
ROW_ALIGN = 8         # sublane alignment for every intermediate activation


def _round_up(x, m):
    return -(-x // m) * m


# ----------------------------------------------------------------------------
# Pallas kernel: fused full forward pass, everything VMEM resident
# ----------------------------------------------------------------------------
def _discriminator_kernel(x_ref, *refs):
    """refs = (R1, T1, b1, ..., R5, T5, b5, out_ref).

    Per layer:  patches = concat_i( R_i @ X )   (bf16, lane-aligned blocks)
                Y       = patches @ T + bias    (f32 accumulate)
                X_next  = LeakyReLU(Y)          (f32 math, stored bf16)
    The last layer writes a lane-dense (8, 128) f32 block (single unmasked
    store).
    """
    o_ref = refs[-1]
    num_layers = (len(refs) - 1) // 3

    x = x_ref[...]                                        # (rows0_pad, W0*Cpad) bf16
    for l in range(num_layers):
        r_ref, t_ref, b_ref = refs[3 * l: 3 * l + 3]
        kh = r_ref.shape[0]

        taps = []
        for i in range(kh):                               # unrolled (kh = 4 or 3)
            # 0/1 row gather on the MXU; the result is exactly rows of x (or
            # zero rows), so the f32 -> bf16 cast below is lossless.
            a = jnp.dot(r_ref[i], x, preferred_element_type=jnp.float32)
            taps.append(a.astype(jnp.bfloat16))
        patches = jnp.concatenate(taps, axis=-1)          # (rows, kh*W*C) bf16

        y = jnp.dot(patches, t_ref[...], preferred_element_type=jnp.float32)
        y = y + b_ref[...]                                # f32 bias

        if l < num_layers - 1:
            y = jnp.maximum(y, LRELU_SLOPE * y)           # LeakyReLU(0.2), f32
            x = y.astype(jnp.bfloat16)                    # next-layer operand
        else:
            o_ref[...] = y                                # single unmasked store


# ----------------------------------------------------------------------------
# Parameter setup (deterministic, synthetic) + spectral norm (power iteration)
# ----------------------------------------------------------------------------
def spectral_normalize(w, key, n_iter=1, eps=1e-12):
    cout = w.shape[0]
    wm = w.reshape(cout, -1)
    u = jax.random.normal(key, (cout,), dtype=w.dtype)
    u = u / (jnp.linalg.norm(u) + eps)
    v = None
    for _ in range(n_iter):
        v = wm.T @ u
        v = v / (jnp.linalg.norm(v) + eps)
        u = wm @ v
        u = u / (jnp.linalg.norm(u) + eps)
    sigma = u @ (wm @ v)
    return w / sigma


def init_discriminator_params(key):
    params = {"down": [], "final": None}
    keys = jax.random.split(key, 2 * len(DOWN_CHANNELS) + 1)
    k = 0
    for (cin, cout) in DOWN_CHANNELS:
        w = 0.05 * jax.random.normal(keys[k], (cout, cin, 4, 4), dtype=jnp.float32)
        k += 1
        w = spectral_normalize(w, keys[k])   # spec_norm=True on down blocks
        k += 1
        params["down"].append((w, jnp.zeros((cout,), jnp.float32)))
    wf = 0.05 * jax.random.normal(keys[k], (1, 256, 3, 3), dtype=jnp.float32)
    params["final"] = (wf, jnp.zeros((1,), jnp.float32))
    return params


# ----------------------------------------------------------------------------
# Host-side precompute: row-gather matrices R_i and block-Toeplitz weights T
# ----------------------------------------------------------------------------
def _build_row_gather(n, h_in, kh, stride, pad, rows_pad=None, cols=None):
    """R[i, out_row, in_row] = 1 iff conv tap i of out_row reads in_row.

    `rows_pad` pads the output-row count (sublane alignment of the next
    activation); `cols` must equal the (possibly padded) row count of the
    input activation.  Padded rows/cols stay all-zero.
    """
    ho = (h_in - kh + 2 * pad) // stride + 1
    rows = n * ho
    rows_pad = rows if rows_pad is None else rows_pad
    cols = n * h_in if cols is None else cols
    r = np.zeros((kh, rows_pad, cols), np.float32)
    for i in range(kh):
        for b in range(n):
            for oh in range(ho):
                h = oh * stride - pad + i
                if 0 <= h < h_in:                     # out-of-range == zero padding row
                    r[i, b * ho + oh, b * h_in + h] = 1.0
    return r


def _build_toeplitz_w(w_torch, w_in, cin_pad, stride, pad, cout_pad=None):
    """T[(i, w, c), (wo, co)] = weight[co, c, i, j] with j = w - (wo*stride - pad)."""
    cout, cin, kh, kw = w_torch.shape
    wo = (w_in - kw + 2 * pad) // stride + 1
    cout_pad = cout if cout_pad is None else cout_pad
    t = np.zeros((kh, w_in * cin_pad, wo * cout_pad), np.float32)
    for i in range(kh):
        for ow in range(wo):
            for j in range(kw):
                w_idx = ow * stride - pad + j
                if 0 <= w_idx < w_in:                 # out-of-range == zero padding col
                    t[i, w_idx * cin_pad: w_idx * cin_pad + cin,
                      ow * cout_pad: ow * cout_pad + cout] = w_torch[:, :, i, j].T
    return t.reshape(kh * w_in * cin_pad, wo * cout_pad)


def prepare_discriminator(params, batch, height, width):
    layers = []
    h, w, cpad = height, width, CIN_PAD0
    in_rows_pad = max(ROW_ALIGN, _round_up(batch * height, ROW_ALIGN))
    prev_rows_pad = in_rows_pad

    for (wt, b) in params["down"]:
        wt_np, b_np = np.asarray(wt), np.asarray(b)
        cout = wt_np.shape[0]
        ho, wo = (h - 4 + 2) // 2 + 1, (w - 4 + 2) // 2 + 1
        rows_pad = max(ROW_ALIGN, _round_up(batch * ho, ROW_ALIGN))
        r = _build_row_gather(batch, h, 4, 2, 1, rows_pad=rows_pad, cols=prev_rows_pad)
        t = _build_toeplitz_w(wt_np, w, cpad, 2, 1)
        bias = np.tile(b_np, wo)[None, :]
        layers.append((jnp.asarray(r, jnp.bfloat16),
                       jnp.asarray(t, jnp.bfloat16),
                       jnp.asarray(bias, jnp.float32)))
        h, w, cpad = ho, wo, cout
        prev_rows_pad = rows_pad

    wt, b = params["final"]
    wt_np, b_np = np.asarray(wt), np.asarray(b)
    ho, wo = (h - 3 + 2) // 1 + 1, (w - 3 + 2) // 1 + 1
    rows = batch * ho
    rows_pad = max(ROW_ALIGN, _round_up(rows, ROW_ALIGN))
    r = _build_row_gather(batch, h, 3, 1, 1, rows_pad=rows_pad, cols=prev_rows_pad)
    t = _build_toeplitz_w(wt_np, w, cpad, 1, 1, cout_pad=FINAL_COUT_PAD)
    bias = np.zeros((1, wo * FINAL_COUT_PAD), np.float32)
    bias[0, np.arange(wo) * FINAL_COUT_PAD] = b_np[0]
    layers.append((jnp.asarray(r, jnp.bfloat16),
                   jnp.asarray(t, jnp.bfloat16),
                   jnp.asarray(bias, jnp.float32)))

    meta = dict(rows=rows, rows_pad=rows_pad, ho=ho, wo=wo,
                out_cols=wo * FINAL_COUT_PAD, in_rows_pad=in_rows_pad)
    return layers, meta


# ----------------------------------------------------------------------------
# Full forward pass (single fused pallas_call, no grid: whole arrays in VMEM)
# ----------------------------------------------------------------------------
def discriminator_forward(x_nchw, prep):
    layers, meta = prep
    n, c, h, w = x_nchw.shape
    # NCHW -> (N*H, W*Cpad) bf16 with channels zero-padded to 8 (lane-aligned taps)
    x = jnp.transpose(x_nchw, (0, 2, 3, 1))
    x = jnp.pad(x, ((0, 0), (0, 0), (0, 0), (0, CIN_PAD0 - c)))
    x2 = x.reshape(n * h, w * CIN_PAD0)
    pad_rows = meta["in_rows_pad"] - n * h
    if pad_rows:
        x2 = jnp.pad(x2, ((0, pad_rows), (0, 0)))
    x2 = x2.astype(jnp.bfloat16)

    flat = [op for layer in layers for op in layer]
    out = pl.pallas_call(
        _discriminator_kernel,
        out_shape=jax.ShapeDtypeStruct((meta["rows_pad"], meta["out_cols"]),
                                       jnp.float32),
    )(x2, *flat)

    # un-pad the lane-dense result: row = n*Ho + ho, lane wo*128 holds cout=0
    res = out[:meta["rows"], ::FINAL_COUT_PAD]            # (n*ho, wo)
    return res.reshape(n, meta["ho"], meta["wo"])[:, None, :, :]   # NCHW


# ----------------------------------------------------------------------------
# Pure-JAX reference (lax.conv) with matching bf16 operands / f32 accumulation
# ----------------------------------------------------------------------------
def _ref_conv(x_nhwc, w_torch, b, stride, pad, slope):
    w_hwio = jnp.transpose(w_torch, (2, 3, 1, 0)).astype(jnp.bfloat16)
    y = lax.conv_general_dilated(
        x_nhwc.astype(jnp.bfloat16), w_hwio, (stride, stride),
        [(pad, pad), (pad, pad)], dimension_numbers=("NHWC", "HWIO", "NHWC"),
        preferred_element_type=jnp.float32)
    y = y + b.reshape(1, 1, 1, -1)
    if slope is not None:
        y = jnp.maximum(y, slope * y)
    return y


def discriminator_reference(x_nchw, params):
    x = jnp.transpose(x_nchw, (0, 2, 3, 1))
    for (w, b) in params["down"]:
        x = _ref_conv(x, w, b, 2, 1, LRELU_SLOPE)
    wf, bf = params["final"]
    x = _ref_conv(x, wf, bf, 1, 1, None)
    return jnp.transpose(x, (0, 3, 1, 2))


if __name__ == "__main__":
    key = jax.random.PRNGKey(0)
    k_param, k_input = jax.random.split(key)

    params = init_discriminator_params(k_param)
    # batch=2, 3 channels, 16x16 spatial -> PatchGAN output (2, 1, 1, 1)
    x = jax.random.normal(k_input, (2, 3, 16, 16), dtype=jnp.float32)

    prep = prepare_discriminator(params, 2, 16, 16)
    fwd = jax.jit(lambda inp: discriminator_forward(inp, prep))

    out = jax.block_until_ready(fwd(x))
    ref = jax.block_until_ready(discriminator_reference(x, params))

    assert out.shape == (2, 1, 1, 1), out.shape
    assert jnp.allclose(out, ref, atol=3e-3, rtol=3e-2), (out, ref)

    print("KERNEL_OK")
</pallas_src>

<mosaic_0001>
module attributes {stable_mosaic.version = 11 : i64} {
  func.func @_discriminator_kernel(%arg0: memref<32x128xbf16, #tpu.memory_space<vmem>>, %arg1: memref<4x16x32xbf16, #tpu.memory_space<vmem>>, %arg2: memref<512x256xbf16, #tpu.memory_space<vmem>>, %arg3: memref<1x256xf32, #tpu.memory_space<vmem>>, %arg4: memref<4x8x16xbf16, #tpu.memory_space<vmem>>, %arg5: memref<1024x256xbf16, #tpu.memory_space<vmem>>, %arg6: memref<1x256xf32, #tpu.memory_space<vmem>>, %arg7: memref<4x8x8xbf16, #tpu.memory_space<vmem>>, %arg8: memref<1024x256xbf16, #tpu.memory_space<vmem>>, %arg9: memref<1x256xf32, #tpu.memory_space<vmem>>, %arg10: memref<4x8x8xbf16, #tpu.memory_space<vmem>>, %arg11: memref<1024x256xbf16, #tpu.memory_space<vmem>>, %arg12: memref<1x256xf32, #tpu.memory_space<vmem>>, %arg13: memref<3x8x8xbf16, #tpu.memory_space<vmem>>, %arg14: memref<768x128xbf16, #tpu.memory_space<vmem>>, %arg15: memref<1x128xf32, #tpu.memory_space<vmem>>, %arg16: memref<8x128xf32, #tpu.memory_space<vmem>>) attributes {dimension_semantics = [], scalar_prefetch = 0 : i64, scratch_operands = 0 : i64, tpu.core_type = #tpu.core_type<tc>} {
    %c0 = arith.constant 0 : index
    %c0_0 = arith.constant 0 : index
    %0 = vector.load %arg0[%c0, %c0_0] : memref<32x128xbf16, #tpu.memory_space<vmem>>, vector<32x128xbf16>
    %c0_1 = arith.constant 0 : index
    %c0_2 = arith.constant 0 : index
    %c0_3 = arith.constant 0 : index
    %1 = vector.load %arg1[%c0_1, %c0_2, %c0_3] : memref<4x16x32xbf16, #tpu.memory_space<vmem>>, vector<1x16x32xbf16>
    %2 = vector.shape_cast %1 : vector<1x16x32xbf16> to vector<16x32xbf16>
    %cst = arith.constant dense<0.000000e+00> : vector<16x128xf32>
    %3 = tpu.matmul %2, %0, %cst {dimension_numbers = #tpu.dot_dimension_numbers<[1], [0], [0], [1], [0, 0, 1, 1], [], []>} : vector<16x32xbf16>, vector<32x128xbf16>, vector<16x128xf32> -> vector<16x128xf32>
    %4 = arith.truncf %3 : vector<16x128xf32> to vector<16x128xbf16>
    %c1 = arith.constant 1 : index
    %c0_4 = arith.constant 0 : index
    %c0_5 = arith.constant 0 : index
    %5 = vector.load %arg1[%c1, %c0_4, %c0_5] : memref<4x16x32xbf16, #tpu.memory_space<vmem>>, vector<1x16x32xbf16>
    %6 = vector.shape_cast %5 : vector<1x16x32xbf16> to vector<16x32xbf16>
    %cst_6 = arith.constant dense<0.000000e+00> : vector<16x128xf32>
    %7 = tpu.matmul %6, %0, %cst_6 {dimension_numbers = #tpu.dot_dimension_numbers<[1], [0], [0], [1], [0, 0, 1, 1], [], []>} : vector<16x32xbf16>, vector<32x128xbf16>, vector<16x128xf32> -> vector<16x128xf32>
    %8 = arith.truncf %7 : vector<16x128xf32> to vector<16x128xbf16>
    %c2 = arith.constant 2 : index
    %c0_7 = arith.constant 0 : index
    %c0_8 = arith.constant 0 : index
    %9 = vector.load %arg1[%c2, %c0_7, %c0_8] : memref<4x16x32xbf16, #tpu.memory_space<vmem>>, vector<1x16x32xbf16>
    %10 = vector.shape_cast %9 : vector<1x16x32xbf16> to vector<16x32xbf16>
    %cst_9 = arith.constant dense<0.000000e+00> : vector<16x128xf32>
    %11 = tpu.matmul %10, %0, %cst_9 {dimension_numbers = #tpu.dot_dimension_numbers<[1], [0], [0], [1], [0, 0, 1, 1], [], []>} : vector<16x32xbf16>, vector<32x128xbf16>, vector<16x128xf32> -> vector<16x128xf32>
    %12 = arith.truncf %11 : vector<16x128xf32> to vector<16x128xbf16>
    %c3 = arith.constant 3 : index
    %c0_10 = arith.constant 0 : index
    %c0_11 = arith.constant 0 : index
    %13 = vector.load %arg1[%c3, %c0_10, %c0_11] : memref<4x16x32xbf16, #tpu.memory_space<vmem>>, vector<1x16x32xbf16>
    %14 = vector.shape_cast %13 : vector<1x16x32xbf16> to vector<16x32xbf16>
    %cst_12 = arith.constant dense<0.000000e+00> : vector<16x128xf32>
    %15 = tpu.matmul %14, %0, %cst_12 {dimension_numbers = #tpu.dot_dimension_numbers<[1], [0], [0], [1], [0, 0, 1, 1], [], []>} : vector<16x32xbf16>, vector<32x128xbf16>, vector<16x128xf32> -> vector<16x128xf32>
    %16 = arith.truncf %15 : vector<16x128xf32> to vector<16x128xbf16>
    %17 = tpu.concatenate %4, %8, %12, %16 in 1 : vector<16x128xbf16>, vector<16x128xbf16>, vector<16x128xbf16>, vector<16x128xbf16> -> vector<16x512xbf16>
    %c0_13 = arith.constant 0 : index
    %c0_14 = arith.constant 0 : index
    %18 = vector.load %arg2[%c0_13, %c0_14] : memref<512x256xbf16, #tpu.memory_space<vmem>>, vector<512x256xbf16>
    %cst_15 = arith.constant dense<0.000000e+00> : vector<16x256xf32>
    %19 = tpu.matmul %17, %18, %cst_15 {dimension_numbers = #tpu.dot_dimension_numbers<[1], [0], [0], [1], [0, 0, 1, 1], [], []>} : vector<16x512xbf16>, vector<512x256xbf16>, vector<16x256xf32> -> vector<16x256xf32>
    %c0_16 = arith.constant 0 : index
    %c0_17 = arith.constant 0 : index
    %20 = vector.load %arg3[%c0_16, %c0_17] : memref<1x256xf32, #tpu.memory_space<vmem>>, vector<1x256xf32>
    %21 = vector.broadcast %20 : vector<1x256xf32> to vector<16x256xf32>
    %22 = arith.addf %19, %21 : vector<16x256xf32>
    %cst_18 = arith.constant 2.000000e-01 : f32
    %23 = vector.broadcast %cst_18 : f32 to vector<16x256xf32>
    %24 = arith.mulf %23, %22 : vector<16x256xf32>
    %25 = arith.maximumf %22, %24 : vector<16x256xf32>
    %26 = arith.truncf %25 : vector<16x256xf32> to vector<16x256xbf16>
    %c0_19 = arith.constant 0 : index
    %c0_20 = arith.constant 0 : index
    %c0_21 = arith.constant 0 : index
    %27 = vector.load %arg4[%c0_19, %c0_20, %c0_21] : memref<4x8x16xbf16, #tpu.memory_space<vmem>>, vector<1x8x16xbf16>
    %28 = vector.shape_cast %27 : vector<1x8x16xbf16> to vector<8x16xbf16>
    %cst_22 = arith.constant dense<0.000000e+00> : vector<8x256xf32>
    %29 = tpu.matmul %28, %26, %cst_22 {dimension_numbers = #tpu.dot_dimension_numbers<[1], [0], [0], [1], [0, 0, 1, 1], [], []>} : vector<8x16xbf16>, vector<16x256xbf16>, vector<8x256xf32> -> vector<8x256xf32>
    %30 = arith.truncf %29 : vector<8x256xf32> to vector<8x256xbf16>
    %c1_23 = arith.constant 1 : index
    %c0_24 = arith.constant 0 : index
    %c0_25 = arith.constant 0 : index
    %31 = vector.load %arg4[%c1_23, %c0_24, %c0_25] : memref<4x8x16xbf16, #tpu.memory_space<vmem>>, vector<1x8x16xbf16>
    %32 = vector.shape_cast %31 : vector<1x8x16xbf16> to vector<8x16xbf16>
    %cst_26 = arith.constant dense<0.000000e+00> : vector<8x256xf32>
    %33 = tpu.matmul %32, %26, %cst_26 {dimension_numbers = #tpu.dot_dimension_numbers<[1], [0], [0], [1], [0, 0, 1, 1], [], []>} : vector<8x16xbf16>, vector<16x256xbf16>, vector<8x256xf32> -> vector<8x256xf32>
    %34 = arith.truncf %33 : vector<8x256xf32> to vector<8x256xbf16>
    %c2_27 = arith.constant 2 : index
    %c0_28 = arith.constant 0 : index
    %c0_29 = arith.constant 0 : index
    %35 = vector.load %arg4[%c2_27, %c0_28, %c0_29] : memref<4x8x16xbf16, #tpu.memory_space<vmem>>, vector<1x8x16xbf16>
    %36 = vector.shape_cast %35 : vector<1x8x16xbf16> to vector<8x16xbf16>
    %cst_30 = arith.constant dense<0.000000e+00> : vector<8x256xf32>
    %37 = tpu.matmul %36, %26, %cst_30 {dimension_numbers = #tpu.dot_dimension_numbers<[1], [0], [0], [1], [0, 0, 1, 1], [], []>} : vector<8x16xbf16>, vector<16x256xbf16>, vector<8x256xf32> -> vector<8x256xf32>
    %38 = arith.truncf %37 : vector<8x256xf32> to vector<8x256xbf16>
    %c3_31 = arith.constant 3 : index
    %c0_32 = arith.constant 0 : index
    %c0_33 = arith.constant 0 : index
    %39 = vector.load %arg4[%c3_31, %c0_32, %c0_33] : memref<4x8x16xbf16, #tpu.memory_space<vmem>>, vector<1x8x16xbf16>
    %40 = vector.shape_cast %39 : vector<1x8x16xbf16> to vector<8x16xbf16>
    %cst_34 = arith.constant dense<0.000000e+00> : vector<8x256xf32>
    %41 = tpu.matmul %40, %26, %cst_34 {dimension_numbers = #tpu.dot_dimension_numbers<[1], [0], [0], [1], [0, 0, 1, 1], [], []>} : vector<8x16xbf16>, vector<16x256xbf16>, vector<8x256xf32> -> vector<8x256xf32>
    %42 = arith.truncf %41 : vector<8x256xf32> to vector<8x256xbf16>
    %43 = tpu.concatenate %30, %34, %38, %42 in 1 : vector<8x256xbf16>, vector<8x256xbf16>, vector<8x256xbf16>, vector<8x256xbf16> -> vector<8x1024xbf16>
    %c0_35 = arith.constant 0 : index
    %c0_36 = arith.constant 0 : index
    %44 = vector.load %arg5[%c0_35, %c0_36] : memref<1024x256xbf16, #tpu.memory_space<vmem>>, vector<1024x256xbf16>
    %cst_37 = arith.constant dense<0.000000e+00> : vector<8x256xf32>
    %45 = tpu.matmul %43, %44, %cst_37 {dimension_numbers = #tpu.dot_dimension_numbers<[1], [0], [0], [1], [0, 0, 1, 1], [], []>} : vector<8x1024xbf16>, vector<1024x256xbf16>, vector<8x256xf32> -> vector<8x256xf32>
    %c0_38 = arith.constant 0 : index
    %c0_39 = arith.constant 0 : index
    %46 = vector.load %arg6[%c0_38, %c0_39] : memref<1x256xf32, #tpu.memory_space<vmem>>, vector<1x256xf32>
    %47 = vector.broadcast %46 : vector<1x256xf32> to vector<8x256xf32>
    %48 = arith.addf %45, %47 : vector<8x256xf32>
    %cst_40 = arith.constant 2.000000e-01 : f32
    %49 = vector.broadcast %cst_40 : f32 to vector<8x256xf32>
    %50 = arith.mulf %49, %48 : vector<8x256xf32>
    %51 = arith.maximumf %48, %50 : vector<8x256xf32>
    %52 = arith.truncf %51 : vector<8x256xf32> to vector<8x256xbf16>
    %c0_41 = arith.constant 0 : index
    %c0_42 = arith.constant 0 : index
    %c0_43 = arith.constant 0 : index
    %53 = vector.load %arg7[%c0_41, %c0_42, %c0_43] : memref<4x8x8xbf16, #tpu.memory_space<vmem>>, vector<1x8x8xbf16>
    %54 = vector.shape_cast %53 : vector<1x8x8xbf16> to vector<8x8xbf16>
    %cst_44 = arith.constant dense<0.000000e+00> : vector<8x256xf32>
    %55 = tpu.matmul %54, %52, %cst_44 {dimension_numbers = #tpu.dot_dimension_numbers<[1], [0], [0], [1], [0, 0, 1, 1], [], []>} : vector<8x8xbf16>, vector<8x256xbf16>, vector<8x256xf32> -> vector<8x256xf32>
    %56 = arith.truncf %55 : vector<8x256xf32> to vector<8x256xbf16>
    %c1_45 = arith.constant 1 : index
    %c0_46 = arith.constant 0 : index
    %c0_47 = arith.constant 0 : index
    %57 = vector.load %arg7[%c1_45, %c0_46, %c0_47] : memref<4x8x8xbf16, #tpu.memory_space<vmem>>, vector<1x8x8xbf16>
    %58 = vector.shape_cast %57 : vector<1x8x8xbf16> to vector<8x8xbf16>
    %cst_48 = arith.constant dense<0.000000e+00> : vector<8x256xf32>
    %59 = tpu.matmul %58, %52, %cst_48 {dimension_numbers = #tpu.dot_dimension_numbers<[1], [0], [0], [1], [0, 0, 1, 1], [], []>} : vector<8x8xbf16>, vector<8x256xbf16>, vector<8x256xf32> -> vector<8x256xf32>
    %60 = arith.truncf %59 : vector<8x256xf32> to vector<8x256xbf16>
    %c2_49 = arith.constant 2 : index
    %c0_50 = arith.constant 0 : index
    %c0_51 = arith.constant 0 : index
    %61 = vector.load %arg7[%c2_49, %c0_50, %c0_51] : memref<4x8x8xbf16, #tpu.memory_space<vmem>>, vector<1x8x8xbf16>
    %62 = vector.shape_cast %61 : vector<1x8x8xbf16> to vector<8x8xbf16>
    %cst_52 = arith.constant dense<0.000000e+00> : vector<8x256xf32>
    %63 = tpu.matmul %62, %52, %cst_52 {dimension_numbers = #tpu.dot_dimension_numbers<[1], [0], [0], [1], [0, 0, 1, 1], [], []>} : vector<8x8xbf16>, vector<8x256xbf16>, vector<8x256xf32> -> vector<8x256xf32>
    %64 = arith.truncf %63 : vector<8x256xf32> to vector<8x256xbf16>
    %c3_53 = arith.constant 3 : index
    %c0_54 = arith.constant 0 : index
    %c0_55 = arith.constant 0 : index
    %65 = vector.load %arg7[%c3_53, %c0_54, %c0_55] : memref<4x8x8xbf16, #tpu.memory_space<vmem>>, vector<1x8x8xbf16>
    %66 = vector.shape_cast %65 : vector<1x8x8xbf16> to vector<8x8xbf16>
    %cst_56 = arith.constant dense<0.000000e+00> : vector<8x256xf32>
    %67 = tpu.matmul %66, %52, %cst_56 {dimension_numbers = #tpu.dot_dimension_numbers<[1], [0], [0], [1], [0, 0, 1, 1], [], []>} : vector<8x8xbf16>, vector<8x256xbf16>, vector<8x256xf32> -> vector<8x256xf32>
    %68 = arith.truncf %67 : vector<8x256xf32> to vector<8x256xbf16>
    %69 = tpu.concatenate %56, %60, %64, %68 in 1 : vector<8x256xbf16>, vector<8x256xbf16>, vector<8x256xbf16>, vector<8x256xbf16> -> vector<8x1024xbf16>
    %c0_57 = arith.constant 0 : index
    %c0_58 = arith.constant 0 : index
    %70 = vector.load %arg8[%c0_57, %c0_58] : memref<1024x256xbf16, #tpu.memory_space<vmem>>, vector<1024x256xbf16>
    %cst_59 = arith.constant dense<0.000000e+00> : vector<8x256xf32>
    %71 = tpu.matmul %69, %70, %cst_59 {dimension_numbers = #tpu.dot_dimension_numbers<[1], [0], [0], [1], [0, 0, 1, 1], [], []>} : vector<8x1024xbf16>, vector<1024x256xbf16>, vector<8x256xf32> -> vector<8x256xf32>
    %c0_60 = arith.constant 0 : index
    %c0_61 = arith.constant 0 : index
    %72 = vector.load %arg9[%c0_60, %c0_61] : memref<1x256xf32, #tpu.memory_space<vmem>>, vector<1x256xf32>
    %73 = vector.broadcast %72 : vector<1x256xf32> to vector<8x256xf32>
    %74 = arith.addf %71, %73 : vector<8x256xf32>
    %cst_62 = arith.constant 2.000000e-01 : f32
    %75 = vector.broadcast %cst_62 : f32 to vector<8x256xf32>
    %76 = arith.mulf %75, %74 : vector<8x256xf32>
    %77 = arith.maximumf %74, %76 : vector<8x256xf32>
    %78 = arith.truncf %77 : vector<8x256xf32> to vector<8x256xbf16>
    %c0_63 = arith.constant 0 : index
    %c0_64 = arith.constant 0 : index
    %c0_65 = arith.constant 0 : index
    %79 = vector.load %arg10[%c0_63, %c0_64, %c0_65] : memref<4x8x8xbf16, #tpu.memory_space<vmem>>, vector<1x8x8xbf16>
    %80 = vector.shape_cast %79 : vector<1x8x8xbf16> to vector<8x8xbf16>
    %cst_66 = arith.constant dense<0.000000e+00> : vector<8x256xf32>
    %81 = tpu.matmul %80, %78, %cst_66 {dimension_numbers = #tpu.dot_dimension_numbers<[1], [0], [0], [1], [0, 0, 1, 1], [], []>} : vector<8x8xbf16>, vector<8x256xbf16>, vector<8x256xf32> -> vector<8x256xf32>
    %82 = arith.truncf %81 : vector<8x256xf32> to vector<8x256xbf16>
    %c1_67 = arith.constant 1 : index
    %c0_68 = arith.constant 0 : index
    %c0_69 = arith.constant 0 : index
    %83 = vector.load %arg10[%c1_67, %c0_68, %c0_69] : memref<4x8x8xbf16, #tpu.memory_space<vmem>>, vector<1x8x8xbf16>
    %84 = vector.shape_cast %83 : vector<1x8x8xbf16> to vector<8x8xbf16>
    %cst_70 = arith.constant dense<0.000000e+00> : vector<8x256xf32>
    %85 = tpu.matmul %84, %78, %cst_70 {dimension_numbers = #tpu.dot_dimension_numbers<[1], [0], [0], [1], [0, 0, 1, 1], [], []>} : vector<8x8xbf16>, vector<8x256xbf16>, vector<8x256xf32> -> vector<8x256xf32>
    %86 = arith.truncf %85 : vector<8x256xf32> to vector<8x256xbf16>
    %c2_71 = arith.constant 2 : index
    %c0_72 = arith.constant 0 : index
    %c0_73 = arith.constant 0 : index
    %87 = vector.load %arg10[%c2_71, %c0_72, %c0_73] : memref<4x8x8xbf16, #tpu.memory_space<vmem>>, vector<1x8x8xbf16>
    %88 = vector.shape_cast %87 : vector<1x8x8xbf16> to vector<8x8xbf16>
    %cst_74 = arith.constant dense<0.000000e+00> : vector<8x256xf32>
    %89 = tpu.matmul %88, %78, %cst_74 {dimension_numbers = #tpu.dot_dimension_numbers<[1], [0], [0], [1], [0, 0, 1, 1], [], []>} : vector<8x8xbf16>, vector<8x256xbf16>, vector<8x256xf32> -> vector<8x256xf32>
    %90 = arith.truncf %89 : vector<8x256xf32> to vector<8x256xbf16>
    %c3_75 = arith.constant 3 : index
    %c0_76 = arith.constant 0 : index
    %c0_77 = arith.constant 0 : index
    %91 = vector.load %arg10[%c3_75, %c0_76, %c0_77] : memref<4x8x8xbf16, #tpu.memory_space<vmem>>, vector<1x8x8xbf16>
    %92 = vector.shape_cast %91 : vector<1x8x8xbf16> to vector<8x8xbf16>
    %cst_78 = arith.constant dense<0.000000e+00> : vector<8x256xf32>
    %93 = tpu.matmul %92, %78, %cst_78 {dimension_numbers = #tpu.dot_dimension_numbers<[1], [0], [0], [1], [0, 0, 1, 1], [], []>} : vector<8x8xbf16>, vector<8x256xbf16>, vector<8x256xf32> -> vector<8x256xf32>
    %94 = arith.truncf %93 : vector<8x256xf32> to vector<8x256xbf16>
    %95 = tpu.concatenate %82, %86, %90, %94 in 1 : vector<8x256xbf16>, vector<8x256xbf16>, vector<8x256xbf16>, vector<8x256xbf16> -> vector<8x1024xbf16>
    %c0_79 = arith.constant 0 : index
    %c0_80 = arith.constant 0 : index
    %96 = vector.load %arg11[%c0_79, %c0_80] : memref<1024x256xbf16, #tpu.memory_space<vmem>>, vector<1024x256xbf16>
    %cst_81 = arith.constant dense<0.000000e+00> : vector<8x256xf32>
    %97 = tpu.matmul %95, %96, %cst_81 {dimension_numbers = #tpu.dot_dimension_numbers<[1], [0], [0], [1], [0, 0, 1, 1], [], []>} : vector<8x1024xbf16>, vector<1024x256xbf16>, vector<8x256xf32> -> vector<8x256xf32>
    %c0_82 = arith.constant 0 : index
    %c0_83 = arith.constant 0 : index
    %98 = vector.load %arg12[%c0_82, %c0_83] : memref<1x256xf32, #tpu.memory_space<vmem>>, vector<1x256xf32>
    %99 = vector.broadcast %98 : vector<1x256xf32> to vector<8x256xf32>
    %100 = arith.addf %97, %99 : vector<8x256xf32>
    %cst_84 = arith.constant 2.000000e-01 : f32
    %101 = vector.broadcast %cst_84 : f32 to vector<8x256xf32>
    %102 = arith.mulf %101, %100 : vector<8x256xf32>
    %103 = arith.maximumf %100, %102 : vector<8x256xf32>
    %104 = arith.truncf %103 : vector<8x256xf32> to vector<8x256xbf16>
    %c0_85 = arith.constant 0 : index
    %c0_86 = arith.constant 0 : index
    %c0_87 = arith.constant 0 : index
    %105 = vector.load %arg13[%c0_85, %c0_86, %c0_87] : memref<3x8x8xbf16, #tpu.memory_space<vmem>>, vector<1x8x8xbf16>
    %106 = vector.shape_cast %105 : vector<1x8x8xbf16> to vector<8x8xbf16>
    %cst_88 = arith.constant dense<0.000000e+00> : vector<8x256xf32>
    %107 = tpu.matmul %106, %104, %cst_88 {dimension_numbers = #tpu.dot_dimension_numbers<[1], [0], [0], [1], [0, 0, 1, 1], [], []>} : vector<8x8xbf16>, vector<8x256xbf16>, vector<8x256xf32> -> vector<8x256xf32>
    %108 = arith.truncf %107 : vector<8x256xf32> to vector<8x256xbf16>
    %c1_89 = arith.constant 1 : index
    %c0_90 = arith.constant 0 : index
    %c0_91 = arith.constant 0 : index
    %109 = vector.load %arg13[%c1_89, %c0_90, %c0_91] : memref<3x8x8xbf16, #tpu.memory_space<vmem>>, vector<1x8x8xbf16>
    %110 = vector.shape_cast %109 : vector<1x8x8xbf16> to vector<8x8xbf16>
    %cst_92 = arith.constant dense<0.000000e+00> : vector<8x256xf32>
    %111 = tpu.matmul %110, %104, %cst_92 {dimension_numbers = #tpu.dot_dimension_numbers<[1], [0], [0], [1], [0, 0, 1, 1], [], []>} : vector<8x8xbf16>, vector<8x256xbf16>, vector<8x256xf32> -> vector<8x256xf32>
    %112 = arith.truncf %111 : vector<8x256xf32> to vector<8x256xbf16>
    %c2_93 = arith.constant 2 : index
    %c0_94 = arith.constant 0 : index
    %c0_95 = arith.constant 0 : index
    %113 = vector.load %arg13[%c2_93, %c0_94, %c0_95] : memref<3x8x8xbf16, #tpu.memory_space<vmem>>, vector<1x8x8xbf16>
    %114 = vector.shape_cast %113 : vector<1x8x8xbf16> to vector<8x8xbf16>
    %cst_96 = arith.constant dense<0.000000e+00> : vector<8x256xf32>
    %115 = tpu.matmul %114, %104, %cst_96 {dimension_numbers = #tpu.dot_dimension_numbers<[1], [0], [0], [1], [0, 0, 1, 1], [], []>} : vector<8x8xbf16>, vector<8x256xbf16>, vector<8x256xf32> -> vector<8x256xf32>
    %116 = arith.truncf %115 : vector<8x256xf32> to vector<8x256xbf16>
    %117 = tpu.concatenate %108, %112, %116 in 1 : vector<8x256xbf16>, vector<8x256xbf16>, vector<8x256xbf16> -> vector<8x768xbf16>
    %c0_97 = arith.constant 0 : index
    %c0_98 = arith.constant 0 : index
    %118 = vector.load %arg14[%c0_97, %c0_98] : memref<768x128xbf16, #tpu.memory_space<vmem>>, vector<768x128xbf16>
    %cst_99 = arith.constant dense<0.000000e+00> : vector<8x128xf32>
    %119 = tpu.matmul %117, %118, %cst_99 {dimension_numbers = #tpu.dot_dimension_numbers<[1], [0], [0], [1], [0, 0, 1, 1], [], []>} : vector<8x768xbf16>, vector<768x128xbf16>, vector<8x128xf32> -> vector<8x128xf32>
    %c0_100 = arith.constant 0 : index
    %c0_101 = arith.constant 0 : index
    %120 = vector.load %arg15[%c0_100, %c0_101] : memref<1x128xf32, #tpu.memory_space<vmem>>, vector<1x128xf32>
    %121 = vector.broadcast %120 : vector<1x128xf32> to vector<8x128xf32>
    %122 = arith.addf %119, %121 : vector<8x128xf32>
    %c0_102 = arith.constant 0 : index
    %c0_103 = arith.constant 0 : index
    %123 = vector.load %arg16[%c0_102, %c0_103] : memref<8x128xf32, #tpu.memory_space<vmem>>, vector<8x128xf32>
    tpu.vector_store %arg16[%c0_102, %c0_103], %122 {strides = array<i32>} : memref<8x128xf32, #tpu.memory_space<vmem>>, vector<8x128xf32>,
    return
  }
}

</mosaic_0001>

<llo_original>
// kernel: _lambda_.1
$region0: #{_lambda_.1}
  #allocation0 [shape = 'u32[]', space=smem, size = 0x4, offset = 0x4, fixed_abs, tag = 'smem constant byte address 0x4 - core index']
  #allocation1 [shape = 'u32[144,128]{1,0:T(1,128)}', space=vmem, size = 0x12000, scoped, tag = 'internal scratch']
  %s0 = inlined_call_operand.vmem [shape: bf16[32,128], index: 0, kind: input, shape index: {}]
  %s1 = inlined_call_operand.vmem [shape: bf16[4,16,32], index: 1, kind: input, shape index: {}]
  %s2 = inlined_call_operand.vmem [shape: bf16[512,256], index: 2, kind: input, shape index: {}]
  %s3 = inlined_call_operand.vmem [shape: f32[1,256], index: 3, kind: input, shape index: {}, may-alias: {3,6,9,12}]
  %s4 = inlined_call_operand.vmem [shape: bf16[4,8,16], index: 4, kind: input, shape index: {}]
  %s5 = inlined_call_operand.vmem [shape: bf16[1024,256], index: 5, kind: input, shape index: {}]
  %s6 = inlined_call_operand.vmem [shape: f32[1,256], index: 6, kind: input, shape index: {}, may-alias: {3,6,9,12}]
  %s7 = inlined_call_operand.vmem [shape: bf16[4,8,8], index: 7, kind: input, shape index: {}]
  %s8 = inlined_call_operand.vmem [shape: bf16[1024,256], index: 8, kind: input, shape index: {}]
  %s9 = inlined_call_operand.vmem [shape: f32[1,256], index: 9, kind: input, shape index: {}, may-alias: {3,6,9,12}]
  %s10 = inlined_call_operand.vmem [shape: bf16[4,8,8], index: 10, kind: input, shape index: {}]
  %s11 = inlined_call_operand.vmem [shape: bf16[1024,256], index: 11, kind: input, shape index: {}]
  %s12 = inlined_call_operand.vmem [shape: f32[1,256], index: 12, kind: input, shape index: {}, may-alias: {3,6,9,12}]
  %s13 = inlined_call_operand.vmem [shape: bf16[3,8,8], index: 13, kind: input, shape index: {}]
  %s14 = inlined_call_operand.vmem [shape: bf16[768,128], index: 14, kind: input, shape index: {}]
  %s15 = inlined_call_operand.vmem [shape: f32[1,128], index: 15, kind: input, shape index: {}]
  %s16 = inlined_call_operand.vmem [shape: f32[8,128], index: 16, kind: output, shape index: {}]
  %s17 = sld [smem:[#allocation0]]
  $region74: #{_lambda_.1} parent=0
    _
  %s19 = ssub.s32 1, %s17
  %s20 = scalar_select 0, %s19, %s17
  // Predicated region
  $region2: #{_lambda_.1} parent=0 // pred_check
    _
  $region3: #{_lambda_.1} parent=0 // pred_check_branch
    %22 = sbr.rel (0) target = $region5
  $region4: #{_lambda_.1} parent=0 // pred_region
    _
  $region5: #{_lambda_.1} parent=0 // pred_fallthru
    _
  // Predicated region
  $region6: #{_lambda_.1} parent=0 // pred_check
    _
  $region7: #{_lambda_.1} parent=0 // pred_check_branch
    %24 = sbr.rel (0) target = $region9
  $region8: #{_lambda_.1} parent=0 // pred_region
    _
  $region9: #{_lambda_.1} parent=0 // pred_fallthru
    _
  // Predicated region
  $region10: #{_lambda_.1} parent=0 // pred_check
    _
  $region11: #{_lambda_.1} parent=0 // pred_check_branch
    %26 = sbr.rel (0) target = $region13
  $region12: #{_lambda_.1} parent=0 // pred_region
    _
  $region13: #{_lambda_.1} parent=0 // pred_fallthru
    _
  // Predicated region
  $region14: #{_lambda_.1} parent=0 // pred_check
    _
  $region15: #{_lambda_.1} parent=0 // pred_check_branch
    %28 = sbr.rel (0) target = $region17
  $region16: #{_lambda_.1} parent=0 // pred_region
    _
  $region17: #{_lambda_.1} parent=0 // pred_fallthru
    _
  // Predicated region
  $region18: #{_lambda_.1} parent=0 // pred_check
    _
  $region19: #{_lambda_.1} parent=0 // pred_check_branch
    %30 = sbr.rel (0) target = $region21
  $region20: #{_lambda_.1} parent=0 // pred_region
    _
  $region21: #{_lambda_.1} parent=0 // pred_fallthru
    _
  // Predicated region
  $region22: #{_lambda_.1} parent=0 // pred_check
    _
  $region23: #{_lambda_.1} parent=0 // pred_check_branch
    %32 = sbr.rel (0) target = $region25
  $region24: #{_lambda_.1} parent=0 // pred_region
    _
  $region25: #{_lambda_.1} parent=0 // pred_fallthru
    _
  // Predicated region
  $region26: #{_lambda_.1} parent=0 // pred_check
    _
  $region27: #{_lambda_.1} parent=0 // pred_check_branch
    %34 = sbr.rel (0) target = $region29
  $region28: #{_lambda_.1} parent=0 // pred_region
    _
  $region29: #{_lambda_.1} parent=0 // pred_fallthru
    _
  // Predicated region
  $region30: #{_lambda_.1} parent=0 // pred_check
    _
  $region31: #{_lambda_.1} parent=0 // pred_check_branch
    %36 = sbr.rel (0) target = $region33
  $region32: #{_lambda_.1} parent=0 // pred_region
    _
  $region33: #{_lambda_.1} parent=0 // pred_fallthru
    _
  // Predicated region
  $region34: #{_lambda_.1} parent=0 // pred_check
    _
  $region35: #{_lambda_.1} parent=0 // pred_check_branch
    %38 = sbr.rel (0) target = $region37
  $region36: #{_lambda_.1} parent=0 // pred_region
    _
  $region37: #{_lambda_.1} parent=0 // pred_fallthru
    _
  // Predicated region
  $region38: #{_lambda_.1} parent=0 // pred_check
    _
  $region39: #{_lambda_.1} parent=0 // pred_check_branch
    %40 = sbr.rel (0) target = $region41
  $region40: #{_lambda_.1} parent=0 // pred_region
    _
  $region41: #{_lambda_.1} parent=0 // pred_fallthru
    _
  // Predicated region
  $region42: #{_lambda_.1} parent=0 // pred_check
    _
  $region43: #{_lambda_.1} parent=0 // pred_check_branch
    %42 = sbr.rel (0) target = $region45
  $region44: #{_lambda_.1} parent=0 // pred_region
    _
  $region45: #{_lambda_.1} parent=0 // pred_fallthru
    _
  // Predicated region
  $region46: #{_lambda_.1} parent=0 // pred_check
    _
  $region47: #{_lambda_.1} parent=0 // pred_check_branch
    %44 = sbr.rel (0) target = $region49
  $region48: #{_lambda_.1} parent=0 // pred_region
    _
  $region49: #{_lambda_.1} parent=0 // pred_fallthru
    _
  // Predicated region
  $region50: #{_lambda_.1} parent=0 // pred_check
    _
  $region51: #{_lambda_.1} parent=0 // pred_check_branch
    %46 = sbr.rel (0) target = $region53
  $region52: #{_lambda_.1} parent=0 // pred_region
    _
  $region53: #{_lambda_.1} parent=0 // pred_fallthru
    _
  // Predicated region
  $region54: #{_lambda_.1} parent=0 // pred_check
    _
  $region55: #{_lambda_.1} parent=0 // pred_check_branch
    %48 = sbr.rel (0) target = $region57
  $region56: #{_lambda_.1} parent=0 // pred_region
    _
  $region57: #{_lambda_.1} parent=0 // pred_fallthru
    _
  // Predicated region
  $region58: #{_lambda_.1} parent=0 // pred_check
    _
  $region59: #{_lambda_.1} parent=0 // pred_check_branch
    %50 = sbr.rel (0) target = $region61
  $region60: #{_lambda_.1} parent=0 // pred_region
    _
  $region61: #{_lambda_.1} parent=0 // pred_fallthru
    _
  // Predicated region
  $region62: #{_lambda_.1} parent=0 // pred_check
    _
  $region63: #{_lambda_.1} parent=0 // pred_check_branch
    %52 = sbr.rel (0) target = $region65
  $region64: #{_lambda_.1} parent=0 // pred_region
    _
  $region65: #{_lambda_.1} parent=0 // pred_fallthru
    _
  %v54 = vld [vmem:[%s0] sm:$0xf]
  %v55 = vld [vmem:[%s0 + $0x4] sm:$0xf]
  %v56 = vld [vmem:[%s0 + $0x8] sm:$0xf]
  %v57 = vld [vmem:[%s0 + $0xc] sm:$0xf]
  %v58 = vld [vmem:[%s1] sm:$0xf]
  %v59 = vld [vmem:[%s1 + $0x4] sm:$0xf]
  %v62 = vunpack.c.l.b16 %v58
  %v63 = vunpack.c.l.b16 %v59
  %v64 = vpack.c.b16 %v63, %v62
  %v69 = vunpack.c.l.b16 %v54
  %v70 = vunpack.c.l.b16 %v55
  %v71 = vunpack.c.l.b16 %v56
  %v72 = vunpack.c.l.b16 %v57
  %v73 = vpack.c.b16 %v70, %v69
  %v74 = vpack.c.b16 %v72, %v71
  %vm77 = vcmask 261120
  %v79 = vsel %vm77, %v64, 0
  %81 = vmatprep.subr.bf16.mxu0 0
  %82 = vmatpush1.bf16.msra.mxu0 %v73
  %83 = vmatprep.subr.bf16.mxu0 0
  %84 = vmatpush1.bf16.msra.mxu0 %v74
  %85 = vmatprep.subr.bf16.mxu0 0
  %86 = vmatpush1.bf16.msra.mxu0 0
  %87 = vmatprep.subr.bf16.mxu0 0
  %88 = vmatpush1.bf16.msra.mxu0 0
  %89 = vmatprep.subr.bf16.mxu0 0
  %90 = vmatpush1.bf16.msra.mxu0 0
  %91 = vmatprep.subr.bf16.mxu0 0
  %92 = vmatpush1.bf16.msra.mxu0 0
  %93 = vmatprep.subr.bf16.mxu0 0
  %94 = vmatpush1.bf16.msra.mxu0 0
  %95 = vmatprep.subr.bf16.mxu0 0
  %96 = vmatpush1.bf16.msra.mxu0 0
  %97 = vmatprep.subr.bf16.mxu0 0
  %98 = vmatpush1.bf16.msra.mxu0 0
  %99 = vmatprep.subr.bf16.mxu0 0
  %100 = vmatpush1.bf16.msra.mxu0 0
  %101 = vmatprep.subr.bf16.mxu0 0
  %102 = vmatpush1.bf16.msra.mxu0 0
  %103 = vmatprep.subr.bf16.mxu0 0
  %104 = vmatpush1.bf16.msra.mxu0 0
  %105 = vmatprep.subr.bf16.mxu0 0
  %106 = vmatpush1.bf16.msra.mxu0 0
  %107 = vmatprep.subr.bf16.mxu0 0
  %108 = vmatpush1.bf16.msra.mxu0 0
  %109 = vmatprep.subr.bf16.mxu0 0
  %110 = vmatpush1.bf16.msra.mxu0 0
  %111 = vmatprep.subr.bf16.mxu0 0
  %112 = vmatpush1.bf16.msra.mxu0 0
  %113 = vmatprep.mubr.bf16.mxu0 0
  %114 = vmatmul.mubr.bf16.gmra.mrb[0].mxu0 %v79
  %v115 = vpop.f32.mrb[0].mxu0
  %v116 = vadd.f32 0.0, %v115
  %v117 = vpop.f32.mrb[0].mxu0
  %v118 = vpop.f32.mrb[0].mxu0
  %v119 = vadd.f32 0.0, %v118
  %v120 = vpop.f32.mrb[0].mxu0
  %121 = vdwg.mxu0
  %v122 = vpack.c.bf16 %v119, %v116
  %s123 = scalar_lea.vmem %s1, 8
  %v124 = vld [vmem:[%s123] sm:$0xf]
  %v125 = vld [vmem:[%s123 + $0x4] sm:$0xf]
  %v128 = vunpack.c.l.b16 %v124
  %v129 = vunpack.c.l.b16 %v125
  %v130 = vpack.c.b16 %v129, %v128
  %v132 = vsel %vm77, %v130, 0
  %134 = vmatprep.subr.bf16.mxu0 0
  %135 = vmatpush1.bf16.msra.mxu0 %v73
  %136 = vmatprep.subr.bf16.mxu0 0
  %137 = vmatpush1.bf16.msra.mxu0 %v74
  %138 = vmatprep.subr.bf16.mxu0 0
  %139 = vmatpush1.bf16.msra.mxu0 0
  %140 = vmatprep.subr.bf16.mxu0 0
  %141 = vmatpush1.bf16.msra.mxu0 0
  %142 = vmatprep.subr.bf16.mxu0 0
  %143 = vmatpush1.bf16.msra.mxu0 0
  %144 = vmatprep.subr.bf16.mxu0 0
  %145 = vmatpush1.bf16.msra.mxu0 0
  %146 = vmatprep.subr.bf16.mxu0 0
  %147 = vmatpush1.bf16.msra.mxu0 0
  %148 = vmatprep.subr.bf16.mxu0 0
  %149 = vmatpush1.bf16.msra.mxu0 0
  %150 = vmatprep.subr.bf16.mxu0 0
  %151 = vmatpush1.bf16.msra.mxu0 0
  %152 = vmatprep.subr.bf16.mxu0 0
  %153 = vmatpush1.bf16.msra.mxu0 0
  %154 = vmatprep.subr.bf16.mxu0 0
  %155 = vmatpush1.bf16.msra.mxu0 0
  %156 = vmatprep.subr.bf16.mxu0 0
  %157 = vmatpush1.bf16.msra.mxu0 0
  %158 = vmatprep.subr.bf16.mxu0 0
  %159 = vmatpush1.bf16.msra.mxu0 0
  %160 = vmatprep.subr.bf16.mxu0 0
  %161 = vmatpush1.bf16.msra.mxu0 0
  %162 = vmatprep.subr.bf16.mxu0 0
  %163 = vmatpush1.bf16.msra.mxu0 0
  %164 = vmatprep.subr.bf16.mxu0 0
  %165 = vmatpush1.bf16.msra.mxu0 0
  %166 = vmatprep.mubr.bf16.mxu0 0
  %167 = vmatmul.mubr.bf16.gmra.mrb[0].mxu0 %v132
  %v168 = vpop.f32.mrb[0].mxu0
  %v169 = vadd.f32 0.0, %v168
  %v170 = vpop.f32.mrb[0].mxu0
  %v171 = vpop.f32.mrb[0].mxu0
  %v172 = vadd.f32 0.0, %v171
  %v173 = vpop.f32.mrb[0].mxu0
  %174 = vdwg.mxu0
  %v175 = vpack.c.bf16 %v172, %v169
  %s176 = scalar_lea.vmem %s1, 16
  %v177 = vld [vmem:[%s176] sm:$0xf]
  %v178 = vld [vmem:[%s176 + $0x4] sm:$0xf]
  %v181 = vunpack.c.l.b16 %v177
  %v182 = vunpack.c.l.b16 %v178
  %v183 = vpack.c.b16 %v182, %v181
  %v185 = vsel %vm77, %v183, 0
  %187 = vmatprep.subr.bf16.mxu0 0
  %188 = vmatpush1.bf16.msra.mxu0 %v73
  %189 = vmatprep.subr.bf16.mxu0 0
  %190 = vmatpush1.bf16.msra.mxu0 %v74
  %191 = vmatprep.subr.bf16.mxu0 0
  %192 = vmatpush1.bf16.msra.mxu0 0
  %193 = vmatprep.subr.bf16.mxu0 0
  %194 = vmatpush1.bf16.msra.mxu0 0
  %195 = vmatprep.subr.bf16.mxu0 0
  %196 = vmatpush1.bf16.msra.mxu0 0
  %197 = vmatprep.subr.bf16.mxu0 0
  %198 = vmatpush1.bf16.msra.mxu0 0
  %199 = vmatprep.subr.bf16.mxu0 0
  %200 = vmatpush1.bf16.msra.mxu0 0
  %201 = vmatprep.subr.bf16.mxu0 0
  %202 = vmatpush1.bf16.msra.mxu0 0
  %203 = vmatprep.subr.bf16.mxu0 0
  %204 = vmatpush1.bf16.msra.mxu0 0
  %205 = vmatprep.subr.bf16.mxu0 0
  %206 = vmatpush1.bf16.msra.mxu0 0
  %207 = vmatprep.subr.bf16.mxu0 0
  %208 = vmatpush1.bf16.msra.mxu0 0
  %209 = vmatprep.subr.bf16.mxu0 0
  %210 = vmatpush1.bf16.msra.mxu0 0
  %211 = vmatprep.subr.bf16.mxu0 0
  %212 = vmatpush1.bf16.msra.mxu0 0
  %213 = vmatprep.subr.bf16.mxu0 0
  %214 = vmatpush1.bf16.msra.mxu0 0
  %215 = vmatprep.subr.bf16.mxu0 0
  %216 = vmatpush1.bf16.msra.mxu0 0
  %217 = vmatprep.subr.bf16.mxu0 0
  %218 = vmatpush1.bf16.msra.mxu0 0
  %219 = vmatprep.mubr.bf16.mxu0 0
  %220 = vmatmul.mubr.bf16.gmra.mrb[0].mxu0 %v185
  %v221 = vpop.f32.mrb[0].mxu0
  %v222 = vadd.f32 0.0, %v221
  %v223 = vpop.f32.mrb[0].mxu0
  %v224 = vpop.f32.mrb[0].mxu0
  %v225 = vadd.f32 0.0, %v224
  %v226 = vpop.f32.mrb[0].mxu0
  %227 = vdwg.mxu0
  %v228 = vpack.c.bf16 %v225, %v222
  %s229 = scalar_lea.vmem %s1, 24
  %v230 = vld [vmem:[%s229] sm:$0xf]
  %v231 = vld [vmem:[%s229 + $0x4] sm:$0xf]
  %v234 = vunpack.c.l.b16 %v230
  %v235 = vunpack.c.l.b16 %v231
  %v236 = vpack.c.b16 %v235, %v234
  %v238 = vsel %vm77, %v236, 0
  %240 = vmatprep.subr.bf16.mxu0 0
  %241 = vmatpush1.bf16.msra.mxu0 %v73
  %242 = vmatprep.subr.bf16.mxu0 0
  %243 = vmatpush1.bf16.msra.mxu0 %v74
  %244 = vmatprep.subr.bf16.mxu0 0
  %245 = vmatpush1.bf16.msra.mxu0 0
  %246 = vmatprep.subr.bf16.mxu0 0
  %247 = vmatpush1.bf16.msra.mxu0 0
  %248 = vmatprep.subr.bf16.mxu0 0
  %249 = vmatpush1.bf16.msra.mxu0 0
  %250 = vmatprep.subr.bf16.mxu0 0
  %251 = vmatpush1.bf16.msra.mxu0 0
  %252 = vmatprep.subr.bf16.mxu0 0
  %253 = vmatpush1.bf16.msra.mxu0 0
  %254 = vmatprep.subr.bf16.mxu0 0
  %255 = vmatpush1.bf16.msra.mxu0 0
  %256 = vmatprep.subr.bf16.mxu0 0
  %257 = vmatpush1.bf16.msra.mxu0 0
  %258 = vmatprep.subr.bf16.mxu0 0
  %259 = vmatpush1.bf16.msra.mxu0 0
  %260 = vmatprep.subr.bf16.mxu0 0
  %261 = vmatpush1.bf16.msra.mxu0 0
  %262 = vmatprep.subr.bf16.mxu0 0
  %263 = vmatpush1.bf16.msra.mxu0 0
  %264 = vmatprep.subr.bf16.mxu0 0
  %265 = vmatpush1.bf16.msra.mxu0 0
  %266 = vmatprep.subr.bf16.mxu0 0
  %267 = vmatpush1.bf16.msra.mxu0 0
  %268 = vmatprep.subr.bf16.mxu0 0
  %269 = vmatpush1.bf16.msra.mxu0 0
  %270 = vmatprep.subr.bf16.mxu0 0
  %271 = vmatpush1.bf16.msra.mxu0 0
  %272 = vmatprep.mubr.bf16.mxu0 0
  %273 = vmatmul.mubr.bf16.gmra.mrb[0].mxu0 %v238
  %v274 = vpop.f32.mrb[0].mxu0
  %v275 = vadd.f32 0.0, %v274
  %v276 = vpop.f32.mrb[0].mxu0
  %v277 = vpop.f32.mrb[0].mxu0
  %v278 = vadd.f32 0.0, %v277
  %v279 = vpop.f32.mrb[0].mxu0
  %280 = vdwg.mxu0
  %v281 = vpack.c.bf16 %v278, %v275
  %v282 = vld [vmem:[%s2] sm:$0xff]
  %v283 = vld [vmem:[%s2 + $0x8] sm:$0xff]
  %v284 = vld [vmem:[%s2 + $0x10] sm:$0xff]
  %v285 = vld [vmem:[%s2 + $0x18] sm:$0xff]
  %v286 = vld [vmem:[%s2 + $0x20] sm:$0xff]
  %v287 = vld [vmem:[%s2 + $0x28] sm:$0xff]
  %v288 = vld [vmem:[%s2 + $0x30] sm:$0xff]
  %v289 = vld [vmem:[%s2 + $0x38] sm:$0xff]
  %v290 = vld [vmem:[%s2 + $0x40] sm:$0xff]
  %v291 = vld [vmem:[%s2 + $0x48] sm:$0xff]
  %v292 = vld [vmem:[%s2 + $0x50] sm:$0xff]
  %v293 = vld [vmem:[%s2 + $0x58] sm:$0xff]
  %v294 = vld [vmem:[%s2 + $0x60] sm:$0xff]
  %v295 = vld [vmem:[%s2 + $0x68] sm:$0xff]
  %v296 = vld [vmem:[%s2 + $0x70] sm:$0xff]
  %v297 = vld [vmem:[%s2 + $0x78] sm:$0xff]
  %v298 = vld [vmem:[%s2 + $0x80] sm:$0xff]
  %v299 = vld [vmem:[%s2 + $0x88] sm:$0xff]
  %v300 = vld [vmem:[%s2 + $0x90] sm:$0xff]
  %v301 = vld [vmem:[%s2 + $0x98] sm:$0xff]
  %v302 = vld [vmem:[%s2 + $0xa0] sm:$0xff]
  %v303 = vld [vmem:[%s2 + $0xa8] sm:$0xff]
  %v304 = vld [vmem:[%s2 + $0xb0] sm:$0xff]
  %v305 = vld [vmem:[%s2 + $0xb8] sm:$0xff]
  %v306 = vld [vmem:[%s2 + $0xc0] sm:$0xff]
  %v307 = vld [vmem:[%s2 + $0xc8] sm:$0xff]
  %v308 = vld [vmem:[%s2 + $0xd0] sm:$0xff]
  %v309 = vld [vmem:[%s2 + $0xd8] sm:$0xff]
  %v310 = vld [vmem:[%s2 + $0xe0] sm:$0xff]
  %v311 = vld [vmem:[%s2 + $0xe8] sm:$0xff]
  %v312 = vld [vmem:[%s2 + $0xf0] sm:$0xff]
  %v313 = vld [vmem:[%s2 + $0xf8] sm:$0xff]
  %v314 = vld [vmem:[%s2 + $0x100] sm:$0xff]
  %v315 = vld [vmem:[%s2 + $0x108] sm:$0xff]
  %v316 = vld [vmem:[%s2 + $0x110] sm:$0xff]
  %v317 = vld [vmem:[%s2 + $0x118] sm:$0xff]
  %v318 = vld [vmem:[%s2 + $0x120] sm:$0xff]
  %v319 = vld [vmem:[%s2 + $0x128] sm:$0xff]
  %v320 = vld [vmem:[%s2 + $0x130] sm:$0xff]
  %v321 = vld [vmem:[%s2 + $0x138] sm:$0xff]
  %v322 = vld [vmem:[%s2 + $0x140] sm:$0xff]
  %v323 = vld [vmem:[%s2 + $0x148] sm:$0xff]
  %v324 = vld [vmem:[%s2 + $0x150] sm:$0xff]
  %v325 = vld [vmem:[%s2 + $0x158] sm:$0xff]
  %v326 = vld [vmem:[%s2 + $0x160] sm:$0xff]
  %v327 = vld [vmem:[%s2 + $0x168] sm:$0xff]
  %v328 = vld [vmem:[%s2 + $0x170] sm:$0xff]
  %v329 = vld [vmem:[%s2 + $0x178] sm:$0xff]
  %v330 = vld [vmem:[%s2 + $0x180] sm:$0xff]
  %v331 = vld [vmem:[%s2 + $0x188] sm:$0xff]
  %v332 = vld [vmem:[%s2 + $0x190] sm:$0xff]
  %v333 = vld [vmem:[%s2 + $0x198] sm:$0xff]
  %v334 = vld [vmem:[%s2 + $0x1a0] sm:$0xff]
  %v335 = vld [vmem:[%s2 + $0x1a8] sm:$0xff]
  %v336 = vld [vmem:[%s2 + $0x1b0] sm:$0xff]
  %v337 = vld [vmem:[%s2 + $0x1b8] sm:$0xff]
  %v338 = vld [vmem:[%s2 + $0x1c0] sm:$0xff]
  %v339 = vld [vmem:[%s2 + $0x1c8] sm:$0xff]
  %v340 = vld [vmem:[%s2 + $0x1d0] sm:$0xff]
  %v341 = vld [vmem:[%s2 + $0x1d8] sm:$0xff]
  %v342 = vld [vmem:[%s2 + $0x1e0] sm:$0xff]
  %v343 = vld [vmem:[%s2 + $0x1e8] sm:$0xff]
  %v344 = vld [vmem:[%s2 + $0x1f0] sm:$0xff]
  %v345 = vld [vmem:[%s2 + $0x1f8] sm:$0xff]
  %v346 = vld [vmem:[%s3] sm:$0x3]
  %v348 = vlaneseq
  %v349 = vshrl.u32 %v348, 7
  %v350 = vsub.s32 0, %v349
  %v351 = vrot.slane %v346, %v350
  %v352 = vlaneseq
  %v353 = vshrl.u32 %v352, 7
  %v354 = vsub.s32 1, %v353
  %v355 = vrot.slane %v346, %v354
  %v422 = vunpack.c.l.b16 %v282
  %v423 = vunpack.c.h.b16 %v282
  %v424 = vunpack.c.l.b16 %v283
  %v425 = vunpack.c.h.b16 %v283
  %v426 = vunpack.c.l.b16 %v284
  %v427 = vunpack.c.h.b16 %v284
  %v428 = vunpack.c.l.b16 %v285
  %v429 = vunpack.c.h.b16 %v285
  %v430 = vunpack.c.l.b16 %v286
  %v431 = vunpack.c.h.b16 %v286
  %v432 = vunpack.c.l.b16 %v287
  %v433 = vunpack.c.h.b16 %v287
  %v434 = vunpack.c.l.b16 %v288
  %v435 = vunpack.c.h.b16 %v288
  %v436 = vunpack.c.l.b16 %v289
  %v437 = vunpack.c.h.b16 %v289
  %v438 = vunpack.c.l.b16 %v290
  %v439 = vunpack.c.h.b16 %v290
  %v440 = vunpack.c.l.b16 %v291
  %v441 = vunpack.c.h.b16 %v291
  %v442 = vunpack.c.l.b16 %v292
  %v443 = vunpack.c.h.b16 %v292
  %v444 = vunpack.c.l.b16 %v293
  %v445 = vunpack.c.h.b16 %v293
  %v446 = vunpack.c.l.b16 %v294
  %v447 = vunpack.c.h.b16 %v294
  %v448 = vunpack.c.l.b16 %v295
  %v449 = vunpack.c.h.b16 %v295
  %v450 = vunpack.c.l.b16 %v296
  %v451 = vunpack.c.h.b16 %v296
  %v452 = vunpack.c.l.b16 %v297
  %v453 = vunpack.c.h.b16 %v297
  %v454 = vunpack.c.l.b16 %v298
  %v455 = vunpack.c.h.b16 %v298
  %v456 = vunpack.c.l.b16 %v299
  %v457 = vunpack.c.h.b16 %v299
  %v458 = vunpack.c.l.b16 %v300
  %v459 = vunpack.c.h.b16 %v300
  %v460 = vunpack.c.l.b16 %v301
  %v461 = vunpack.c.h.b16 %v301
  %v462 = vunpack.c.l.b16 %v302
  %v463 = vunpack.c.h.b16 %v302
  %v464 = vunpack.c.l.b16 %v303
  %v465 = vunpack.c.h.b16 %v303
  %v466 = vunpack.c.l.b16 %v304
  %v467 = vunpack.c.h.b16 %v304
  %v468 = vunpack.c.l.b16 %v305
  %v469 = vunpack.c.h.b16 %v305
  %v470 = vunpack.c.l.b16 %v306
  %v471 = vunpack.c.h.b16 %v306
  %v472 = vunpack.c.l.b16 %v307
  %v473 = vunpack.c.h.b16 %v307
  %v474 = vunpack.c.l.b16 %v308
  %v475 = vunpack.c.h.b16 %v308
  %v476 = vunpack.c.l.b16 %v309
  %v477 = vunpack.c.h.b16 %v309
  %v478 = vunpack.c.l.b16 %v310
  %v479 = vunpack.c.h.b16 %v310
  %v480 = vunpack.c.l.b16 %v311
  %v481 = vunpack.c.h.b16 %v311
  %v482 = vunpack.c.l.b16 %v312
  %v483 = vunpack.c.h.b16 %v312
  %v484 = vunpack.c.l.b16 %v313
  %v485 = vunpack.c.h.b16 %v313
  %v486 = vunpack.c.l.b16 %v314
  %v487 = vunpack.c.h.b16 %v314
  %v488 = vunpack.c.l.b16 %v315
  %v489 = vunpack.c.h.b16 %v315
  %v490 = vunpack.c.l.b16 %v316
  %v491 = vunpack.c.h.b16 %v316
  %v492 = vunpack.c.l.b16 %v317
  %v493 = vunpack.c.h.b16 %v317
  %v494 = vunpack.c.l.b16 %v318
  %v495 = vunpack.c.h.b16 %v318
  %v496 = vunpack.c.l.b16 %v319
  %v497 = vunpack.c.h.b16 %v319
  %v498 = vunpack.c.l.b16 %v320
  %v499 = vunpack.c.h.b16 %v320
  %v500 = vunpack.c.l.b16 %v321
  %v501 = vunpack.c.h.b16 %v321
  %v502 = vunpack.c.l.b16 %v322
  %v503 = vunpack.c.h.b16 %v322
  %v504 = vunpack.c.l.b16 %v323
  %v505 = vunpack.c.h.b16 %v323
  %v506 = vunpack.c.l.b16 %v324
  %v507 = vunpack.c.h.b16 %v324
  %v508 = vunpack.c.l.b16 %v325
  %v509 = vunpack.c.h.b16 %v325
  %v510 = vunpack.c.l.b16 %v326
  %v511 = vunpack.c.h.b16 %v326
  %v512 = vunpack.c.l.b16 %v327
  %v513 = vunpack.c.h.b16 %v327
  %v514 = vunpack.c.l.b16 %v328
  %v515 = vunpack.c.h.b16 %v328
  %v516 = vunpack.c.l.b16 %v329
  %v517 = vunpack.c.h.b16 %v329
  %v518 = vunpack.c.l.b16 %v330
  %v519 = vunpack.c.h.b16 %v330
  %v520 = vunpack.c.l.b16 %v331
  %v521 = vunpack.c.h.b16 %v331
  %v522 = vunpack.c.l.b16 %v332
  %v523 = vunpack.c.h.b16 %v332
  %v524 = vunpack.c.l.b16 %v333
  %v525 = vunpack.c.h.b16 %v333
  %v526 = vunpack.c.l.b16 %v334
  %v527 = vunpack.c.h.b16 %v334
  %v528 = vunpack.c.l.b16 %v335
  %v529 = vunpack.c.h.b16 %v335
  %v530 = vunpack.c.l.b16 %v336
  %v531 = vunpack.c.h.b16 %v336
  %v532 = vunpack.c.l.b16 %v337
  %v533 = vunpack.c.h.b16 %v337
  %v534 = vunpack.c.l.b16 %v338
  %v535 = vunpack.c.h.b16 %v338
  %v536 = vunpack.c.l.b16 %v339
  %v537 = vunpack.c.h.b16 %v339
  %v538 = vunpack.c.l.b16 %v340
  %v539 = vunpack.c.h.b16 %v340
  %v540 = vunpack.c.l.b16 %v341
  %v541 = vunpack.c.h.b16 %v341
  %v542 = vunpack.c.l.b16 %v342
  %v543 = vunpack.c.h.b16 %v342
  %v544 = vunpack.c.l.b16 %v343
  %v545 = vunpack.c.h.b16 %v343
  %v546 = vunpack.c.l.b16 %v344
  %v547 = vunpack.c.h.b16 %v344
  %v548 = vunpack.c.l.b16 %v345
  %v549 = vunpack.c.h.b16 %v345
  %v550 = vpack.c.b16 %v424, %v422
  %v551 = vpack.c.b16 %v425, %v423
  %v552 = vpack.c.b16 %v428, %v426
  %v553 = vpack.c.b16 %v429, %v427
  %v554 = vpack.c.b16 %v432, %v430
  %v555 = vpack.c.b16 %v433, %v431
  %v556 = vpack.c.b16 %v436, %v434
  %v557 = vpack.c.b16 %v437, %v435
  %v558 = vpack.c.b16 %v440, %v438
  %v559 = vpack.c.b16 %v441, %v439
  %v560 = vpack.c.b16 %v444, %v442
  %v561 = vpack.c.b16 %v445, %v443
  %v562 = vpack.c.b16 %v448, %v446
  %v563 = vpack.c.b16 %v449, %v447
  %v564 = vpack.c.b16 %v452, %v450
  %v565 = vpack.c.b16 %v453, %v451
  %v566 = vpack.c.b16 %v456, %v454
  %v567 = vpack.c.b16 %v457, %v455
  %v568 = vpack.c.b16 %v460, %v458
  %v569 = vpack.c.b16 %v461, %v459
  %v570 = vpack.c.b16 %v464, %v462
  %v571 = vpack.c.b16 %v465, %v463
  %v572 = vpack.c.b16 %v468, %v466
  %v573 = vpack.c.b16 %v469, %v467
  %v574 = vpack.c.b16 %v472, %v470
  %v575 = vpack.c.b16 %v473, %v471
  %v576 = vpack.c.b16 %v476, %v474
  %v577 = vpack.c.b16 %v477, %v475
  %v578 = vpack.c.b16 %v480, %v478
  %v579 = vpack.c.b16 %v481, %v479
  %v580 = vpack.c.b16 %v484, %v482
  %v581 = vpack.c.b16 %v485, %v483
  %v582 = vpack.c.b16 %v488, %v486
  %v583 = vpack.c.b16 %v489, %v487
  %v584 = vpack.c.b16 %v492, %v490
  %v585 = vpack.c.b16 %v493, %v491
  %v586 = vpack.c.b16 %v496, %v494
  %v587 = vpack.c.b16 %v497, %v495
  %v588 = vpack.c.b16 %v500, %v498
  %v589 = vpack.c.b16 %v501, %v499
  %v590 = vpack.c.b16 %v504, %v502
  %v591 = vpack.c.b16 %v505, %v503
  %v592 = vpack.c.b16 %v508, %v506
  %v593 = vpack.c.b16 %v509, %v507
  %v594 = vpack.c.b16 %v512, %v510
  %v595 = vpack.c.b16 %v513, %v511
  %v596 = vpack.c.b16 %v516, %v514
  %v597 = vpack.c.b16 %v517, %v515
  %v598 = vpack.c.b16 %v520, %v518
  %v599 = vpack.c.b16 %v521, %v519
  %v600 = vpack.c.b16 %v524, %v522
  %v601 = vpack.c.b16 %v525, %v523
  %v602 = vpack.c.b16 %v528, %v526
  %v603 = vpack.c.b16 %v529, %v527
  %v604 = vpack.c.b16 %v532, %v530
  %v605 = vpack.c.b16 %v533, %v531
  %v606 = vpack.c.b16 %v536, %v534
  %v607 = vpack.c.b16 %v537, %v535
  %v608 = vpack.c.b16 %v540, %v538
  %v609 = vpack.c.b16 %v541, %v539
  %v610 = vpack.c.b16 %v544, %v542
  %v611 = vpack.c.b16 %v545, %v543
  %v612 = vpack.c.b16 %v548, %v546
  %v613 = vpack.c.b16 %v549, %v547
  %678 = vmatprep.subr.bf16.mxu0 %v551
  %679 = vmatpush1.bf16.msra.mxu0 %v550
  %680 = vmatprep.subr.bf16.mxu0 %v553
  %681 = vmatpush1.bf16.msra.mxu0 %v552
  %682 = vmatprep.subr.bf16.mxu0 %v555
  %683 = vmatpush1.bf16.msra.mxu0 %v554
  %684 = vmatprep.subr.bf16.mxu0 %v557
  %685 = vmatpush1.bf16.msra.mxu0 %v556
  %686 = vmatprep.subr.bf16.mxu0 %v559
  %687 = vmatpush1.bf16.msra.mxu0 %v558
  %688 = vmatprep.subr.bf16.mxu0 %v561
  %689 = vmatpush1.bf16.msra.mxu0 %v560
  %690 = vmatprep.subr.bf16.mxu0 %v563
  %691 = vmatpush1.bf16.msra.mxu0 %v562
  %692 = vmatprep.subr.bf16.mxu0 %v565
  %693 = vmatpush1.bf16.msra.mxu0 %v564
  %694 = vmatprep.subr.bf16.mxu0 %v567
  %695 = vmatpush1.bf16.msra.mxu0 %v566
  %696 = vmatprep.subr.bf16.mxu0 %v569
  %697 = vmatpush1.bf16.msra.mxu0 %v568
  %698 = vmatprep.subr.bf16.mxu0 %v571
  %699 = vmatpush1.bf16.msra.mxu0 %v570
  %700 = vmatprep.subr.bf16.mxu0 %v573
  %701 = vmatpush1.bf16.msra.mxu0 %v572
  %702 = vmatprep.subr.bf16.mxu0 %v575
  %703 = vmatpush1.bf16.msra.mxu0 %v574
  %704 = vmatprep.subr.bf16.mxu0 %v577
  %705 = vmatpush1.bf16.msra.mxu0 %v576
  %706 = vmatprep.subr.bf16.mxu0 %v579
  %707 = vmatpush1.bf16.msra.mxu0 %v578
  %708 = vmatprep.subr.bf16.mxu0 %v581
  %709 = vmatpush1.bf16.msra.mxu0 %v580
  %710 = vmatprep.mubr.bf16.mxu0 %v175
  %711 = vmatmul.mubr.bf16.gmra.mrb[0].mxu0 %v122
  %v712 = vpop.f32.mrb[0].mxu0
  %v713 = vadd.f32 %v351, %v712
  %v714 = vpop.f32.mrb[0].mxu0
  %v715 = vadd.f32 %v355, %v714
  %v716 = vpop.f32.mrb[0].mxu0
  %v717 = vadd.f32 %v351, %v716
  %v718 = vpop.f32.mrb[0].mxu0
  %v719 = vadd.f32 %v355, %v718
  %720 = vdwg.mxu0
  %721 = vmatprep.subr.bf16.mxu0 %v583
  %722 = vmatpush1.bf16.msra.mxu0 %v582
  %723 = vmatprep.subr.bf16.mxu0 %v585
  %724 = vmatpush1.bf16.msra.mxu0 %v584
  %725 = vmatprep.subr.bf16.mxu0 %v587
  %726 = vmatpush1.bf16.msra.mxu0 %v586
  %727 = vmatprep.subr.bf16.mxu0 %v589
  %728 = vmatpush1.bf16.msra.mxu0 %v588
  %729 = vmatprep.subr.bf16.mxu0 %v591
  %730 = vmatpush1.bf16.msra.mxu0 %v590
  %731 = vmatprep.subr.bf16.mxu0 %v593
  %732 = vmatpush1.bf16.msra.mxu0 %v592
  %733 = vmatprep.subr.bf16.mxu0 %v595
  %734 = vmatpush1.bf16.msra.mxu0 %v594
  %735 = vmatprep.subr.bf16.mxu0 %v597
  %736 = vmatpush1.bf16.msra.mxu0 %v596
  %737 = vmatprep.subr.bf16.mxu0 %v599
  %738 = vmatpush1.bf16.msra.mxu0 %v598
  %739 = vmatprep.subr.bf16.mxu0 %v601
  %740 = vmatpush1.bf16.msra.mxu0 %v600
  %741 = vmatprep.subr.bf16.mxu0 %v603
  %742 = vmatpush1.bf16.msra.mxu0 %v602
  %743 = vmatprep.subr.bf16.mxu0 %v605
  %744 = vmatpush1.bf16.msra.mxu0 %v604
  %745 = vmatprep.subr.bf16.mxu0 %v607
  %746 = vmatpush1.bf16.msra.mxu0 %v606
  %747 = vmatprep.subr.bf16.mxu0 %v609
  %748 = vmatpush1.bf16.msra.mxu0 %v608
  %749 = vmatprep.subr.bf16.mxu0 %v611
  %750 = vmatpush1.bf16.msra.mxu0 %v610
  %751 = vmatprep.subr.bf16.mxu0 %v613
  %752 = vmatpush1.bf16.msra.mxu0 %v612
  %753 = vmatprep.mubr.bf16.mxu0 %v281
  %754 = vmatmul.mubr.bf16.gmra.mrb[0].mxu0 %v228
  %v755 = vpop.f32.mrb[0].mxu0
  %v756 = vadd.f32 %v713, %v755
  %v757 = vpop.f32.mrb[0].mxu0
  %v758 = vadd.f32 %v715, %v757
  %v759 = vpop.f32.mrb[0].mxu0
  %v760 = vadd.f32 %v717, %v759
  %v761 = vpop.f32.mrb[0].mxu0
  %v762 = vadd.f32 %v719, %v761
  %763 = vdwg.mxu0
  %v764 = vmul.f32 %v756, 0.2
  %v765 = vmul.f32 %v758, 0.2
  %v766 = vmul.f32 %v760, 0.2
  %v767 = vmul.f32 %v762, 0.2
  %v768 = vmax.f32 %v756, %v764
  %v769 = vmax.f32 %v758, %v765
  %v770 = vmax.f32 %v760, %v766
  %v771 = vmax.f32 %v762, %v767
  %v772 = vpack.c.bf16 %v770, %v768
  %v773 = vpack.c.bf16 %v771, %v769
  %v774 = vld [vmem:[%s4] sm:$0xf]
  %vm775 = vcmask 130048
  %v777 = vsel %vm775, %v774, 0
  %779 = vmatprep.subr.bf16.mxu0 %v773
  %780 = vmatpush1.bf16.msra.mxu0 %v772
  %781 = vmatprep.subr.bf16.mxu0 0
  %782 = vmatpush1.bf16.msra.mxu0 0
  %783 = vmatprep.subr.bf16.mxu0 0
  %784 = vmatpush1.bf16.msra.mxu0 0
  %785 = vmatprep.subr.bf16.mxu0 0
  %786 = vmatpush1.bf16.msra.mxu0 0
  %787 = vmatprep.subr.bf16.mxu0 0
  %788 = vmatpush1.bf16.msra.mxu0 0
  %789 = vmatprep.subr.bf16.mxu0 0
  %790 = vmatpush1.bf16.msra.mxu0 0
  %791 = vmatprep.subr.bf16.mxu0 0
  %792 = vmatpush1.bf16.msra.mxu0 0
  %793 = vmatprep.subr.bf16.mxu0 0
  %794 = vmatpush1.bf16.msra.mxu0 0
  %795 = vmatprep.subr.bf16.mxu0 0
  %796 = vmatpush1.bf16.msra.mxu0 0
  %797 = vmatprep.subr.bf16.mxu0 0
  %798 = vmatpush1.bf16.msra.mxu0 0
  %799 = vmatprep.subr.bf16.mxu0 0
  %800 = vmatpush1.bf16.msra.mxu0 0
  %801 = vmatprep.subr.bf16.mxu0 0
  %802 = vmatpush1.bf16.msra.mxu0 0
  %803 = vmatprep.subr.bf16.mxu0 0
  %804 = vmatpush1.bf16.msra.mxu0 0
  %805 = vmatprep.subr.bf16.mxu0 0
  %806 = vmatpush1.bf16.msra.mxu0 0
  %807 = vmatprep.subr.bf16.mxu0 0
  %808 = vmatpush1.bf16.msra.mxu0 0
  %809 = vmatprep.subr.bf16.mxu0 0
  %810 = vmatpush1.bf16.msra.mxu0 0
  %811 = vmatprep.mubr.bf16.mxu0 0
  %812 = vmatmul.mubr.bf16.gmra.mrb[0].mxu0 %v777
  %v813 = vpop.f32.mrb[0].mxu0
  %v814 = vadd.f32 0.0, %v813
  %v815 = vpop.f32.mrb[0].mxu0
  %v816 = vadd.f32 0.0, %v815
  %v817 = vpop.f32.mrb[0].mxu0
  %v818 = vpop.f32.mrb[0].mxu0
  %819 = vdwg.mxu0
  %v820 = vpack.c.bf16 %v814, %v814
  %v821 = vpack.c.bf16 %v816, %v816
  %s822 = scalar_lea.vmem %s4, 4
  %v823 = vld [vmem:[%s822] sm:$0xf]
  %v825 = vsel %vm775, %v823, 0
  %827 = vmatprep.subr.bf16.mxu0 %v773
  %828 = vmatpush1.bf16.msra.mxu0 %v772
  %829 = vmatprep.subr.bf16.mxu0 0
  %830 = vmatpush1.bf16.msra.mxu0 0
  %831 = vmatprep.subr.bf16.mxu0 0
  %832 = vmatpush1.bf16.msra.mxu0 0
  %833 = vmatprep.subr.bf16.mxu0 0
  %834 = vmatpush1.bf16.msra.mxu0 0
  %835 = vmatprep.subr.bf16.mxu0 0
  %836 = vmatpush1.bf16.msra.mxu0 0
  %837 = vmatprep.subr.bf16.mxu0 0
  %838 = vmatpush1.bf16.msra.mxu0 0
  %839 = vmatprep.subr.bf16.mxu0 0
  %840 = vmatpush1.bf16.msra.mxu0 0
  %841 = vmatprep.subr.bf16.mxu0 0
  %842 = vmatpush1.bf16.msra.mxu0 0
  %843 = vmatprep.subr.bf16.mxu0 0
  %844 = vmatpush1.bf16.msra.mxu0 0
  %845 = vmatprep.subr.bf16.mxu0 0
  %846 = vmatpush1.bf16.msra.mxu0 0
  %847 = vmatprep.subr.bf16.mxu0 0
  %848 = vmatpush1.bf16.msra.mxu0 0
  %849 = vmatprep.subr.bf16.mxu0 0
  %850 = vmatpush1.bf16.msra.mxu0 0
  %851 = vmatprep.subr.bf16.mxu0 0
  %852 = vmatpush1.bf16.msra.mxu0 0
  %853 = vmatprep.subr.bf16.mxu0 0
  %854 = vmatpush1.bf16.msra.mxu0 0
  %855 = vmatprep.subr.bf16.mxu0 0
  %856 = vmatpush1.bf16.msra.mxu0 0
  %857 = vmatprep.subr.bf16.mxu0 0
  %858 = vmatpush1.bf16.msra.mxu0 0
  %859 = vmatprep.mubr.bf16.mxu0 0
  %860 = vmatmul.mubr.bf16.gmra.mrb[0].mxu0 %v825
  %v861 = vpop.f32.mrb[0].mxu0
  %v862 = vadd.f32 0.0, %v861
  %v863 = vpop.f32.mrb[0].mxu0
  %v864 = vadd.f32 0.0, %v863
  %v865 = vpop.f32.mrb[0].mxu0
  %v866 = vpop.f32.mrb[0].mxu0
  %867 = vdwg.mxu0
  %v868 = vpack.c.bf16 %v862, %v862
  %v869 = vpack.c.bf16 %v864, %v864
  %s870 = scalar_lea.vmem %s4, 8
  %v871 = vld [vmem:[%s870] sm:$0xf]
  %v873 = vsel %vm775, %v871, 0
  %875 = vmatprep.subr.bf16.mxu0 %v773
  %876 = vmatpush1.bf16.msra.mxu0 %v772
  %877 = vmatprep.subr.bf16.mxu0 0
  %878 = vmatpush1.bf16.msra.mxu0 0
  %879 = vmatprep.subr.bf16.mxu0 0
  %880 = vmatpush1.bf16.msra.mxu0 0
  %881 = vmatprep.subr.bf16.mxu0 0
  %882 = vmatpush1.bf16.msra.mxu0 0
  %883 = vmatprep.subr.bf16.mxu0 0
  %884 = vmatpush1.bf16.msra.mxu0 0
  %885 = vmatprep.subr.bf16.mxu0 0
  %886 = vmatpush1.bf16.msra.mxu0 0
  %887 = vmatprep.subr.bf16.mxu0 0
  %888 = vmatpush1.bf16.msra.mxu0 0
  %889 = vmatprep.subr.bf16.mxu0 0
  %890 = vmatpush1.bf16.msra.mxu0 0
  %891 = vmatprep.subr.bf16.mxu0 0
  %892 = vmatpush1.bf16.msra.mxu0 0
  %893 = vmatprep.subr.bf16.mxu0 0
  %894 = vmatpush1.bf16.msra.mxu0 0
  %895 = vmatprep.subr.bf16.mxu0 0
  %896 = vmatpush1.bf16.msra.mxu0 0
  %897 = vmatprep.subr.bf16.mxu0 0
  %898 = vmatpush1.bf16.msra.mxu0 0
  %899 = vmatprep.subr.bf16.mxu0 0
  %900 = vmatpush1.bf16.msra.mxu0 0
  %901 = vmatprep.subr.bf16.mxu0 0
  %902 = vmatpush1.bf16.msra.mxu0 0
  %903 = vmatprep.subr.bf16.mxu0 0
  %904 = vmatpush1.bf16.msra.mxu0 0
  %905 = vmatprep.subr.bf16.mxu0 0
  %906 = vmatpush1.bf16.msra.mxu0 0
  %907 = vmatprep.mubr.bf16.mxu0 0
  %908 = vmatmul.mubr.bf16.gmra.mrb[0].mxu0 %v873
  %v909 = vpop.f32.mrb[0].mxu0
  %v910 = vadd.f32 0.0, %v909
  %v911 = vpop.f32.mrb[0].mxu0
  %v912 = vadd.f32 0.0, %v911
  %v913 = vpop.f32.mrb[0].mxu0
  %v914 = vpop.f32.mrb[0].mxu0
  %915 = vdwg.mxu0
  %v916 = vpack.c.bf16 %v910, %v910
  %v917 = vpack.c.bf16 %v912, %v912
  %s918 = scalar_lea.vmem %s4, 12
  %v919 = vld [vmem:[%s918] sm:$0xf]
  %v921 = vsel %vm775, %v919, 0
  %923 = vmatprep.subr.bf16.mxu0 %v773
  %924 = vmatpush1.bf16.msra.mxu0 %v772
  %925 = vmatprep.subr.bf16.mxu0 0
  %926 = vmatpush1.bf16.msra.mxu0 0
  %927 = vmatprep.subr.bf16.mxu0 0
  %928 = vmatpush1.bf16.msra.mxu0 0
  %929 = vmatprep.subr.bf16.mxu0 0
  %930 = vmatpush1.bf16.msra.mxu0 0
  %931 = vmatprep.subr.bf16.mxu0 0
  %932 = vmatpush1.bf16.msra.mxu0 0
  %933 = vmatprep.subr.bf16.mxu0 0
  %934 = vmatpush1.bf16.msra.mxu0 0
  %935 = vmatprep.subr.bf16.mxu0 0
  %936 = vmatpush1.bf16.msra.mxu0 0
  %937 = vmatprep.subr.bf16.mxu0 0
  %938 = vmatpush1.bf16.msra.mxu0 0
  %939 = vmatprep.subr.bf16.mxu0 0
  %940 = vmatpush1.bf16.msra.mxu0 0
  %941 = vmatprep.subr.bf16.mxu0 0
  %942 = vmatpush1.bf16.msra.mxu0 0
  %943 = vmatprep.subr.bf16.mxu0 0
  %944 = vmatpush1.bf16.msra.mxu0 0
  %945 = vmatprep.subr.bf16.mxu0 0
  %946 = vmatpush1.bf16.msra.mxu0 0
  %947 = vmatprep.subr.bf16.mxu0 0
  %948 = vmatpush1.bf16.msra.mxu0 0
  %949 = vmatprep.subr.bf16.mxu0 0
  %950 = vmatpush1.bf16.msra.mxu0 0
  %951 = vmatprep.subr.bf16.mxu0 0
  %952 = vmatpush1.bf16.msra.mxu0 0
  %953 = vmatprep.subr.bf16.mxu0 0
  %954 = vmatpush1.bf16.msra.mxu0 0
  %955 = vmatprep.mubr.bf16.mxu0 0
  %956 = vmatmul.mubr.bf16.gmra.mrb[0].mxu0 %v921
  %v957 = vpop.f32.mrb[0].mxu0
  %v958 = vadd.f32 0.0, %v957
  %v959 = vpop.f32.mrb[0].mxu0
  %v960 = vadd.f32 0.0, %v959
  %v961 = vpop.f32.mrb[0].mxu0
  %v962 = vpop.f32.mrb[0].mxu0
  %963 = vdwg.mxu0
  %v964 = vpack.c.bf16 %v958, %v958
  %v965 = vpack.c.bf16 %v960, %v960
  %v966 = vld [vmem:[%s5] sm:$0xff]
  %v967 = vld [vmem:[%s5 + $0x8] sm:$0xff]
  %v968 = vld [vmem:[%s5 + $0x10] sm:$0xff]
  %v969 = vld [vmem:[%s5 + $0x18] sm:$0xff]
  %v970 = vld [vmem:[%s5 + $0x20] sm:$0xff]
  %v971 = vld [vmem:[%s5 + $0x28] sm:$0xff]
  %v972 = vld [vmem:[%s5 + $0x30] sm:$0xff]
  %v973 = vld [vmem:[%s5 + $0x38] sm:$0xff]
  %v974 = vld [vmem:[%s5 + $0x40] sm:$0xff]
  %v975 = vld [vmem:[%s5 + $0x48] sm:$0xff]
  %v976 = vld [vmem:[%s5 + $0x50] sm:$0xff]
  %v977 = vld [vmem:[%s5 + $0x58] sm:$0xff]
  %v978 = vld [vmem:[%s5 + $0x60] sm:$0xff]
  %v979 = vld [vmem:[%s5 + $0x68] sm:$0xff]
  %v980 = vld [vmem:[%s5 + $0x70] sm:$0xff]
  %v981 = vld [vmem:[%s5 + $0x78] sm:$0xff]
  %v982 = vld [vmem:[%s5 + $0x80] sm:$0xff]
  %v983 = vld [vmem:[%s5 + $0x88] sm:$0xff]
  %v984 = vld [vmem:[%s5 + $0x90] sm:$0xff]
  %v985 = vld [vmem:[%s5 + $0x98] sm:$0xff]
  %v986 = vld [vmem:[%s5 + $0xa0] sm:$0xff]
  %v987 = vld [vmem:[%s5 + $0xa8] sm:$0xff]
  %v988 = vld [vmem:[%s5 + $0xb0] sm:$0xff]
  %v989 = vld [vmem:[%s5 + $0xb8] sm:$0xff]
  %v990 = vld [vmem:[%s5 + $0xc0] sm:$0xff]
  %v991 = vld [vmem:[%s5 + $0xc8] sm:$0xff]
  %v992 = vld [vmem:[%s5 + $0xd0] sm:$0xff]
  %v993 = vld [vmem:[%s5 + $0xd8] sm:$0xff]
  %v994 = vld [vmem:[%s5 + $0xe0] sm:$0xff]
  %v995 = vld [vmem:[%s5 + $0xe8] sm:$0xff]
  %v996 = vld [vmem:[%s5 + $0xf0] sm:$0xff]
  %v997 = vld [vmem:[%s5 + $0xf8] sm:$0xff]
  %v998 = vld [vmem:[%s5 + $0x100] sm:$0xff]
  %v999 = vld [vmem:[%s5 + $0x108] sm:$0xff]
  %v1000 = vld [vmem:[%s5 + $0x110] sm:$0xff]
  %v1001 = vld [vmem:[%s5 + $0x118] sm:$0xff]
  %v1002 = vld [vmem:[%s5 + $0x120] sm:$0xff]
  %v1003 = vld [vmem:[%s5 + $0x128] sm:$0xff]
  %v1004 = vld [vmem:[%s5 + $0x130] sm:$0xff]
  %v1005 = vld [vmem:[%s5 + $0x138] sm:$0xff]
  %v1006 = vld [vmem:[%s5 + $0x140] sm:$0xff]
  %v1007 = vld [vmem:[%s5 + $0x148] sm:$0xff]
  %v1008 = vld [vmem:[%s5 + $0x150] sm:$0xff]
  %v1009 = vld [vmem:[%s5 + $0x158] sm:$0xff]
  %v1010 = vld [vmem:[%s5 + $0x160] sm:$0xff]
  %v1011 = vld [vmem:[%s5 + $0x168] sm:$0xff]
  %v1012 = vld [vmem:[%s5 + $0x170] sm:$0xff]
  %v1013 = vld [vmem:[%s5 + $0x178] sm:$0xff]
  %v1014 = vld [vmem:[%s5 + $0x180] sm:$0xff]
  %v1015 = vld [vmem:[%s5 + $0x188] sm:$0xff]
  %v1016 = vld [vmem:[%s5 + $0x190] sm:$0xff]
  %v1017 = vld [vmem:[%s5 + $0x198] sm:$0xff]
  %v1018 = vld [vmem:[%s5 + $0x1a0] sm:$0xff]
  %v1019 = vld [vmem:[%s5 + $0x1a8] sm:$0xff]
  %v1020 = vld [vmem:[%s5 + $0x1b0] sm:$0xff]
  %v1021 = vld [vmem:[%s5 + $0x1b8] sm:$0xff]
  %v1022 = vld [vmem:[%s5 + $0x1c0] sm:$0xff]
  %v1023 = vld [vmem:[%s5 + $0x1c8] sm:$0xff]
  %v1024 = vld [vmem:[%s5 + $0x1d0] sm:$0xff]
  %v1025 = vld [vmem:[%s5 + $0x1d8] sm:$0xff]
  %v1026 = vld [vmem:[%s5 + $0x1e0] sm:$0xff]
  %v1027 = vld [vmem:[%s5 + $0x1e8] sm:$0xff]
  %v1028 = vld [vmem:[%s5 + $0x1f0] sm:$0xff]
  %v1029 = vld [vmem:[%s5 + $0x1f8] sm:$0xff]
  %v1030 = vld [vmem:[%s5 + $0x200] sm:$0xff]
  %v1031 = vld [vmem:[%s5 + $0x208] sm:$0xff]
  %v1032 = vld [vmem:[%s5 + $0x210] sm:$0xff]
  %v1033 = vld [vmem:[%s5 + $0x218] sm:$0xff]
  %v1034 = vld [vmem:[%s5 + $0x220] sm:$0xff]
  %v1035 = vld [vmem:[%s5 + $0x228] sm:$0xff]
  %v1036 = vld [vmem:[%s5 + $0x230] sm:$0xff]
  %v1037 = vld [vmem:[%s5 + $0x238] sm:$0xff]
  %v1038 = vld [vmem:[%s5 + $0x240] sm:$0xff]
  %v1039 = vld [vmem:[%s5 + $0x248] sm:$0xff]
  %v1040 = vld [vmem:[%s5 + $0x250] sm:$0xff]
  %v1041 = vld [vmem:[%s5 + $0x258] sm:$0xff]
  %v1042 = vld [vmem:[%s5 + $0x260] sm:$0xff]
  %v1043 = vld [vmem:[%s5 + $0x268] sm:$0xff]
  %v1044 = vld [vmem:[%s5 + $0x270] sm:$0xff]
  %v1045 = vld [vmem:[%s5 + $0x278] sm:$0xff]
  %v1046 = vld [vmem:[%s5 + $0x280] sm:$0xff]
  %v1047 = vld [vmem:[%s5 + $0x288] sm:$0xff]
  %v1048 = vld [vmem:[%s5 + $0x290] sm:$0xff]
  %v1049 = vld [vmem:[%s5 + $0x298] sm:$0xff]
  %v1050 = vld [vmem:[%s5 + $0x2a0] sm:$0xff]
  %v1051 = vld [vmem:[%s5 + $0x2a8] sm:$0xff]
  %v1052 = vld [vmem:[%s5 + $0x2b0] sm:$0xff]
  %v1053 = vld [vmem:[%s5 + $0x2b8] sm:$0xff]
  %v1054 = vld [vmem:[%s5 + $0x2c0] sm:$0xff]
  %v1055 = vld [vmem:[%s5 + $0x2c8] sm:$0xff]
  %v1056 = vld [vmem:[%s5 + $0x2d0] sm:$0xff]
  %v1057 = vld [vmem:[%s5 + $0x2d8] sm:$0xff]
  %v1058 = vld [vmem:[%s5 + $0x2e0] sm:$0xff]
  %v1059 = vld [vmem:[%s5 + $0x2e8] sm:$0xff]
  %v1060 = vld [vmem:[%s5 + $0x2f0] sm:$0xff]
  %v1061 = vld [vmem:[%s5 + $0x2f8] sm:$0xff]
  %v1062 = vld [vmem:[%s5 + $0x300] sm:$0xff]
  %v1063 = vld [vmem:[%s5 + $0x308] sm:$0xff]
  %v1064 = vld [vmem:[%s5 + $0x310] sm:$0xff]
  %v1065 = vld [vmem:[%s5 + $0x318] sm:$0xff]
  %v1066 = vld [vmem:[%s5 + $0x320] sm:$0xff]
  %v1067 = vld [vmem:[%s5 + $0x328] sm:$0xff]
  %v1068 = vld [vmem:[%s5 + $0x330] sm:$0xff]
  %v1069 = vld [vmem:[%s5 + $0x338] sm:$0xff]
  %v1070 = vld [vmem:[%s5 + $0x340] sm:$0xff]
  %v1071 = vld [vmem:[%s5 + $0x348] sm:$0xff]
  %v1072 = vld [vmem:[%s5 + $0x350] sm:$0xff]
  %v1073 = vld [vmem:[%s5 + $0x358] sm:$0xff]
  %v1074 = vld [vmem:[%s5 + $0x360] sm:$0xff]
  %v1075 = vld [vmem:[%s5 + $0x368] sm:$0xff]
  %v1076 = vld [vmem:[%s5 + $0x370] sm:$0xff]
  %v1077 = vld [vmem:[%s5 + $0x378] sm:$0xff]
  %v1078 = vld [vmem:[%s5 + $0x380] sm:$0xff]
  %v1079 = vld [vmem:[%s5 + $0x388] sm:$0xff]
  %v1080 = vld [vmem:[%s5 + $0x390] sm:$0xff]
  %v1081 = vld [vmem:[%s5 + $0x398] sm:$0xff]
  %v1082 = vld [vmem:[%s5 + $0x3a0] sm:$0xff]
  %v1083 = vld [vmem:[%s5 + $0x3a8] sm:$0xff]
  %v1084 = vld [vmem:[%s5 + $0x3b0] sm:$0xff]
  %v1085 = vld [vmem:[%s5 + $0x3b8] sm:$0xff]
  %v1086 = vld [vmem:[%s5 + $0x3c0] sm:$0xff]
  %v1087 = vld [vmem:[%s5 + $0x3c8] sm:$0xff]
  %v1088 = vld [vmem:[%s5 + $0x3d0] sm:$0xff]
  %v1089 = vld [vmem:[%s5 + $0x3d8] sm:$0xff]
  %v1090 = vld [vmem:[%s5 + $0x3e0] sm:$0xff]
  %v1091 = vld [vmem:[%s5 + $0x3e8] sm:$0xff]
  %v1092 = vld [vmem:[%s5 + $0x3f0] sm:$0xff]
  %v1093 = vld [vmem:[%s5 + $0x3f8] sm:$0xff]
  %v1094 = vld [vmem:[%s6] sm:$0x3]
  %v1096 = vlaneseq
  %v1097 = vshrl.u32 %v1096, 7
  %v1098 = vsub.s32 0, %v1097
  %v1099 = vrot.slane %v1094, %v1098
  %v1100 = vlaneseq
  %v1101 = vshrl.u32 %v1100, 7
  %v1102 = vsub.s32 1, %v1101
  %v1103 = vrot.slane %v1094, %v1102
  %v1234 = vunpack.c.l.b16 %v966
  %v1235 = vunpack.c.h.b16 %v966
  %v1236 = vunpack.c.l.b16 %v967
  %v1237 = vunpack.c.h.b16 %v967
  %v1238 = vunpack.c.l.b16 %v968
  %v1239 = vunpack.c.h.b16 %v968
  %v1240 = vunpack.c.l.b16 %v969
  %v1241 = vunpack.c.h.b16 %v969
  %v1242 = vunpack.c.l.b16 %v970
  %v1243 = vunpack.c.h.b16 %v970
  %v1244 = vunpack.c.l.b16 %v971
  %v1245 = vunpack.c.h.b16 %v971
  %v1246 = vunpack.c.l.b16 %v972
  %v1247 = vunpack.c.h.b16 %v972
  %v1248 = vunpack.c.l.b16 %v973
  %v1249 = vunpack.c.h.b16 %v973
  %v1250 = vunpack.c.l.b16 %v974
  %v1251 = vunpack.c.h.b16 %v974
  %v1252 = vunpack.c.l.b16 %v975
  %v1253 = vunpack.c.h.b16 %v975
  %v1254 = vunpack.c.l.b16 %v976
  %v1255 = vunpack.c.h.b16 %v976
  %v1256 = vunpack.c.l.b16 %v977
  %v1257 = vunpack.c.h.b16 %v977
  %v1258 = vunpack.c.l.b16 %v978
  %v1259 = vunpack.c.h.b16 %v978
  %v1260 = vunpack.c.l.b16 %v979
  %v1261 = vunpack.c.h.b16 %v979
  %v1262 = vunpack.c.l.b16 %v980
  %v1263 = vunpack.c.h.b16 %v980
  %v1264 = vunpack.c.l.b16 %v981
  %v1265 = vunpack.c.h.b16 %v981
  %v1266 = vunpack.c.l.b16 %v982
  %v1267 = vunpack.c.h.b16 %v982
  %v1268 = vunpack.c.l.b16 %v983
  %v1269 = vunpack.c.h.b16 %v983
  %v1270 = vunpack.c.l.b16 %v984
  %v1271 = vunpack.c.h.b16 %v984
  %v1272 = vunpack.c.l.b16 %v985
  %v1273 = vunpack.c.h.b16 %v985
  %v1274 = vunpack.c.l.b16 %v986
  %v1275 = vunpack.c.h.b16 %v986
  %v1276 = vunpack.c.l.b16 %v987
  %v1277 = vunpack.c.h.b16 %v987
  %v1278 = vunpack.c.l.b16 %v988
  %v1279 = vunpack.c.h.b16 %v988
  %v1280 = vunpack.c.l.b16 %v989
  %v1281 = vunpack.c.h.b16 %v989
  %v1282 = vunpack.c.l.b16 %v990
  %v1283 = vunpack.c.h.b16 %v990
  %v1284 = vunpack.c.l.b16 %v991
  %v1285 = vunpack.c.h.b16 %v991
  %v1286 = vunpack.c.l.b16 %v992
  %v1287 = vunpack.c.h.b16 %v992
  %v1288 = vunpack.c.l.b16 %v993
  %v1289 = vunpack.c.h.b16 %v993
  %v1290 = vunpack.c.l.b16 %v994
  %v1291 = vunpack.c.h.b16 %v994
  %v1292 = vunpack.c.l.b16 %v995
  %v1293 = vunpack.c.h.b16 %v995
  %v1294 = vunpack.c.l.b16 %v996
  %v1295 = vunpack.c.h.b16 %v996
  %v1296 = vunpack.c.l.b16 %v997
  %v1297 = vunpack.c.h.b16 %v997
  %v1298 = vunpack.c.l.b16 %v998
  %v1299 = vunpack.c.h.b16 %v998
  %v1300 = vunpack.c.l.b16 %v999
  %v1301 = vunpack.c.h.b16 %v999
  %v1302 = vunpack.c.l.b16 %v1000
  %v1303 = vunpack.c.h.b16 %v1000
  %v1304 = vunpack.c.l.b16 %v1001
  %v1305 = vunpack.c.h.b16 %v1001
  %v1306 = vunpack.c.l.b16 %v1002
  %v1307 = vunpack.c.h.b16 %v1002
  %v1308 = vunpack.c.l.b16 %v1003
  %v1309 = vunpack.c.h.b16 %v1003
  %v1310 = vunpack.c.l.b16 %v1004
  %v1311 = vunpack.c.h.b16 %v1004
  %v1312 = vunpack.c.l.b16 %v1005
  %v1313 = vunpack.c.h.b16 %v1005
  %v1314 = vunpack.c.l.b16 %v1006
  %v1315 = vunpack.c.h.b16 %v1006
  %v1316 = vunpack.c.l.b16 %v1007
  %v1317 = vunpack.c.h.b16 %v1007
  %v1318 = vunpack.c.l.b16 %v1008
  %v1319 = vunpack.c.h.b16 %v1008
  %v1320 = vunpack.c.l.b16 %v1009
  %v1321 = vunpack.c.h.b16 %v1009
  %v1322 = vunpack.c.l.b16 %v1010
  %v1323 = vunpack.c.h.b16 %v1010
  %v1324 = vunpack.c.l.b16 %v1011
  %v1325 = vunpack.c.h.b16 %v1011
  %v1326 = vunpack.c.l.b16 %v1012
  %v1327 = vunpack.c.h.b16 %v1012
  %v1328 = vunpack.c.l.b16 %v1013
  %v1329 = vunpack.c.h.b16 %v1013
  %v1330 = vunpack.c.l.b16 %v1014
  %v1331 = vunpack.c.h.b16 %v1014
  %v1332 = vunpack.c.l.b16 %v1015
  %v1333 = vunpack.c.h.b16 %v1015
  %v1334 = vunpack.c.l.b16 %v1016
  %v1335 = vunpack.c.h.b16 %v1016
  %v1336 = vunpack.c.l.b16 %v1017
  %v1337 = vunpack.c.h.b16 %v1017
  %v1338 = vunpack.c.l.b16 %v1018
  %v1339 = vunpack.c.h.b16 %v1018
  %v1340 = vunpack.c.l.b16 %v1019
  %v1341 = vunpack.c.h.b16 %v1019
  %v1342 = vunpack.c.l.b16 %v1020
  %v1343 = vunpack.c.h.b16 %v1020
  %v1344 = vunpack.c.l.b16 %v1021
  %v1345 = vunpack.c.h.b16 %v1021
  %v1346 = vunpack.c.l.b16 %v1022
  %v1347 = vunpack.c.h.b16 %v1022
  %v1348 = vunpack.c.l.b16 %v1023
  %v1349 = vunpack.c.h.b16 %v1023
  %v1350 = vunpack.c.l.b16 %v1024
  %v1351 = vunpack.c.h.b16 %v1024
  %v1352 = vunpack.c.l.b16 %v1025
  %v1353 = vunpack.c.h.b16 %v1025
  %v1354 = vunpack.c.l.b16 %v1026
  %v1355 = vunpack.c.h.b16 %v1026
  %v1356 = vunpack.c.l.b16 %v1027
  %v1357 = vunpack.c.h.b16 %v1027
  %v1358 = vunpack.c.l.b16 %v1028
  %v1359 = vunpack.c.h.b16 %v1028
  %v1360 = vunpack.c.l.b16 %v1029
  %v1361 = vunpack.c.h.b16 %v1029
  %v1362 = vunpack.c.l.b16 %v1030
  %v1363 = vunpack.c.h.b16 %v1030
  %v1364 = vunpack.c.l.b16 %v1031
  %v1365 = vunpack.c.h.b16 %v1031
  %v1366 = vunpack.c.l.b16 %v1032
  %v1367 = vunpack.c.h.b16 %v1032
  %v1368 = vunpack.c.l.b16 %v1033
  %v1369 = vunpack.c.h.b16 %v1033
  %v1370 = vunpack.c.l.b16 %v1034
  %v1371 = vunpack.c.h.b16 %v1034
  %v1372 = vunpack.c.l.b16 %v1035
  %v1373 = vunpack.c.h.b16 %v1035
  %v1374 = vunpack.c.l.b16 %v1036
  %v1375 = vunpack.c.h.b16 %v1036
  %v1376 = vunpack.c.l.b16 %v1037
  %v1377 = vunpack.c.h.b16 %v1037
  %v1378 = vunpack.c.l.b16 %v1038
  %v1379 = vunpack.c.h.b16 %v1038
  %v1380 = vunpack.c.l.b16 %v1039
  %v1381 = vunpack.c.h.b16 %v1039
  %v1382 = vunpack.c.l.b16 %v1040
  %v1383 = vunpack.c.h.b16 %v1040
  %v1384 = vunpack.c.l.b16 %v1041
  %v1385 = vunpack.c.h.b16 %v1041
  %v1386 = vunpack.c.l.b16 %v1042
  %v1387 = vunpack.c.h.b16 %v1042
  %v1388 = vunpack.c.l.b16 %v1043
  %v1389 = vunpack.c.h.b16 %v1043
  %v1390 = vunpack.c.l.b16 %v1044
  %v1391 = vunpack.c.h.b16 %v1044
  %v1392 = vunpack.c.l.b16 %v1045
  %v1393 = vunpack.c.h.b16 %v1045
  %v1394 = vunpack.c.l.b16 %v1046
  %v1395 = vunpack.c.h.b16 %v1046
  %v1396 = vunpack.c.l.b16 %v1047
  %v1397 = vunpack.c.h.b16 %v1047
  %v1398 = vunpack.c.l.b16 %v1048
  %v1399 = vunpack.c.h.b16 %v1048
  %v1400 = vunpack.c.l.b16 %v1049
  %v1401 = vunpack.c.h.b16 %v1049
  %v1402 = vunpack.c.l.b16 %v1050
  %v1403 = vunpack.c.h.b16 %v1050
  %v1404 = vunpack.c.l.b16 %v1051
  %v1405 = vunpack.c.h.b16 %v1051
  %v1406 = vunpack.c.l.b16 %v1052
  %v1407 = vunpack.c.h.b16 %v1052
  %v1408 = vunpack.c.l.b16 %v1053
  %v1409 = vunpack.c.h.b16 %v1053
  %v1410 = vunpack.c.l.b16 %v1054
  %v1411 = vunpack.c.h.b16 %v1054
  %v1412 = vunpack.c.l.b16 %v1055
  %v1413 = vunpack.c.h.b16 %v1055
  %v1414 = vunpack.c.l.b16 %v1056
  %v1415 = vunpack.c.h.b16 %v1056
  %v1416 = vunpack.c.l.b16 %v1057
  %v1417 = vunpack.c.h.b16 %v1057
  %v1418 = vunpack.c.l.b16 %v1058
  %v1419 = vunpack.c.h.b16 %v1058
  %v1420 = vunpack.c.l.b16 %v1059
  %v1421 = vunpack.c.h.b16 %v1059
  %v1422 = vunpack.c.l.b16 %v1060
  %v1423 = vunpack.c.h.b16 %v1060
  %v1424 = vunpack.c.l.b16 %v1061
  %v1425 = vunpack.c.h.b16 %v1061
  %v1426 = vunpack.c.l.b16 %v1062
  %v1427 = vunpack.c.h.b16 %v1062
  %v1428 = vunpack.c.l.b16 %v1063
  %v1429 = vunpack.c.h.b16 %v1063
  %v1430 = vunpack.c.l.b16 %v1064
  %v1431 = vunpack.c.h.b16 %v1064
  %v1432 = vunpack.c.l.b16 %v1065
  %v1433 = vunpack.c.h.b16 %v1065
  %v1434 = vunpack.c.l.b16 %v1066
  %v1435 = vunpack.c.h.b16 %v1066
  %v1436 = vunpack.c.l.b16 %v1067
  %v1437 = vunpack.c.h.b16 %v1067
  %v1438 = vunpack.c.l.b16 %v1068
  %v1439 = vunpack.c.h.b16 %v1068
  %v1440 = vunpack.c.l.b16 %v1069
  %v1441 = vunpack.c.h.b16 %v1069
  %v1442 = vunpack.c.l.b16 %v1070
  %v1443 = vunpack.c.h.b16 %v1070
  %v1444 = vunpack.c.l.b16 %v1071
  %v1445 = vunpack.c.h.b16 %v1071
  %v1446 = vunpack.c.l.b16 %v1072
  %v1447 = vunpack.c.h.b16 %v1072
  %v1448 = vunpack.c.l.b16 %v1073
  %v1449 = vunpack.c.h.b16 %v1073
  %v1450 = vunpack.c.l.b16 %v1074
  %v1451 = vunpack.c.h.b16 %v1074
  %v1452 = vunpack.c.l.b16 %v1075
  %v1453 = vunpack.c.h.b16 %v1075
  %v1454 = vunpack.c.l.b16 %v1076
  %v1455 = vunpack.c.h.b16 %v1076
  %v1456 = vunpack.c.l.b16 %v1077
  %v1457 = vunpack.c.h.b16 %v1077
  %v1458 = vunpack.c.l.b16 %v1078
  %v1459 = vunpack.c.h.b16 %v1078
  %v1460 = vunpack.c.l.b16 %v1079
  %v1461 = vunpack.c.h.b16 %v1079
  %v1462 = vunpack.c.l.b16 %v1080
  %v1463 = vunpack.c.h.b16 %v1080
  %v1464 = vunpack.c.l.b16 %v1081
  %v1465 = vunpack.c.h.b16 %v1081
  %v1466 = vunpack.c.l.b16 %v1082
  %v1467 = vunpack.c.h.b16 %v1082
  %v1468 = vunpack.c.l.b16 %v1083
  %v1469 = vunpack.c.h.b16 %v1083
  %v1470 = vunpack.c.l.b16 %v1084
  %v1471 = vunpack.c.h.b16 %v1084
  %v1472 = vunpack.c.l.b16 %v1085
  %v1473 = vunpack.c.h.b16 %v1085
  %v1474 = vunpack.c.l.b16 %v1086
  %v1475 = vunpack.c.h.b16 %v1086
  %v1476 = vunpack.c.l.b16 %v1087
  %v1477 = vunpack.c.h.b16 %v1087
  %v1478 = vunpack.c.l.b16 %v1088
  %v1479 = vunpack.c.h.b16 %v1088
  %v1480 = vunpack.c.l.b16 %v1089
  %v1481 = vunpack.c.h.b16 %v1089
  %v1482 = vunpack.c.l.b16 %v1090
  %v1483 = vunpack.c.h.b16 %v1090
  %v1484 = vunpack.c.l.b16 %v1091
  %v1485 = vunpack.c.h.b16 %v1091
  %v1486 = vunpack.c.l.b16 %v1092
  %v1487 = vunpack.c.h.b16 %v1092
  %v1488 = vunpack.c.l.b16 %v1093
  %v1489 = vunpack.c.h.b16 %v1093
  %v1490 = vpack.c.b16 %v1236, %v1234
  %v1491 = vpack.c.b16 %v1237, %v1235
  %v1492 = vpack.c.b16 %v1240, %v1238
  %v1493 = vpack.c.b16 %v1241, %v1239
  %v1494 = vpack.c.b16 %v1244, %v1242
  %v1495 = vpack.c.b16 %v1245, %v1243
  %v1496 = vpack.c.b16 %v1248, %v1246
  %v1497 = vpack.c.b16 %v1249, %v1247
  %v1498 = vpack.c.b16 %v1252, %v1250
  %v1499 = vpack.c.b16 %v1253, %v1251
  %v1500 = vpack.c.b16 %v1256, %v1254
  %v1501 = vpack.c.b16 %v1257, %v1255
  %v1502 = vpack.c.b16 %v1260, %v1258
  %v1503 = vpack.c.b16 %v1261, %v1259
  %v1504 = vpack.c.b16 %v1264, %v1262
  %v1505 = vpack.c.b16 %v1265, %v1263
  %v1506 = vpack.c.b16 %v1268, %v1266
  %v1507 = vpack.c.b16 %v1269, %v1267
  %v1508 = vpack.c.b16 %v1272, %v1270
  %v1509 = vpack.c.b16 %v1273, %v1271
  %v1510 = vpack.c.b16 %v1276, %v1274
  %v1511 = vpack.c.b16 %v1277, %v1275
  %v1512 = vpack.c.b16 %v1280, %v1278
  %v1513 = vpack.c.b16 %v1281, %v1279
  %v1514 = vpack.c.b16 %v1284, %v1282
  %v1515 = vpack.c.b16 %v1285, %v1283
  %v1516 = vpack.c.b16 %v1288, %v1286
  %v1517 = vpack.c.b16 %v1289, %v1287
  %v1518 = vpack.c.b16 %v1292, %v1290
  %v1519 = vpack.c.b16 %v1293, %v1291
  %v1520 = vpack.c.b16 %v1296, %v1294
  %v1521 = vpack.c.b16 %v1297, %v1295
  %v1522 = vpack.c.b16 %v1300, %v1298
  %v1523 = vpack.c.b16 %v1301, %v1299
  %v1524 = vpack.c.b16 %v1304, %v1302
  %v1525 = vpack.c.b16 %v1305, %v1303
  %v1526 = vpack.c.b16 %v1308, %v1306
  %v1527 = vpack.c.b16 %v1309, %v1307
  %v1528 = vpack.c.b16 %v1312, %v1310
  %v1529 = vpack.c.b16 %v1313, %v1311
  %v1530 = vpack.c.b16 %v1316, %v1314
  %v1531 = vpack.c.b16 %v1317, %v1315
  %v1532 = vpack.c.b16 %v1320, %v1318
  %v1533 = vpack.c.b16 %v1321, %v1319
  %v1534 = vpack.c.b16 %v1324, %v1322
  %v1535 = vpack.c.b16 %v1325, %v1323
  %v1536 = vpack.c.b16 %v1328, %v1326
  %v1537 = vpack.c.b16 %v1329, %v1327
  %v1538 = vpack.c.b16 %v1332, %v1330
  %v1539 = vpack.c.b16 %v1333, %v1331
  %v1540 = vpack.c.b16 %v1336, %v1334
  %v1541 = vpack.c.b16 %v1337, %v1335
  %v1542 = vpack.c.b16 %v1340, %v1338
  %v1543 = vpack.c.b16 %v1341, %v1339
  %v1544 = vpack.c.b16 %v1344, %v1342
  %v1545 = vpack.c.b16 %v1345, %v1343
  %v1546 = vpack.c.b16 %v1348, %v1346
  %v1547 = vpack.c.b16 %v1349, %v1347
  %v1548 = vpack.c.b16 %v1352, %v1350
  %v1549 = vpack.c.b16 %v1353, %v1351
  %v1550 = vpack.c.b16 %v1356, %v1354
  %v1551 = vpack.c.b16 %v1357, %v1355
  %v1552 = vpack.c.b16 %v1360, %v1358
  %v1553 = vpack.c.b16 %v1361, %v1359
  %v1554 = vpack.c.b16 %v1364, %v1362
  %v1555 = vpack.c.b16 %v1365, %v1363
  %v1556 = vpack.c.b16 %v1368, %v1366
  %v1557 = vpack.c.b16 %v1369, %v1367
  %v1558 = vpack.c.b16 %v1372, %v1370
  %v1559 = vpack.c.b16 %v1373, %v1371
  %v1560 = vpack.c.b16 %v1376, %v1374
  %v1561 = vpack.c.b16 %v1377, %v1375
  %v1562 = vpack.c.b16 %v1380, %v1378
  %v1563 = vpack.c.b16 %v1381, %v1379
  %v1564 = vpack.c.b16 %v1384, %v1382
  %v1565 = vpack.c.b16 %v1385, %v1383
  %v1566 = vpack.c.b16 %v1388, %v1386
  %v1567 = vpack.c.b16 %v1389, %v1387
  %v1568 = vpack.c.b16 %v1392, %v1390
  %v1569 = vpack.c.b16 %v1393, %v1391
  %v1570 = vpack.c.b16 %v1396, %v1394
  %v1571 = vpack.c.b16 %v1397, %v1395
  %v1572 = vpack.c.b16 %v1400, %v1398
  %v1573 = vpack.c.b16 %v1401, %v1399
  %v1574 = vpack.c.b16 %v1404, %v1402
  %v1575 = vpack.c.b16 %v1405, %v1403
  %v1576 = vpack.c.b16 %v1408, %v1406
  %v1577 = vpack.c.b16 %v1409, %v1407
  %v1578 = vpack.c.b16 %v1412, %v1410
  %v1579 = vpack.c.b16 %v1413, %v1411
  %v1580 = vpack.c.b16 %v1416, %v1414
  %v1581 = vpack.c.b16 %v1417, %v1415
  %v1582 = vpack.c.b16 %v1420, %v1418
  %v1583 = vpack.c.b16 %v1421, %v1419
  %v1584 = vpack.c.b16 %v1424, %v1422
  %v1585 = vpack.c.b16 %v1425, %v1423
  %v1586 = vpack.c.b16 %v1428, %v1426
  %v1587 = vpack.c.b16 %v1429, %v1427
  %v1588 = vpack.c.b16 %v1432, %v1430
  %v1589 = vpack.c.b16 %v1433, %v1431
  %v1590 = vpack.c.b16 %v1436, %v1434
  %v1591 = vpack.c.b16 %v1437, %v1435
  %v1592 = vpack.c.b16 %v1440, %v1438
  %v1593 = vpack.c.b16 %v1441, %v1439
  %v1594 = vpack.c.b16 %v1444, %v1442
  %v1595 = vpack.c.b16 %v1445, %v1443
  %v1596 = vpack.c.b16 %v1448, %v1446
  %v1597 = vpack.c.b16 %v1449, %v1447
  %v1598 = vpack.c.b16 %v1452, %v1450
  %v1599 = vpack.c.b16 %v1453, %v1451
  %v1600 = vpack.c.b16 %v1456, %v1454
  %v1601 = vpack.c.b16 %v1457, %v1455
  %v1602 = vpack.c.b16 %v1460, %v1458
  %v1603 = vpack.c.b16 %v1461, %v1459
  %v1604 = vpack.c.b16 %v1464, %v1462
  %v1605 = vpack.c.b16 %v1465, %v1463
  %v1606 = vpack.c.b16 %v1468, %v1466
  %v1607 = vpack.c.b16 %v1469, %v1467
  %v1608 = vpack.c.b16 %v1472, %v1470
  %v1609 = vpack.c.b16 %v1473, %v1471
  %v1610 = vpack.c.b16 %v1476, %v1474
  %v1611 = vpack.c.b16 %v1477, %v1475
  %v1612 = vpack.c.b16 %v1480, %v1478
  %v1613 = vpack.c.b16 %v1481, %v1479
  %v1614 = vpack.c.b16 %v1484, %v1482
  %v1615 = vpack.c.b16 %v1485, %v1483
  %v1616 = vpack.c.b16 %v1488, %v1486
  %v1617 = vpack.c.b16 %v1489, %v1487
  %1746 = vmatprep.subr.bf16.mxu0 %v1491
  %1747 = vmatpush1.bf16.msra.mxu0 %v1490
  %1748 = vmatprep.subr.bf16.mxu0 %v1493
  %1749 = vmatpush1.bf16.msra.mxu0 %v1492
  %1750 = vmatprep.subr.bf16.mxu0 %v1495
  %1751 = vmatpush1.bf16.msra.mxu0 %v1494
  %1752 = vmatprep.subr.bf16.mxu0 %v1497
  %1753 = vmatpush1.bf16.msra.mxu0 %v1496
  %1754 = vmatprep.subr.bf16.mxu0 %v1499
  %1755 = vmatpush1.bf16.msra.mxu0 %v1498
  %1756 = vmatprep.subr.bf16.mxu0 %v1501
  %1757 = vmatpush1.bf16.msra.mxu0 %v1500
  %1758 = vmatprep.subr.bf16.mxu0 %v1503
  %1759 = vmatpush1.bf16.msra.mxu0 %v1502
  %1760 = vmatprep.subr.bf16.mxu0 %v1505
  %1761 = vmatpush1.bf16.msra.mxu0 %v1504
  %1762 = vmatprep.subr.bf16.mxu0 %v1507
  %1763 = vmatpush1.bf16.msra.mxu0 %v1506
  %1764 = vmatprep.subr.bf16.mxu0 %v1509
  %1765 = vmatpush1.bf16.msra.mxu0 %v1508
  %1766 = vmatprep.subr.bf16.mxu0 %v1511
  %1767 = vmatpush1.bf16.msra.mxu0 %v1510
  %1768 = vmatprep.subr.bf16.mxu0 %v1513
  %1769 = vmatpush1.bf16.msra.mxu0 %v1512
  %1770 = vmatprep.subr.bf16.mxu0 %v1515
  %1771 = vmatpush1.bf16.msra.mxu0 %v1514
  %1772 = vmatprep.subr.bf16.mxu0 %v1517
  %1773 = vmatpush1.bf16.msra.mxu0 %v1516
  %1774 = vmatprep.subr.bf16.mxu0 %v1519
  %1775 = vmatpush1.bf16.msra.mxu0 %v1518
  %1776 = vmatprep.subr.bf16.mxu0 %v1521
  %1777 = vmatpush1.bf16.msra.mxu0 %v1520
  %1778 = vmatprep.mubr.bf16.mxu0 %v821
  %1779 = vmatmul.mubr.bf16.gmra.mrb[0].mxu0 %v820
  %v1780 = vpop.f32.mrb[0].mxu0
  %v1781 = vadd.f32 %v1099, %v1780
  %v1782 = vpop.f32.mrb[0].mxu0
  %v1783 = vadd.f32 %v1103, %v1782
  %v1784 = vpop.f32.mrb[0].mxu0
  %v1785 = vpop.f32.mrb[0].mxu0
  %1786 = vdwg.mxu0
  %1787 = vmatprep.subr.bf16.mxu0 %v1523
  %1788 = vmatpush1.bf16.msra.mxu0 %v1522
  %1789 = vmatprep.subr.bf16.mxu0 %v1525
  %1790 = vmatpush1.bf16.msra.mxu0 %v1524
  %1791 = vmatprep.subr.bf16.mxu0 %v1527
  %1792 = vmatpush1.bf16.msra.mxu0 %v1526
  %1793 = vmatprep.subr.bf16.mxu0 %v1529
  %1794 = vmatpush1.bf16.msra.mxu0 %v1528
  %1795 = vmatprep.subr.bf16.mxu0 %v1531
  %1796 = vmatpush1.bf16.msra.mxu0 %v1530
  %1797 = vmatprep.subr.bf16.mxu0 %v1533
  %1798 = vmatpush1.bf16.msra.mxu0 %v1532
  %1799 = vmatprep.subr.bf16.mxu0 %v1535
  %1800 = vmatpush1.bf16.msra.mxu0 %v1534
  %1801 = vmatprep.subr.bf16.mxu0 %v1537
  %1802 = vmatpush1.bf16.msra.mxu0 %v1536
  %1803 = vmatprep.subr.bf16.mxu0 %v1539
  %1804 = vmatpush1.bf16.msra.mxu0 %v1538
  %1805 = vmatprep.subr.bf16.mxu0 %v1541
  %1806 = vmatpush1.bf16.msra.mxu0 %v1540
  %1807 = vmatprep.subr.bf16.mxu0 %v1543
  %1808 = vmatpush1.bf16.msra.mxu0 %v1542
  %1809 = vmatprep.subr.bf16.mxu0 %v1545
  %1810 = vmatpush1.bf16.msra.mxu0 %v1544
  %1811 = vmatprep.subr.bf16.mxu0 %v1547
  %1812 = vmatpush1.bf16.msra.mxu0 %v1546
  %1813 = vmatprep.subr.bf16.mxu0 %v1549
  %1814 = vmatpush1.bf16.msra.mxu0 %v1548
  %1815 = vmatprep.subr.bf16.mxu0 %v1551
  %1816 = vmatpush1.bf16.msra.mxu0 %v1550
  %1817 = vmatprep.subr.bf16.mxu0 %v1553
  %1818 = vmatpush1.bf16.msra.mxu0 %v1552
  %1819 = vmatprep.mubr.bf16.mxu0 %v869
  %1820 = vmatmul.mubr.bf16.gmra.mrb[0].mxu0 %v868
  %v1821 = vpop.f32.mrb[0].mxu0
  %v1822 = vadd.f32 %v1781, %v1821
  %v1823 = vpop.f32.mrb[0].mxu0
  %v1824 = vadd.f32 %v1783, %v1823
  %v1825 = vpop.f32.mrb[0].mxu0
  %v1826 = vpop.f32.mrb[0].mxu0
  %1827 = vdwg.mxu0
  %1828 = vmatprep.subr.bf16.mxu0 %v1555
  %1829 = vmatpush1.bf16.msra.mxu0 %v1554
  %1830 = vmatprep.subr.bf16.mxu0 %v1557
  %1831 = vmatpush1.bf16.msra.mxu0 %v1556
  %1832 = vmatprep.subr.bf16.mxu0 %v1559
  %1833 = vmatpush1.bf16.msra.mxu0 %v1558
  %1834 = vmatprep.subr.bf16.mxu0 %v1561
  %1835 = vmatpush1.bf16.msra.mxu0 %v1560
  %1836 = vmatprep.subr.bf16.mxu0 %v1563
  %1837 = vmatpush1.bf16.msra.mxu0 %v1562
  %1838 = vmatprep.subr.bf16.mxu0 %v1565
  %1839 = vmatpush1.bf16.msra.mxu0 %v1564
  %1840 = vmatprep.subr.bf16.mxu0 %v1567
  %1841 = vmatpush1.bf16.msra.mxu0 %v1566
  %1842 = vmatprep.subr.bf16.mxu0 %v1569
  %1843 = vmatpush1.bf16.msra.mxu0 %v1568
  %1844 = vmatprep.subr.bf16.mxu0 %v1571
  %1845 = vmatpush1.bf16.msra.mxu0 %v1570
  %1846 = vmatprep.subr.bf16.mxu0 %v1573
  %1847 = vmatpush1.bf16.msra.mxu0 %v1572
  %1848 = vmatprep.subr.bf16.mxu0 %v1575
  %1849 = vmatpush1.bf16.msra.mxu0 %v1574
  %1850 = vmatprep.subr.bf16.mxu0 %v1577
  %1851 = vmatpush1.bf16.msra.mxu0 %v1576
  %1852 = vmatprep.subr.bf16.mxu0 %v1579
  %1853 = vmatpush1.bf16.msra.mxu0 %v1578
  %1854 = vmatprep.subr.bf16.mxu0 %v1581
  %1855 = vmatpush1.bf16.msra.mxu0 %v1580
  %1856 = vmatprep.subr.bf16.mxu0 %v1583
  %1857 = vmatpush1.bf16.msra.mxu0 %v1582
  %1858 = vmatprep.subr.bf16.mxu0 %v1585
  %1859 = vmatpush1.bf16.msra.mxu0 %v1584
  %1860 = vmatprep.mubr.bf16.mxu0 %v917
  %1861 = vmatmul.mubr.bf16.gmra.mrb[0].mxu0 %v916
  %v1862 = vpop.f32.mrb[0].mxu0
  %v1863 = vadd.f32 %v1822, %v1862
  %v1864 = vpop.f32.mrb[0].mxu0
  %v1865 = vadd.f32 %v1824, %v1864
  %v1866 = vpop.f32.mrb[0].mxu0
  %v1867 = vpop.f32.mrb[0].mxu0
  %1868 = vdwg.mxu0
  %1869 = vmatprep.subr.bf16.mxu0 %v1587
  %1870 = vmatpush1.bf16.msra.mxu0 %v1586
  %1871 = vmatprep.subr.bf16.mxu0 %v1589
  %1872 = vmatpush1.bf16.msra.mxu0 %v1588
  %1873 = vmatprep.subr.bf16.mxu0 %v1591
  %1874 = vmatpush1.bf16.msra.mxu0 %v1590
  %1875 = vmatprep.subr.bf16.mxu0 %v1593
  %1876 = vmatpush1.bf16.msra.mxu0 %v1592
  %1877 = vmatprep.subr.bf16.mxu0 %v1595
  %1878 = vmatpush1.bf16.msra.mxu0 %v1594
  %1879 = vmatprep.subr.bf16.mxu0 %v1597
  %1880 = vmatpush1.bf16.msra.mxu0 %v1596
  %1881 = vmatprep.subr.bf16.mxu0 %v1599
  %1882 = vmatpush1.bf16.msra.mxu0 %v1598
  %1883 = vmatprep.subr.bf16.mxu0 %v1601
  %1884 = vmatpush1.bf16.msra.mxu0 %v1600
  %1885 = vmatprep.subr.bf16.mxu0 %v1603
  %1886 = vmatpush1.bf16.msra.mxu0 %v1602
  %1887 = vmatprep.subr.bf16.mxu0 %v1605
  %1888 = vmatpush1.bf16.msra.mxu0 %v1604
  %1889 = vmatprep.subr.bf16.mxu0 %v1607
  %1890 = vmatpush1.bf16.msra.mxu0 %v1606
  %1891 = vmatprep.subr.bf16.mxu0 %v1609
  %1892 = vmatpush1.bf16.msra.mxu0 %v1608
  %1893 = vmatprep.subr.bf16.mxu0 %v1611
  %1894 = vmatpush1.bf16.msra.mxu0 %v1610
  %1895 = vmatprep.subr.bf16.mxu0 %v1613
  %1896 = vmatpush1.bf16.msra.mxu0 %v1612
  %1897 = vmatprep.subr.bf16.mxu0 %v1615
  %1898 = vmatpush1.bf16.msra.mxu0 %v1614
  %1899 = vmatprep.subr.bf16.mxu0 %v1617
  %1900 = vmatpush1.bf16.msra.mxu0 %v1616
  %1901 = vmatprep.mubr.bf16.mxu0 %v965
  %1902 = vmatmul.mubr.bf16.gmra.mrb[0].mxu0 %v964
  %v1903 = vpop.f32.mrb[0].mxu0
  %v1904 = vadd.f32 %v1863, %v1903
  %v1905 = vpop.f32.mrb[0].mxu0
  %v1906 = vadd.f32 %v1865, %v1905
  %v1907 = vpop.f32.mrb[0].mxu0
  %v1908 = vpop.f32.mrb[0].mxu0
  %1909 = vdwg.mxu0
  %v1910 = vmul.f32 %v1904, 0.2
  %v1911 = vmul.f32 %v1906, 0.2
  %v1912 = vmax.f32 %v1904, %v1910
  %v1913 = vmax.f32 %v1906, %v1911
  %v1914 = vpack.c.bf16 %v1912, %v1912
  %v1915 = vpack.c.bf16 %v1913, %v1913
  %v1916 = vld [vmem:[%s7] sm:$0xf]
  %vm1917 = vcmask 64512
  %v1919 = vsel %vm1917, %v1916, 0
  %vm1921 = vcmask 1043456
  %v1923 = vsel %vm1921, %v1914, 0
  %v1926 = vsel %vm1921, %v1915, 0
  %1928 = vmatprep.subr.bf16.mxu0 %v1926
  %1929 = vmatpush1.bf16.msra.mxu0 %v1923
  %1930 = vmatprep.subr.bf16.mxu0 0
  %1931 = vmatpush1.bf16.msra.mxu0 0
  %1932 = vmatprep.subr.bf16.mxu0 0
  %1933 = vmatpush1.bf16.msra.mxu0 0
  %1934 = vmatprep.subr.bf16.mxu0 0
  %1935 = vmatpush1.bf16.msra.mxu0 0
  %1936 = vmatprep.subr.bf16.mxu0 0
  %1937 = vmatpush1.bf16.msra.mxu0 0
  %1938 = vmatprep.subr.bf16.mxu0 0
  %1939 = vmatpush1.bf16.msra.mxu0 0
  %1940 = vmatprep.subr.bf16.mxu0 0
  %1941 = vmatpush1.bf16.msra.mxu0 0
  %1942 = vmatprep.subr.bf16.mxu0 0
  %1943 = vmatpush1.bf16.msra.mxu0 0
  %1944 = vmatprep.subr.bf16.mxu0 0
  %1945 = vmatpush1.bf16.msra.mxu0 0
  %1946 = vmatprep.subr.bf16.mxu0 0
  %1947 = vmatpush1.bf16.msra.mxu0 0
  %1948 = vmatprep.subr.bf16.mxu0 0
  %1949 = vmatpush1.bf16.msra.mxu0 0
  %1950 = vmatprep.subr.bf16.mxu0 0
  %1951 = vmatpush1.bf16.msra.mxu0 0
  %1952 = vmatprep.subr.bf16.mxu0 0
  %1953 = vmatpush1.bf16.msra.mxu0 0
  %1954 = vmatprep.subr.bf16.mxu0 0
  %1955 = vmatpush1.bf16.msra.mxu0 0
  %1956 = vmatprep.subr.bf16.mxu0 0
  %1957 = vmatpush1.bf16.msra.mxu0 0
  %1958 = vmatprep.subr.bf16.mxu0 0
  %1959 = vmatpush1.bf16.msra.mxu0 0
  %1960 = vmatprep.mubr.bf16.mxu0 0
  %1961 = vmatmul.mubr.bf16.gmra.mrb[0].mxu0 %v1919
  %v1962 = vpop.f32.mrb[0].mxu0
  %v1963 = vadd.f32 0.0, %v1962
  %v1964 = vpop.f32.mrb[0].mxu0
  %v1965 = vadd.f32 0.0, %v1964
  %v1966 = vpop.f32.mrb[0].mxu0
  %v1967 = vpop.f32.mrb[0].mxu0
  %1968 = vdwg.mxu0
  %v1969 = vpack.c.bf16 %v1963, %v1963
  %v1970 = vpack.c.bf16 %v1965, %v1965
  %s1971 = scalar_lea.vmem %s7, 4
  %v1972 = vld [vmem:[%s1971] sm:$0xf]
  %v1974 = vsel %vm1917, %v1972, 0
  %1976 = vmatprep.subr.bf16.mxu0 %v1926
  %1977 = vmatpush1.bf16.msra.mxu0 %v1923
  %1978 = vmatprep.subr.bf16.mxu0 0
  %1979 = vmatpush1.bf16.msra.mxu0 0
  %1980 = vmatprep.subr.bf16.mxu0 0
  %1981 = vmatpush1.bf16.msra.mxu0 0
  %1982 = vmatprep.subr.bf16.mxu0 0
  %1983 = vmatpush1.bf16.msra.mxu0 0
  %1984 = vmatprep.subr.bf16.mxu0 0
  %1985 = vmatpush1.bf16.msra.mxu0 0
  %1986 = vmatprep.subr.bf16.mxu0 0
  %1987 = vmatpush1.bf16.msra.mxu0 0
  %1988 = vmatprep.subr.bf16.mxu0 0
  %1989 = vmatpush1.bf16.msra.mxu0 0
  %1990 = vmatprep.subr.bf16.mxu0 0
  %1991 = vmatpush1.bf16.msra.mxu0 0
  %1992 = vmatprep.subr.bf16.mxu0 0
  %1993 = vmatpush1.bf16.msra.mxu0 0
  %1994 = vmatprep.subr.bf16.mxu0 0
  %1995 = vmatpush1.bf16.msra.mxu0 0
  %1996 = vmatprep.subr.bf16.mxu0 0
  %1997 = vmatpush1.bf16.msra.mxu0 0
  %1998 = vmatprep.subr.bf16.mxu0 0
  %1999 = vmatpush1.bf16.msra.mxu0 0
  %2000 = vmatprep.subr.bf16.mxu0 0
  %2001 = vmatpush1.bf16.msra.mxu0 0
  %2002 = vmatprep.subr.bf16.mxu0 0
  %2003 = vmatpush1.bf16.msra.mxu0 0
  %2004 = vmatprep.subr.bf16.mxu0 0
  %2005 = vmatpush1.bf16.msra.mxu0 0
  %2006 = vmatprep.subr.bf16.mxu0 0
  %2007 = vmatpush1.bf16.msra.mxu0 0
  %2008 = vmatprep.mubr.bf16.mxu0 0
  %2009 = vmatmul.mubr.bf16.gmra.mrb[0].mxu0 %v1974
  %v2010 = vpop.f32.mrb[0].mxu0
  %v2011 = vadd.f32 0.0, %v2010
  %v2012 = vpop.f32.mrb[0].mxu0
  %v2013 = vadd.f32 0.0, %v2012
  %v2014 = vpop.f32.mrb[0].mxu0
  %v2015 = vpop.f32.mrb[0].mxu0
  %2016 = vdwg.mxu0
  %v2017 = vpack.c.bf16 %v2011, %v2011
  %v2018 = vpack.c.bf16 %v2013, %v2013
  %s2019 = scalar_lea.vmem %s7, 8
  %v2020 = vld [vmem:[%s2019] sm:$0xf]
  %v2022 = vsel %vm1917, %v2020, 0
  %2024 = vmatprep.subr.bf16.mxu0 %v1926
  %2025 = vmatpush1.bf16.msra.mxu0 %v1923
  %2026 = vmatprep.subr.bf16.mxu0 0
  %2027 = vmatpush1.bf16.msra.mxu0 0
  %2028 = vmatprep.subr.bf16.mxu0 0
  %2029 = vmatpush1.bf16.msra.mxu0 0
  %2030 = vmatprep.subr.bf16.mxu0 0
  %2031 = vmatpush1.bf16.msra.mxu0 0
  %2032 = vmatprep.subr.bf16.mxu0 0
  %2033 = vmatpush1.bf16.msra.mxu0 0
  %2034 = vmatprep.subr.bf16.mxu0 0
  %2035 = vmatpush1.bf16.msra.mxu0 0
  %2036 = vmatprep.subr.bf16.mxu0 0
  %2037 = vmatpush1.bf16.msra.mxu0 0
  %2038 = vmatprep.subr.bf16.mxu0 0
  %2039 = vmatpush1.bf16.msra.mxu0 0
  %2040 = vmatprep.subr.bf16.mxu0 0
  %2041 = vmatpush1.bf16.msra.mxu0 0
  %2042 = vmatprep.subr.bf16.mxu0 0
  %2043 = vmatpush1.bf16.msra.mxu0 0
  %2044 = vmatprep.subr.bf16.mxu0 0
  %2045 = vmatpush1.bf16.msra.mxu0 0
  %2046 = vmatprep.subr.bf16.mxu0 0
  %2047 = vmatpush1.bf16.msra.mxu0 0
  %2048 = vmatprep.subr.bf16.mxu0 0
  %2049 = vmatpush1.bf16.msra.mxu0 0
  %2050 = vmatprep.subr.bf16.mxu0 0
  %2051 = vmatpush1.bf16.msra.mxu0 0
  %2052 = vmatprep.subr.bf16.mxu0 0
  %2053 = vmatpush1.bf16.msra.mxu0 0
  %2054 = vmatprep.subr.bf16.mxu0 0
  %2055 = vmatpush1.bf16.msra.mxu0 0
  %2056 = vmatprep.mubr.bf16.mxu0 0
  %2057 = vmatmul.mubr.bf16.gmra.mrb[0].mxu0 %v2022
  %v2058 = vpop.f32.mrb[0].mxu0
  %v2059 = vadd.f32 0.0, %v2058
  %v2060 = vpop.f32.mrb[0].mxu0
  %v2061 = vadd.f32 0.0, %v2060
  %v2062 = vpop.f32.mrb[0].mxu0
  %v2063 = vpop.f32.mrb[0].mxu0
  %2064 = vdwg.mxu0
  %v2065 = vpack.c.bf16 %v2059, %v2059
  %v2066 = vpack.c.bf16 %v2061, %v2061
  %s2067 = scalar_lea.vmem %s7, 12
  %v2068 = vld [vmem:[%s2067] sm:$0xf]
  %v2070 = vsel %vm1917, %v2068, 0
  %2072 = vmatprep.subr.bf16.mxu0 %v1926
  %2073 = vmatpush1.bf16.msra.mxu0 %v1923
  %2074 = vmatprep.subr.bf16.mxu0 0
  %2075 = vmatpush1.bf16.msra.mxu0 0
  %2076 = vmatprep.subr.bf16.mxu0 0
  %2077 = vmatpush1.bf16.msra.mxu0 0
  %2078 = vmatprep.subr.bf16.mxu0 0
  %2079 = vmatpush1.bf16.msra.mxu0 0
  %2080 = vmatprep.subr.bf16.mxu0 0
  %2081 = vmatpush1.bf16.msra.mxu0 0
  %2082 = vmatprep.subr.bf16.mxu0 0
  %2083 = vmatpush1.bf16.msra.mxu0 0
  %2084 = vmatprep.subr.bf16.mxu0 0
  %2085 = vmatpush1.bf16.msra.mxu0 0
  %2086 = vmatprep.subr.bf16.mxu0 0
  %2087 = vmatpush1.bf16.msra.mxu0 0
  %2088 = vmatprep.subr.bf16.mxu0 0
  %2089 = vmatpush1.bf16.msra.mxu0 0
  %2090 = vmatprep.subr.bf16.mxu0 0
  %2091 = vmatpush1.bf16.msra.mxu0 0
  %2092 = vmatprep.subr.bf16.mxu0 0
  %2093 = vmatpush1.bf16.msra.mxu0 0
  %2094 = vmatprep.subr.bf16.mxu0 0
  %2095 = vmatpush1.bf16.msra.mxu0 0
  %2096 = vmatprep.subr.bf16.mxu0 0
  %2097 = vmatpush1.bf16.msra.mxu0 0
  %2098 = vmatprep.subr.bf16.mxu0 0
  %2099 = vmatpush1.bf16.msra.mxu0 0
  %2100 = vmatprep.subr.bf16.mxu0 0
  %2101 = vmatpush1.bf16.msra.mxu0 0
  %2102 = vmatprep.subr.bf16.mxu0 0
  %2103 = vmatpush1.bf16.msra.mxu0 0
  %2104 = vmatprep.mubr.bf16.mxu0 0
  %2105 = vmatmul.mubr.bf16.gmra.mrb[0].mxu0 %v2070
  %v2106 = vpop.f32.mrb[0].mxu0
  %v2107 = vadd.f32 0.0, %v2106
  %v2108 = vpop.f32.mrb[0].mxu0
  %v2109 = vadd.f32 0.0, %v2108
  %v2110 = vpop.f32.mrb[0].mxu0
  %v2111 = vpop.f32.mrb[0].mxu0
  %2112 = vdwg.mxu0
  %v2113 = vpack.c.bf16 %v2107, %v2107
  %v2114 = vpack.c.bf16 %v2109, %v2109
  %v2115 = vld [vmem:[%s8] sm:$0xff]
  %v2116 = vld [vmem:[%s8 + $0x8] sm:$0xff]
  %v2117 = vld [vmem:[%s8 + $0x10] sm:$0xff]
  %v2118 = vld [vmem:[%s8 + $0x18] sm:$0xff]
  %v2119 = vld [vmem:[%s8 + $0x20] sm:$0xff]
  %v2120 = vld [vmem:[%s8 + $0x28] sm:$0xff]
  %v2121 = vld [vmem:[%s8 + $0x30] sm:$0xff]
  %v2122 = vld [vmem:[%s8 + $0x38] sm:$0xff]
  %v2123 = vld [vmem:[%s8 + $0x40] sm:$0xff]
  %v2124 = vld [vmem:[%s8 + $0x48] sm:$0xff]
  %v2125 = vld [vmem:[%s8 + $0x50] sm:$0xff]
  %v2126 = vld [vmem:[%s8 + $0x58] sm:$0xff]
  %v2127 = vld [vmem:[%s8 + $0x60] sm:$0xff]
  %v2128 = vld [vmem:[%s8 + $0x68] sm:$0xff]
  %v2129 = vld [vmem:[%s8 + $0x70] sm:$0xff]
  %v2130 = vld [vmem:[%s8 + $0x78] sm:$0xff]
  %v2131 = vld [vmem:[%s8 + $0x80] sm:$0xff]
  %v2132 = vld [vmem:[%s8 + $0x88] sm:$0xff]
  %v2133 = vld [vmem:[%s8 + $0x90] sm:$0xff]
  %v2134 = vld [vmem:[%s8 + $0x98] sm:$0xff]
  %v2135 = vld [vmem:[%s8 + $0xa0] sm:$0xff]
  %v2136 = vld [vmem:[%s8 + $0xa8] sm:$0xff]
  %v2137 = vld [vmem:[%s8 + $0xb0] sm:$0xff]
  %v2138 = vld [vmem:[%s8 + $0xb8] sm:$0xff]
  %v2139 = vld [vmem:[%s8 + $0xc0] sm:$0xff]
  %v2140 = vld [vmem:[%s8 + $0xc8] sm:$0xff]
  %v2141 = vld [vmem:[%s8 + $0xd0] sm:$0xff]
  %v2142 = vld [vmem:[%s8 + $0xd8] sm:$0xff]
  %v2143 = vld [vmem:[%s8 + $0xe0] sm:$0xff]
  %v2144 = vld [vmem:[%s8 + $0xe8] sm:$0xff]
  %v2145 = vld [vmem:[%s8 + $0xf0] sm:$0xff]
  %v2146 = vld [vmem:[%s8 + $0xf8] sm:$0xff]
  %v2147 = vld [vmem:[%s8 + $0x100] sm:$0xff]
  %v2148 = vld [vmem:[%s8 + $0x108] sm:$0xff]
  %v2149 = vld [vmem:[%s8 + $0x110] sm:$0xff]
  %v2150 = vld [vmem:[%s8 + $0x118] sm:$0xff]
  %v2151 = vld [vmem:[%s8 + $0x120] sm:$0xff]
  %v2152 = vld [vmem:[%s8 + $0x128] sm:$0xff]
  %v2153 = vld [vmem:[%s8 + $0x130] sm:$0xff]
  %v2154 = vld [vmem:[%s8 + $0x138] sm:$0xff]
  %v2155 = vld [vmem:[%s8 + $0x140] sm:$0xff]
  %v2156 = vld [vmem:[%s8 + $0x148] sm:$0xff]
  %v2157 = vld [vmem:[%s8 + $0x150] sm:$0xff]
  %v2158 = vld [vmem:[%s8 + $0x158] sm:$0xff]
  %v2159 = vld [vmem:[%s8 + $0x160] sm:$0xff]
  %v2160 = vld [vmem:[%s8 + $0x168] sm:$0xff]
  %v2161 = vld [vmem:[%s8 + $0x170] sm:$0xff]
  %v2162 = vld [vmem:[%s8 + $0x178] sm:$0xff]
  %v2163 = vld [vmem:[%s8 + $0x180] sm:$0xff]
  %v2164 = vld [vmem:[%s8 + $0x188] sm:$0xff]
  %v2165 = vld [vmem:[%s8 + $0x190] sm:$0xff]
  %v2166 = vld [vmem:[%s8 + $0x198] sm:$0xff]
  %v2167 = vld [vmem:[%s8 + $0x1a0] sm:$0xff]
  %v2168 = vld [vmem:[%s8 + $0x1a8] sm:$0xff]
  %v2169 = vld [vmem:[%s8 + $0x1b0] sm:$0xff]
  %v2170 = vld [vmem:[%s8 + $0x1b8] sm:$0xff]
  %v2171 = vld [vmem:[%s8 + $0x1c0] sm:$0xff]
  %v2172 = vld [vmem:[%s8 + $0x1c8] sm:$0xff]
  %v2173 = vld [vmem:[%s8 + $0x1d0] sm:$0xff]
  %v2174 = vld [vmem:[%s8 + $0x1d8] sm:$0xff]
  %v2175 = vld [vmem:[%s8 + $0x1e0] sm:$0xff]
  %v2176 = vld [vmem:[%s8 + $0x1e8] sm:$0xff]
  %v2177 = vld [vmem:[%s8 + $0x1f0] sm:$0xff]
  %v2178 = vld [vmem:[%s8 + $0x1f8] sm:$0xff]
  %v2179 = vld [vmem:[%s8 + $0x200] sm:$0xff]
  %v2180 = vld [vmem:[%s8 + $0x208] sm:$0xff]
  %v2181 = vld [vmem:[%s8 + $0x210] sm:$0xff]
  %v2182 = vld [vmem:[%s8 + $0x218] sm:$0xff]
  %v2183 = vld [vmem:[%s8 + $0x220] sm:$0xff]
  %v2184 = vld [vmem:[%s8 + $0x228] sm:$0xff]
  %v2185 = vld [vmem:[%s8 + $0x230] sm:$0xff]
  %v2186 = vld [vmem:[%s8 + $0x238] sm:$0xff]
  %v2187 = vld [vmem:[%s8 + $0x240] sm:$0xff]
  %v2188 = vld [vmem:[%s8 + $0x248] sm:$0xff]
  %v2189 = vld [vmem:[%s8 + $0x250] sm:$0xff]
  %v2190 = vld [vmem:[%s8 + $0x258] sm:$0xff]
  %v2191 = vld [vmem:[%s8 + $0x260] sm:$0xff]
  %v2192 = vld [vmem:[%s8 + $0x268] sm:$0xff]
  %v2193 = vld [vmem:[%s8 + $0x270] sm:$0xff]
  %v2194 = vld [vmem:[%s8 + $0x278] sm:$0xff]
  %v2195 = vld [vmem:[%s8 + $0x280] sm:$0xff]
  %v2196 = vld [vmem:[%s8 + $0x288] sm:$0xff]
  %v2197 = vld [vmem:[%s8 + $0x290] sm:$0xff]
  %v2198 = vld [vmem:[%s8 + $0x298] sm:$0xff]
  %v2199 = vld [vmem:[%s8 + $0x2a0] sm:$0xff]
  %v2200 = vld [vmem:[%s8 + $0x2a8] sm:$0xff]
  %v2201 = vld [vmem:[%s8 + $0x2b0] sm:$0xff]
  %v2202 = vld [vmem:[%s8 + $0x2b8] sm:$0xff]
  %v2203 = vld [vmem:[%s8 + $0x2c0] sm:$0xff]
  %v2204 = vld [vmem:[%s8 + $0x2c8] sm:$0xff]
  %v2205 = vld [vmem:[%s8 + $0x2d0] sm:$0xff]
  %v2206 = vld [vmem:[%s8 + $0x2d8] sm:$0xff]
  %v2207 = vld [vmem:[%s8 + $0x2e0] sm:$0xff]
  %v2208 = vld [vmem:[%s8 + $0x2e8] sm:$0xff]
  %v2209 = vld [vmem:[%s8 + $0x2f0] sm:$0xff]
  %v2210 = vld [vmem:[%s8 + $0x2f8] sm:$0xff]
  %v2211 = vld [vmem:[%s8 + $0x300] sm:$0xff]
  %v2212 = vld [vmem:[%s8 + $0x308] sm:$0xff]
  %v2213 = vld [vmem:[%s8 + $0x310] sm:$0xff]
  %v2214 = vld [vmem:[%s8 + $0x318] sm:$0xff]
  %v2215 = vld [vmem:[%s8 + $0x320] sm:$0xff]
  %v2216 = vld [vmem:[%s8 + $0x328] sm:$0xff]
  %v2217 = vld [vmem:[%s8 + $0x330] sm:$0xff]
  %v2218 = vld [vmem:[%s8 + $0x338] sm:$0xff]
  %v2219 = vld [vmem:[%s8 + $0x340] sm:$0xff]
  %v2220 = vld [vmem:[%s8 + $0x348] sm:$0xff]
  %v2221 = vld [vmem:[%s8 + $0x350] sm:$0xff]
  %v2222 = vld [vmem:[%s8 + $0x358] sm:$0xff]
  %v2223 = vld [vmem:[%s8 + $0x360] sm:$0xff]
  %v2224 = vld [vmem:[%s8 + $0x368] sm:$0xff]
  %v2225 = vld [vmem:[%s8 + $0x370] sm:$0xff]
  %v2226 = vld [vmem:[%s8 + $0x378] sm:$0xff]
  %v2227 = vld [vmem:[%s8 + $0x380] sm:$0xff]
  %v2228 = vld [vmem:[%s8 + $0x388] sm:$0xff]
  %v2229 = vld [vmem:[%s8 + $0x390] sm:$0xff]
  %v2230 = vld [vmem:[%s8 + $0x398] sm:$0xff]
  %v2231 = vld [vmem:[%s8 + $0x3a0] sm:$0xff]
  %v2232 = vld [vmem:[%s8 + $0x3a8] sm:$0xff]
  %v2233 = vld [vmem:[%s8 + $0x3b0] sm:$0xff]
  %v2234 = vld [vmem:[%s8 + $0x3b8] sm:$0xff]
  %v2235 = vld [vmem:[%s8 + $0x3c0] sm:$0xff]
  %v2236 = vld [vmem:[%s8 + $0x3c8] sm:$0xff]
  %v2237 = vld [vmem:[%s8 + $0x3d0] sm:$0xff]
  %v2238 = vld [vmem:[%s8 + $0x3d8] sm:$0xff]
  %v2239 = vld [vmem:[%s8 + $0x3e0] sm:$0xff]
  %v2240 = vld [vmem:[%s8 + $0x3e8] sm:$0xff]
  %v2241 = vld [vmem:[%s8 + $0x3f0] sm:$0xff]
  %v2242 = vld [vmem:[%s8 + $0x3f8] sm:$0xff]
  %v2243 = vld [vmem:[%s9] sm:$0x3]
  %v2245 = vlaneseq
  %v2246 = vshrl.u32 %v2245, 7
  %v2247 = vsub.s32 0, %v2246
  %v2248 = vrot.slane %v2243, %v2247
  %v2249 = vlaneseq
  %v2250 = vshrl.u32 %v2249, 7
  %v2251 = vsub.s32 1, %v2250
  %v2252 = vrot.slane %v2243, %v2251
  %v2383 = vunpack.c.l.b16 %v2115
  %v2384 = vunpack.c.h.b16 %v2115
  %v2385 = vunpack.c.l.b16 %v2116
  %v2386 = vunpack.c.h.b16 %v2116
  %v2387 = vunpack.c.l.b16 %v2117
  %v2388 = vunpack.c.h.b16 %v2117
  %v2389 = vunpack.c.l.b16 %v2118
  %v2390 = vunpack.c.h.b16 %v2118
  %v2391 = vunpack.c.l.b16 %v2119
  %v2392 = vunpack.c.h.b16 %v2119
  %v2393 = vunpack.c.l.b16 %v2120
  %v2394 = vunpack.c.h.b16 %v2120
  %v2395 = vunpack.c.l.b16 %v2121
  %v2396 = vunpack.c.h.b16 %v2121
  %v2397 = vunpack.c.l.b16 %v2122
  %v2398 = vunpack.c.h.b16 %v2122
  %v2399 = vunpack.c.l.b16 %v2123
  %v2400 = vunpack.c.h.b16 %v2123
  %v2401 = vunpack.c.l.b16 %v2124
  %v2402 = vunpack.c.h.b16 %v2124
  %v2403 = vunpack.c.l.b16 %v2125
  %v2404 = vunpack.c.h.b16 %v2125
  %v2405 = vunpack.c.l.b16 %v2126
  %v2406 = vunpack.c.h.b16 %v2126
  %v2407 = vunpack.c.l.b16 %v2127
  %v2408 = vunpack.c.h.b16 %v2127
  %v2409 = vunpack.c.l.b16 %v2128
  %v2410 = vunpack.c.h.b16 %v2128
  %v2411 = vunpack.c.l.b16 %v2129
  %v2412 = vunpack.c.h.b16 %v2129
  %v2413 = vunpack.c.l.b16 %v2130
  %v2414 = vunpack.c.h.b16 %v2130
  %v2415 = vunpack.c.l.b16 %v2131
  %v2416 = vunpack.c.h.b16 %v2131
  %v2417 = vunpack.c.l.b16 %v2132
  %v2418 = vunpack.c.h.b16 %v2132
  %v2419 = vunpack.c.l.b16 %v2133
  %v2420 = vunpack.c.h.b16 %v2133
  %v2421 = vunpack.c.l.b16 %v2134
  %v2422 = vunpack.c.h.b16 %v2134
  %v2423 = vunpack.c.l.b16 %v2135
  %v2424 = vunpack.c.h.b16 %v2135
  %v2425 = vunpack.c.l.b16 %v2136
  %v2426 = vunpack.c.h.b16 %v2136
  %v2427 = vunpack.c.l.b16 %v2137
  %v2428 = vunpack.c.h.b16 %v2137
  %v2429 = vunpack.c.l.b16 %v2138
  %v2430 = vunpack.c.h.b16 %v2138
  %v2431 = vunpack.c.l.b16 %v2139
  %v2432 = vunpack.c.h.b16 %v2139
  %v2433 = vunpack.c.l.b16 %v2140
  %v2434 = vunpack.c.h.b16 %v2140
  %v2435 = vunpack.c.l.b16 %v2141
  %v2436 = vunpack.c.h.b16 %v2141
  %v2437 = vunpack.c.l.b16 %v2142
  %v2438 = vunpack.c.h.b16 %v2142
  %v2439 = vunpack.c.l.b16 %v2143
  %v2440 = vunpack.c.h.b16 %v2143
  %v2441 = vunpack.c.l.b16 %v2144
  %v2442 = vunpack.c.h.b16 %v2144
  %v2443 = vunpack.c.l.b16 %v2145
  %v2444 = vunpack.c.h.b16 %v2145
  %v2445 = vunpack.c.l.b16 %v2146
  %v2446 = vunpack.c.h.b16 %v2146
  %v2447 = vunpack.c.l.b16 %v2147
  %v2448 = vunpack.c.h.b16 %v2147
  %v2449 = vunpack.c.l.b16 %v2148
  %v2450 = vunpack.c.h.b16 %v2148
  %v2451 = vunpack.c.l.b16 %v2149
  %v2452 = vunpack.c.h.b16 %v2149
  %v2453 = vunpack.c.l.b16 %v2150
  %v2454 = vunpack.c.h.b16 %v2150
  %v2455 = vunpack.c.l.b16 %v2151
  %v2456 = vunpack.c.h.b16 %v2151
  %v2457 = vunpack.c.l.b16 %v2152
  %v2458 = vunpack.c.h.b16 %v2152
  %v2459 = vunpack.c.l.b16 %v2153
  %v2460 = vunpack.c.h.b16 %v2153
  %v2461 = vunpack.c.l.b16 %v2154
  %v2462 = vunpack.c.h.b16 %v2154
  %v2463 = vunpack.c.l.b16 %v2155
  %v2464 = vunpack.c.h.b16 %v2155
  %v2465 = vunpack.c.l.b16 %v2156
  %v2466 = vunpack.c.h.b16 %v2156
  %v2467 = vunpack.c.l.b16 %v2157
  %v2468 = vunpack.c.h.b16 %v2157
  %v2469 = vunpack.c.l.b16 %v2158
  %v2470 = vunpack.c.h.b16 %v2158
  %v2471 = vunpack.c.l.b16 %v2159
  %v2472 = vunpack.c.h.b16 %v2159
  %v2473 = vunpack.c.l.b16 %v2160
  %v2474 = vunpack.c.h.b16 %v2160
  %v2475 = vunpack.c.l.b16 %v2161
  %v2476 = vunpack.c.h.b16 %v2161
  %v2477 = vunpack.c.l.b16 %v2162
  %v2478 = vunpack.c.h.b16 %v2162
  %v2479 = vunpack.c.l.b16 %v2163
  %v2480 = vunpack.c.h.b16 %v2163
  %v2481 = vunpack.c.l.b16 %v2164
  %v2482 = vunpack.c.h.b16 %v2164
  %v2483 = vunpack.c.l.b16 %v2165
  %v2484 = vunpack.c.h.b16 %v2165
  %v2485 = vunpack.c.l.b16 %v2166
  %v2486 = vunpack.c.h.b16 %v2166
  %v2487 = vunpack.c.l.b16 %v2167
  %v2488 = vunpack.c.h.b16 %v2167
  %v2489 = vunpack.c.l.b16 %v2168
  %v2490 = vunpack.c.h.b16 %v2168
  %v2491 = vunpack.c.l.b16 %v2169
  %v2492 = vunpack.c.h.b16 %v2169
  %v2493 = vunpack.c.l.b16 %v2170
  %v2494 = vunpack.c.h.b16 %v2170
  %v2495 = vunpack.c.l.b16 %v2171
  %v2496 = vunpack.c.h.b16 %v2171
  %v2497 = vunpack.c.l.b16 %v2172
  %v2498 = vunpack.c.h.b16 %v2172
  %v2499 = vunpack.c.l.b16 %v2173
  %v2500 = vunpack.c.h.b16 %v2173
  %v2501 = vunpack.c.l.b16 %v2174
  %v2502 = vunpack.c.h.b16 %v2174
  %v2503 = vunpack.c.l.b16 %v2175
  %v2504 = vunpack.c.h.b16 %v2175
  %v2505 = vunpack.c.l.b16 %v2176
  %v2506 = vunpack.c.h.b16 %v2176
  %v2507 = vunpack.c.l.b16 %v2177
  %v2508 = vunpack.c.h.b16 %v2177
  %v2509 = vunpack.c.l.b16 %v2178
  %v2510 = vunpack.c.h.b16 %v2178
  %v2511 = vunpack.c.l.b16 %v2179
  %v2512 = vunpack.c.h.b16 %v2179
  %v2513 = vunpack.c.l.b16 %v2180
  %v2514 = vunpack.c.h.b16 %v2180
  %v2515 = vunpack.c.l.b16 %v2181
  %v2516 = vunpack.c.h.b16 %v2181
  %v2517 = vunpack.c.l.b16 %v2182
  %v2518 = vunpack.c.h.b16 %v2182
  %v2519 = vunpack.c.l.b16 %v2183
  %v2520 = vunpack.c.h.b16 %v2183
  %v2521 = vunpack.c.l.b16 %v2184
  %v2522 = vunpack.c.h.b16 %v2184
  %v2523 = vunpack.c.l.b16 %v2185
  %v2524 = vunpack.c.h.b16 %v2185
  %v2525 = vunpack.c.l.b16 %v2186
  %v2526 = vunpack.c.h.b16 %v2186
  %v2527 = vunpack.c.l.b16 %v2187
  %v2528 = vunpack.c.h.b16 %v2187
  %v2529 = vunpack.c.l.b16 %v2188
  %v2530 = vunpack.c.h.b16 %v2188
  %v2531 = vunpack.c.l.b16 %v2189
  %v2532 = vunpack.c.h.b16 %v2189
  %v2533 = vunpack.c.l.b16 %v2190
  %v2534 = vunpack.c.h.b16 %v2190
  %v2535 = vunpack.c.l.b16 %v2191
  %v2536 = vunpack.c.h.b16 %v2191
  %v2537 = vunpack.c.l.b16 %v2192
  %v2538 = vunpack.c.h.b16 %v2192
  %v2539 = vunpack.c.l.b16 %v2193
  %v2540 = vunpack.c.h.b16 %v2193
  %v2541 = vunpack.c.l.b16 %v2194
  %v2542 = vunpack.c.h.b16 %v2194
  %v2543 = vunpack.c.l.b16 %v2195
  %v2544 = vunpack.c.h.b16 %v2195
  %v2545 = vunpack.c.l.b16 %v2196
  %v2546 = vunpack.c.h.b16 %v2196
  %v2547 = vunpack.c.l.b16 %v2197
  %v2548 = vunpack.c.h.b16 %v2197
  %v2549 = vunpack.c.l.b16 %v2198
  %v2550 = vunpack.c.h.b16 %v2198
  %v2551 = vunpack.c.l.b16 %v2199
  %v2552 = vunpack.c.h.b16 %v2199
  %v2553 = vunpack.c.l.b16 %v2200
  %v2554 = vunpack.c.h.b16 %v2200
  %v2555 = vunpack.c.l.b16 %v2201
  %v2556 = vunpack.c.h.b16 %v2201
  %v2557 = vunpack.c.l.b16 %v2202
  %v2558 = vunpack.c.h.b16 %v2202
  %v2559 = vunpack.c.l.b16 %v2203
  %v2560 = vunpack.c.h.b16 %v2203
  %v2561 = vunpack.c.l.b16 %v2204
  %v2562 = vunpack.c.h.b16 %v2204
  %v2563 = vunpack.c.l.b16 %v2205
  %v2564 = vunpack.c.h.b16 %v2205
  %v2565 = vunpack.c.l.b16 %v2206
  %v2566 = vunpack.c.h.b16 %v2206
  %v2567 = vunpack.c.l.b16 %v2207
  %v2568 = vunpack.c.h.b16 %v2207
  %v2569 = vunpack.c.l.b16 %v2208
  %v2570 = vunpack.c.h.b16 %v2208
  %v2571 = vunpack.c.l.b16 %v2209
  %v2572 = vunpack.c.h.b16 %v2209
  %v2573 = vunpack.c.l.b16 %v2210
  %v2574 = vunpack.c.h.b16 %v2210
  %v2575 = vunpack.c.l.b16 %v2211
  %v2576 = vunpack.c.h.b16 %v2211
  %v2577 = vunpack.c.l.b16 %v2212
  %v2578 = vunpack.c.h.b16 %v2212
  %v2579 = vunpack.c.l.b16 %v2213
  %v2580 = vunpack.c.h.b16 %v2213
  %v2581 = vunpack.c.l.b16 %v2214
  %v2582 = vunpack.c.h.b16 %v2214
  %v2583 = vunpack.c.l.b16 %v2215
  %v2584 = vunpack.c.h.b16 %v2215
  %v2585 = vunpack.c.l.b16 %v2216
  %v2586 = vunpack.c.h.b16 %v2216
  %v2587 = vunpack.c.l.b16 %v2217
  %v2588 = vunpack.c.h.b16 %v2217
  %v2589 = vunpack.c.l.b16 %v2218
  %v2590 = vunpack.c.h.b16 %v2218
  %v2591 = vunpack.c.l.b16 %v2219
  %v2592 = vunpack.c.h.b16 %v2219
  %v2593 = vunpack.c.l.b16 %v2220
  %v2594 = vunpack.c.h.b16 %v2220
  %v2595 = vunpack.c.l.b16 %v2221
  %v2596 = vunpack.c.h.b16 %v2221
  %v2597 = vunpack.c.l.b16 %v2222
  %v2598 = vunpack.c.h.b16 %v2222
  %v2599 = vunpack.c.l.b16 %v2223
  %v2600 = vunpack.c.h.b16 %v2223
  %v2601 = vunpack.c.l.b16 %v2224
  %v2602 = vunpack.c.h.b16 %v2224
  %v2603 = vunpack.c.l.b16 %v2225
  %v2604 = vunpack.c.h.b16 %v2225
  %v2605 = vunpack.c.l.b16 %v2226
  %v2606 = vunpack.c.h.b16 %v2226
  %v2607 = vunpack.c.l.b16 %v2227
  %v2608 = vunpack.c.h.b16 %v2227
  %v2609 = vunpack.c.l.b16 %v2228
  %v2610 = vunpack.c.h.b16 %v2228
  %v2611 = vunpack.c.l.b16 %v2229
  %v2612 = vunpack.c.h.b16 %v2229
  %v2613 = vunpack.c.l.b16 %v2230
  %v2614 = vunpack.c.h.b16 %v2230
  %v2615 = vunpack.c.l.b16 %v2231
  %v2616 = vunpack.c.h.b16 %v2231
  %v2617 = vunpack.c.l.b16 %v2232
  %v2618 = vunpack.c.h.b16 %v2232
  %v2619 = vunpack.c.l.b16 %v2233
  %v2620 = vunpack.c.h.b16 %v2233
  %v2621 = vunpack.c.l.b16 %v2234
  %v2622 = vunpack.c.h.b16 %v2234
  %v2623 = vunpack.c.l.b16 %v2235
  %v2624 = vunpack.c.h.b16 %v2235
  %v2625 = vunpack.c.l.b16 %v2236
  %v2626 = vunpack.c.h.b16 %v2236
  %v2627 = vunpack.c.l.b16 %v2237
  %v2628 = vunpack.c.h.b16 %v2237
  %v2629 = vunpack.c.l.b16 %v2238
  %v2630 = vunpack.c.h.b16 %v2238
  %v2631 = vunpack.c.l.b16 %v2239
  %v2632 = vunpack.c.h.b16 %v2239
  %v2633 = vunpack.c.l.b16 %v2240
  %v2634 = vunpack.c.h.b16 %v2240
  %v2635 = vunpack.c.l.b16 %v2241
  %v2636 = vunpack.c.h.b16 %v2241
  %v2637 = vunpack.c.l.b16 %v2242
  %v2638 = vunpack.c.h.b16 %v2242
  %v2639 = vpack.c.b16 %v2385, %v2383
  %v2640 = vpack.c.b16 %v2386, %v2384
  %v2641 = vpack.c.b16 %v2389, %v2387
  %v2642 = vpack.c.b16 %v2390, %v2388
  %v2643 = vpack.c.b16 %v2393, %v2391
  %v2644 = vpack.c.b16 %v2394, %v2392
  %v2645 = vpack.c.b16 %v2397, %v2395
  %v2646 = vpack.c.b16 %v2398, %v2396
  %v2647 = vpack.c.b16 %v2401, %v2399
  %v2648 = vpack.c.b16 %v2402, %v2400
  %v2649 = vpack.c.b16 %v2405, %v2403
  %v2650 = vpack.c.b16 %v2406, %v2404
  %v2651 = vpack.c.b16 %v2409, %v2407
  %v2652 = vpack.c.b16 %v2410, %v2408
  %v2653 = vpack.c.b16 %v2413, %v2411
  %v2654 = vpack.c.b16 %v2414, %v2412
  %v2655 = vpack.c.b16 %v2417, %v2415
  %v2656 = vpack.c.b16 %v2418, %v2416
  %v2657 = vpack.c.b16 %v2421, %v2419
  %v2658 = vpack.c.b16 %v2422, %v2420
  %v2659 = vpack.c.b16 %v2425, %v2423
  %v2660 = vpack.c.b16 %v2426, %v2424
  %v2661 = vpack.c.b16 %v2429, %v2427
  %v2662 = vpack.c.b16 %v2430, %v2428
  %v2663 = vpack.c.b16 %v2433, %v2431
  %v2664 = vpack.c.b16 %v2434, %v2432
  %v2665 = vpack.c.b16 %v2437, %v2435
  %v2666 = vpack.c.b16 %v2438, %v2436
  %v2667 = vpack.c.b16 %v2441, %v2439
  %v2668 = vpack.c.b16 %v2442, %v2440
  %v2669 = vpack.c.b16 %v2445, %v2443
  %v2670 = vpack.c.b16 %v2446, %v2444
  %v2671 = vpack.c.b16 %v2449, %v2447
  %v2672 = vpack.c.b16 %v2450, %v2448
  %v2673 = vpack.c.b16 %v2453, %v2451
  %v2674 = vpack.c.b16 %v2454, %v2452
  %v2675 = vpack.c.b16 %v2457, %v2455
  %v2676 = vpack.c.b16 %v2458, %v2456
  %v2677 = vpack.c.b16 %v2461, %v2459
  %v2678 = vpack.c.b16 %v2462, %v2460
  %v2679 = vpack.c.b16 %v2465, %v2463
  %v2680 = vpack.c.b16 %v2466, %v2464
  %v2681 = vpack.c.b16 %v2469, %v2467
  %v2682 = vpack.c.b16 %v2470, %v2468
  %v2683 = vpack.c.b16 %v2473, %v2471
  %v2684 = vpack.c.b16 %v2474, %v2472
  %v2685 = vpack.c.b16 %v2477, %v2475
  %v2686 = vpack.c.b16 %v2478, %v2476
  %v2687 = vpack.c.b16 %v2481, %v2479
  %v2688 = vpack.c.b16 %v2482, %v2480
  %v2689 = vpack.c.b16 %v2485, %v2483
  %v2690 = vpack.c.b16 %v2486, %v2484
  %v2691 = vpack.c.b16 %v2489, %v2487
  %v2692 = vpack.c.b16 %v2490, %v2488
  %v2693 = vpack.c.b16 %v2493, %v2491
  %v2694 = vpack.c.b16 %v2494, %v2492
  %v2695 = vpack.c.b16 %v2497, %v2495
  %v2696 = vpack.c.b16 %v2498, %v2496
  %v2697 = vpack.c.b16 %v2501, %v2499
  %v2698 = vpack.c.b16 %v2502, %v2500
  %v2699 = vpack.c.b16 %v2505, %v2503
  %v2700 = vpack.c.b16 %v2506, %v2504
  %v2701 = vpack.c.b16 %v2509, %v2507
  %v2702 = vpack.c.b16 %v2510, %v2508
  %v2703 = vpack.c.b16 %v2513, %v2511
  %v2704 = vpack.c.b16 %v2514, %v2512
  %v2705 = vpack.c.b16 %v2517, %v2515
  %v2706 = vpack.c.b16 %v2518, %v2516
  %v2707 = vpack.c.b16 %v2521, %v2519
  %v2708 = vpack.c.b16 %v2522, %v2520
  %v2709 = vpack.c.b16 %v2525, %v2523
  %v2710 = vpack.c.b16 %v2526, %v2524
  %v2711 = vpack.c.b16 %v2529, %v2527
  %v2712 = vpack.c.b16 %v2530, %v2528
  %v2713 = vpack.c.b16 %v2533, %v2531
  %v2714 = vpack.c.b16 %v2534, %v2532
  %v2715 = vpack.c.b16 %v2537, %v2535
  %v2716 = vpack.c.b16 %v2538, %v2536
  %v2717 = vpack.c.b16 %v2541, %v2539
  %v2718 = vpack.c.b16 %v2542, %v2540
  %v2719 = vpack.c.b16 %v2545, %v2543
  %v2720 = vpack.c.b16 %v2546, %v2544
  %v2721 = vpack.c.b16 %v2549, %v2547
  %v2722 = vpack.c.b16 %v2550, %v2548
  %v2723 = vpack.c.b16 %v2553, %v2551
  %v2724 = vpack.c.b16 %v2554, %v2552
  %v2725 = vpack.c.b16 %v2557, %v2555
  %v2726 = vpack.c.b16 %v2558, %v2556
  %v2727 = vpack.c.b16 %v2561, %v2559
  %v2728 = vpack.c.b16 %v2562, %v2560
  %v2729 = vpack.c.b16 %v2565, %v2563
  %v2730 = vpack.c.b16 %v2566, %v2564
  %v2731 = vpack.c.b16 %v2569, %v2567
  %v2732 = vpack.c.b16 %v2570, %v2568
  %v2733 = vpack.c.b16 %v2573, %v2571
  %v2734 = vpack.c.b16 %v2574, %v2572
  %v2735 = vpack.c.b16 %v2577, %v2575
  %v2736 = vpack.c.b16 %v2578, %v2576
  %v2737 = vpack.c.b16 %v2581, %v2579
  %v2738 = vpack.c.b16 %v2582, %v2580
  %v2739 = vpack.c.b16 %v2585, %v2583
  %v2740 = vpack.c.b16 %v2586, %v2584
  %v2741 = vpack.c.b16 %v2589, %v2587
  %v2742 = vpack.c.b16 %v2590, %v2588
  %v2743 = vpack.c.b16 %v2593, %v2591
  %v2744 = vpack.c.b16 %v2594, %v2592
  %v2745 = vpack.c.b16 %v2597, %v2595
  %v2746 = vpack.c.b16 %v2598, %v2596
  %v2747 = vpack.c.b16 %v2601, %v2599
  %v2748 = vpack.c.b16 %v2602, %v2600
  %v2749 = vpack.c.b16 %v2605, %v2603
  %v2750 = vpack.c.b16 %v2606, %v2604
  %v2751 = vpack.c.b16 %v2609, %v2607
  %v2752 = vpack.c.b16 %v2610, %v2608
  %v2753 = vpack.c.b16 %v2613, %v2611
  %v2754 = vpack.c.b16 %v2614, %v2612
  %v2755 = vpack.c.b16 %v2617, %v2615
  %v2756 = vpack.c.b16 %v2618, %v2616
  %v2757 = vpack.c.b16 %v2621, %v2619
  %v2758 = vpack.c.b16 %v2622, %v2620
  %v2759 = vpack.c.b16 %v2625, %v2623
  %v2760 = vpack.c.b16 %v2626, %v2624
  %v2761 = vpack.c.b16 %v2629, %v2627
  %v2762 = vpack.c.b16 %v2630, %v2628
  %v2763 = vpack.c.b16 %v2633, %v2631
  %v2764 = vpack.c.b16 %v2634, %v2632
  %v2765 = vpack.c.b16 %v2637, %v2635
  %v2766 = vpack.c.b16 %v2638, %v2636
  %2895 = vmatprep.subr.bf16.mxu0 %v2640
  %2896 = vmatpush1.bf16.msra.mxu0 %v2639
  %2897 = vmatprep.subr.bf16.mxu0 %v2642
  %2898 = vmatpush1.bf16.msra.mxu0 %v2641
  %2899 = vmatprep.subr.bf16.mxu0 %v2644
  %2900 = vmatpush1.bf16.msra.mxu0 %v2643
  %2901 = vmatprep.subr.bf16.mxu0 %v2646
  %2902 = vmatpush1.bf16.msra.mxu0 %v2645
  %2903 = vmatprep.subr.bf16.mxu0 %v2648
  %2904 = vmatpush1.bf16.msra.mxu0 %v2647
  %2905 = vmatprep.subr.bf16.mxu0 %v2650
  %2906 = vmatpush1.bf16.msra.mxu0 %v2649
  %2907 = vmatprep.subr.bf16.mxu0 %v2652
  %2908 = vmatpush1.bf16.msra.mxu0 %v2651
  %2909 = vmatprep.subr.bf16.mxu0 %v2654
  %2910 = vmatpush1.bf16.msra.mxu0 %v2653
  %2911 = vmatprep.subr.bf16.mxu0 %v2656
  %2912 = vmatpush1.bf16.msra.mxu0 %v2655
  %2913 = vmatprep.subr.bf16.mxu0 %v2658
  %2914 = vmatpush1.bf16.msra.mxu0 %v2657
  %2915 = vmatprep.subr.bf16.mxu0 %v2660
  %2916 = vmatpush1.bf16.msra.mxu0 %v2659
  %2917 = vmatprep.subr.bf16.mxu0 %v2662
  %2918 = vmatpush1.bf16.msra.mxu0 %v2661
  %2919 = vmatprep.subr.bf16.mxu0 %v2664
  %2920 = vmatpush1.bf16.msra.mxu0 %v2663
  %2921 = vmatprep.subr.bf16.mxu0 %v2666
  %2922 = vmatpush1.bf16.msra.mxu0 %v2665
  %2923 = vmatprep.subr.bf16.mxu0 %v2668
  %2924 = vmatpush1.bf16.msra.mxu0 %v2667
  %2925 = vmatprep.subr.bf16.mxu0 %v2670
  %2926 = vmatpush1.bf16.msra.mxu0 %v2669
  %2927 = vmatprep.mubr.bf16.mxu0 %v1970
  %2928 = vmatmul.mubr.bf16.gmra.mrb[0].mxu0 %v1969
  %v2929 = vpop.f32.mrb[0].mxu0
  %v2930 = vadd.f32 %v2248, %v2929
  %v2931 = vpop.f32.mrb[0].mxu0
  %v2932 = vadd.f32 %v2252, %v2931
  %v2933 = vpop.f32.mrb[0].mxu0
  %v2934 = vpop.f32.mrb[0].mxu0
  %2935 = vdwg.mxu0
  %2936 = vmatprep.subr.bf16.mxu0 %v2672
  %2937 = vmatpush1.bf16.msra.mxu0 %v2671
  %2938 = vmatprep.subr.bf16.mxu0 %v2674
  %2939 = vmatpush1.bf16.msra.mxu0 %v2673
  %2940 = vmatprep.subr.bf16.mxu0 %v2676
  %2941 = vmatpush1.bf16.msra.mxu0 %v2675
  %2942 = vmatprep.subr.bf16.mxu0 %v2678
  %2943 = vmatpush1.bf16.msra.mxu0 %v2677
  %2944 = vmatprep.subr.bf16.mxu0 %v2680
  %2945 = vmatpush1.bf16.msra.mxu0 %v2679
  %2946 = vmatprep.subr.bf16.mxu0 %v2682
  %2947 = vmatpush1.bf16.msra.mxu0 %v2681
  %2948 = vmatprep.subr.bf16.mxu0 %v2684
  %2949 = vmatpush1.bf16.msra.mxu0 %v2683
  %2950 = vmatprep.subr.bf16.mxu0 %v2686
  %2951 = vmatpush1.bf16.msra.mxu0 %v2685
  %2952 = vmatprep.subr.bf16.mxu0 %v2688
  %2953 = vmatpush1.bf16.msra.mxu0 %v2687
  %2954 = vmatprep.subr.bf16.mxu0 %v2690
  %2955 = vmatpush1.bf16.msra.mxu0 %v2689
  %2956 = vmatprep.subr.bf16.mxu0 %v2692
  %2957 = vmatpush1.bf16.msra.mxu0 %v2691
  %2958 = vmatprep.subr.bf16.mxu0 %v2694
  %2959 = vmatpush1.bf16.msra.mxu0 %v2693
  %2960 = vmatprep.subr.bf16.mxu0 %v2696
  %2961 = vmatpush1.bf16.msra.mxu0 %v2695
  %2962 = vmatprep.subr.bf16.mxu0 %v2698
  %2963 = vmatpush1.bf16.msra.mxu0 %v2697
  %2964 = vmatprep.subr.bf16.mxu0 %v2700
  %2965 = vmatpush1.bf16.msra.mxu0 %v2699
  %2966 = vmatprep.subr.bf16.mxu0 %v2702
  %2967 = vmatpush1.bf16.msra.mxu0 %v2701
  %2968 = vmatprep.mubr.bf16.mxu0 %v2018
  %2969 = vmatmul.mubr.bf16.gmra.mrb[0].mxu0 %v2017
  %v2970 = vpop.f32.mrb[0].mxu0
  %v2971 = vadd.f32 %v2930, %v2970
  %v2972 = vpop.f32.mrb[0].mxu0
  %v2973 = vadd.f32 %v2932, %v2972
  %v2974 = vpop.f32.mrb[0].mxu0
  %v2975 = vpop.f32.mrb[0].mxu0
  %2976 = vdwg.mxu0
  %2977 = vmatprep.subr.bf16.mxu0 %v2704
  %2978 = vmatpush1.bf16.msra.mxu0 %v2703
  %2979 = vmatprep.subr.bf16.mxu0 %v2706
  %2980 = vmatpush1.bf16.msra.mxu0 %v2705
  %2981 = vmatprep.subr.bf16.mxu0 %v2708
  %2982 = vmatpush1.bf16.msra.mxu0 %v2707
  %2983 = vmatprep.subr.bf16.mxu0 %v2710
  %2984 = vmatpush1.bf16.msra.mxu0 %v2709
  %2985 = vmatprep.subr.bf16.mxu0 %v2712
  %2986 = vmatpush1.bf16.msra.mxu0 %v2711
  %2987 = vmatprep.subr.bf16.mxu0 %v2714
  %2988 = vmatpush1.bf16.msra.mxu0 %v2713
  %2989 = vmatprep.subr.bf16.mxu0 %v2716
  %2990 = vmatpush1.bf16.msra.mxu0 %v2715
  %2991 = vmatprep.subr.bf16.mxu0 %v2718
  %2992 = vmatpush1.bf16.msra.mxu0 %v2717
  %2993 = vmatprep.subr.bf16.mxu0 %v2720
  %2994 = vmatpush1.bf16.msra.mxu0 %v2719
  %2995 = vmatprep.subr.bf16.mxu0 %v2722
  %2996 = vmatpush1.bf16.msra.mxu0 %v2721
  %2997 = vmatprep.subr.bf16.mxu0 %v2724
  %2998 = vmatpush1.bf16.msra.mxu0 %v2723
  %2999 = vmatprep.subr.bf16.mxu0 %v2726
  %3000 = vmatpush1.bf16.msra.mxu0 %v2725
  %3001 = vmatprep.subr.bf16.mxu0 %v2728
  %3002 = vmatpush1.bf16.msra.mxu0 %v2727
  %3003 = vmatprep.subr.bf16.mxu0 %v2730
  %3004 = vmatpush1.bf16.msra.mxu0 %v2729
  %3005 = vmatprep.subr.bf16.mxu0 %v2732
  %3006 = vmatpush1.bf16.msra.mxu0 %v2731
  %3007 = vmatprep.subr.bf16.mxu0 %v2734
  %3008 = vmatpush1.bf16.msra.mxu0 %v2733
  %3009 = vmatprep.mubr.bf16.mxu0 %v2066
  %3010 = vmatmul.mubr.bf16.gmra.mrb[0].mxu0 %v2065
  %v3011 = vpop.f32.mrb[0].mxu0
  %v3012 = vadd.f32 %v2971, %v3011
  %v3013 = vpop.f32.mrb[0].mxu0
  %v3014 = vadd.f32 %v2973, %v3013
  %v3015 = vpop.f32.mrb[0].mxu0
  %v3016 = vpop.f32.mrb[0].mxu0
  %3017 = vdwg.mxu0
  %3018 = vmatprep.subr.bf16.mxu0 %v2736
  %3019 = vmatpush1.bf16.msra.mxu0 %v2735
  %3020 = vmatprep.subr.bf16.mxu0 %v2738
  %3021 = vmatpush1.bf16.msra.mxu0 %v2737
  %3022 = vmatprep.subr.bf16.mxu0 %v2740
  %3023 = vmatpush1.bf16.msra.mxu0 %v2739
  %3024 = vmatprep.subr.bf16.mxu0 %v2742
  %3025 = vmatpush1.bf16.msra.mxu0 %v2741
  %3026 = vmatprep.subr.bf16.mxu0 %v2744
  %3027 = vmatpush1.bf16.msra.mxu0 %v2743
  %3028 = vmatprep.subr.bf16.mxu0 %v2746
  %3029 = vmatpush1.bf16.msra.mxu0 %v2745
  %3030 = vmatprep.subr.bf16.mxu0 %v2748
  %3031 = vmatpush1.bf16.msra.mxu0 %v2747
  %3032 = vmatprep.subr.bf16.mxu0 %v2750
  %3033 = vmatpush1.bf16.msra.mxu0 %v2749
  %3034 = vmatprep.subr.bf16.mxu0 %v2752
  %3035 = vmatpush1.bf16.msra.mxu0 %v2751
  %3036 = vmatprep.subr.bf16.mxu0 %v2754
  %3037 = vmatpush1.bf16.msra.mxu0 %v2753
  %3038 = vmatprep.subr.bf16.mxu0 %v2756
  %3039 = vmatpush1.bf16.msra.mxu0 %v2755
  %3040 = vmatprep.subr.bf16.mxu0 %v2758
  %3041 = vmatpush1.bf16.msra.mxu0 %v2757
  %3042 = vmatprep.subr.bf16.mxu0 %v2760
  %3043 = vmatpush1.bf16.msra.mxu0 %v2759
  %3044 = vmatprep.subr.bf16.mxu0 %v2762
  %3045 = vmatpush1.bf16.msra.mxu0 %v2761
  %3046 = vmatprep.subr.bf16.mxu0 %v2764
  %3047 = vmatpush1.bf16.msra.mxu0 %v2763
  %3048 = vmatprep.subr.bf16.mxu0 %v2766
  %3049 = vmatpush1.bf16.msra.mxu0 %v2765
  %3050 = vmatprep.mubr.bf16.mxu0 %v2114
  %3051 = vmatmul.mubr.bf16.gmra.mrb[0].mxu0 %v2113
  %v3052 = vpop.f32.mrb[0].mxu0
  %v3053 = vadd.f32 %v3012, %v3052
  %v3054 = vpop.f32.mrb[0].mxu0
  %v3055 = vadd.f32 %v3014, %v3054
  %v3056 = vpop.f32.mrb[0].mxu0
  %v3057 = vpop.f32.mrb[0].mxu0
  %3058 = vdwg.mxu0
  %v3059 = vmul.f32 %v3053, 0.2
  %v3060 = vmul.f32 %v3055, 0.2
  %v3061 = vmax.f32 %v3053, %v3059
  %v3062 = vmax.f32 %v3055, %v3060
  %v3063 = vpack.c.bf16 %v3061, %v3061
  %v3064 = vpack.c.bf16 %v3062, %v3062
  %v3065 = vld [vmem:[%s10] sm:$0xf]
  %v3067 = vsel %vm1917, %v3065, 0
  %v3070 = vsel %vm1921, %v3063, 0
  %v3073 = vsel %vm1921, %v3064, 0
  %3075 = vmatprep.subr.bf16.mxu0 %v3073
  %3076 = vmatpush1.bf16.msra.mxu0 %v3070
  %3077 = vmatprep.subr.bf16.mxu0 0
  %3078 = vmatpush1.bf16.msra.mxu0 0
  %3079 = vmatprep.subr.bf16.mxu0 0
  %3080 = vmatpush1.bf16.msra.mxu0 0
  %3081 = vmatprep.subr.bf16.mxu0 0
  %3082 = vmatpush1.bf16.msra.mxu0 0
  %3083 = vmatprep.subr.bf16.mxu0 0
  %3084 = vmatpush1.bf16.msra.mxu0 0
  %3085 = vmatprep.subr.bf16.mxu0 0
  %3086 = vmatpush1.bf16.msra.mxu0 0
  %3087 = vmatprep.subr.bf16.mxu0 0
  %3088 = vmatpush1.bf16.msra.mxu0 0
  %3089 = vmatprep.subr.bf16.mxu0 0
  %3090 = vmatpush1.bf16.msra.mxu0 0
  %3091 = vmatprep.subr.bf16.mxu0 0
  %3092 = vmatpush1.bf16.msra.mxu0 0
  %3093 = vmatprep.subr.bf16.mxu0 0
  %3094 = vmatpush1.bf16.msra.mxu0 0
  %3095 = vmatprep.subr.bf16.mxu0 0
  %3096 = vmatpush1.bf16.msra.mxu0 0
  %3097 = vmatprep.subr.bf16.mxu0 0
  %3098 = vmatpush1.bf16.msra.mxu0 0
  %3099 = vmatprep.subr.bf16.mxu0 0
  %3100 = vmatpush1.bf16.msra.mxu0 0
  %3101 = vmatprep.subr.bf16.mxu0 0
  %3102 = vmatpush1.bf16.msra.mxu0 0
  %3103 = vmatprep.subr.bf16.mxu0 0
  %3104 = vmatpush1.bf16.msra.mxu0 0
  %3105 = vmatprep.subr.bf16.mxu0 0
  %3106 = vmatpush1.bf16.msra.mxu0 0
  %3107 = vmatprep.mubr.bf16.mxu0 0
  %3108 = vmatmul.mubr.bf16.gmra.mrb[0].mxu0 %v3067
  %v3109 = vpop.f32.mrb[0].mxu0
  %v3110 = vadd.f32 0.0, %v3109
  %v3111 = vpop.f32.mrb[0].mxu0
  %v3112 = vadd.f32 0.0, %v3111
  %v3113 = vpop.f32.mrb[0].mxu0
  %v3114 = vpop.f32.mrb[0].mxu0
  %3115 = vdwg.mxu0
  %v3116 = vpack.c.bf16 %v3110, %v3110
  %v3117 = vpack.c.bf16 %v3112, %v3112
  %s3118 = scalar_lea.vmem %s10, 4
  %v3119 = vld [vmem:[%s3118] sm:$0xf]
  %v3121 = vsel %vm1917, %v3119, 0
  %3123 = vmatprep.subr.bf16.mxu0 %v3073
  %3124 = vmatpush1.bf16.msra.mxu0 %v3070
  %3125 = vmatprep.subr.bf16.mxu0 0
  %3126 = vmatpush1.bf16.msra.mxu0 0
  %3127 = vmatprep.subr.bf16.mxu0 0
  %3128 = vmatpush1.bf16.msra.mxu0 0
  %3129 = vmatprep.subr.bf16.mxu0 0
  %3130 = vmatpush1.bf16.msra.mxu0 0
  %3131 = vmatprep.subr.bf16.mxu0 0
  %3132 = vmatpush1.bf16.msra.mxu0 0
  %3133 = vmatprep.subr.bf16.mxu0 0
  %3134 = vmatpush1.bf16.msra.mxu0 0
  %3135 = vmatprep.subr.bf16.mxu0 0
  %3136 = vmatpush1.bf16.msra.mxu0 0
  %3137 = vmatprep.subr.bf16.mxu0 0
  %3138 = vmatpush1.bf16.msra.mxu0 0
  %3139 = vmatprep.subr.bf16.mxu0 0
  %3140 = vmatpush1.bf16.msra.mxu0 0
  %3141 = vmatprep.subr.bf16.mxu0 0
  %3142 = vmatpush1.bf16.msra.mxu0 0
  %3143 = vmatprep.subr.bf16.mxu0 0
  %3144 = vmatpush1.bf16.msra.mxu0 0
  %3145 = vmatprep.subr.bf16.mxu0 0
  %3146 = vmatpush1.bf16.msra.mxu0 0
  %3147 = vmatprep.subr.bf16.mxu0 0
  %3148 = vmatpush1.bf16.msra.mxu0 0
  %3149 = vmatprep.subr.bf16.mxu0 0
  %3150 = vmatpush1.bf16.msra.mxu0 0
  %3151 = vmatprep.subr.bf16.mxu0 0
  %3152 = vmatpush1.bf16.msra.mxu0 0
  %3153 = vmatprep.subr.bf16.mxu0 0
  %3154 = vmatpush1.bf16.msra.mxu0 0
  %3155 = vmatprep.mubr.bf16.mxu0 0
  %3156 = vmatmul.mubr.bf16.gmra.mrb[0].mxu0 %v3121
  %v3157 = vpop.f32.mrb[0].mxu0
  %v3158 = vadd.f32 0.0, %v3157
  %v3159 = vpop.f32.mrb[0].mxu0
  %v3160 = vadd.f32 0.0, %v3159
  %v3161 = vpop.f32.mrb[0].mxu0
  %v3162 = vpop.f32.mrb[0].mxu0
  %3163 = vdwg.mxu0
  %v3164 = vpack.c.bf16 %v3158, %v3158
  %v3165 = vpack.c.bf16 %v3160, %v3160
  %s3166 = scalar_lea.vmem %s10, 8
  %v3167 = vld [vmem:[%s3166] sm:$0xf]
  %v3169 = vsel %vm1917, %v3167, 0
  %3171 = vmatprep.subr.bf16.mxu0 %v3073
  %3172 = vmatpush1.bf16.msra.mxu0 %v3070
  %3173 = vmatprep.subr.bf16.mxu0 0
  %3174 = vmatpush1.bf16.msra.mxu0 0
  %3175 = vmatprep.subr.bf16.mxu0 0
  %3176 = vmatpush1.bf16.msra.mxu0 0
  %3177 = vmatprep.subr.bf16.mxu0 0
  %3178 = vmatpush1.bf16.msra.mxu0 0
  %3179 = vmatprep.subr.bf16.mxu0 0
  %3180 = vmatpush1.bf16.msra.mxu0 0
  %3181 = vmatprep.subr.bf16.mxu0 0
  %3182 = vmatpush1.bf16.msra.mxu0 0
  %3183 = vmatprep.subr.bf16.mxu0 0
  %3184 = vmatpush1.bf16.msra.mxu0 0
  %3185 = vmatprep.subr.bf16.mxu0 0
  %3186 = vmatpush1.bf16.msra.mxu0 0
  %3187 = vmatprep.subr.bf16.mxu0 0
  %3188 = vmatpush1.bf16.msra.mxu0 0
  %3189 = vmatprep.subr.bf16.mxu0 0
  %3190 = vmatpush1.bf16.msra.mxu0 0
  %3191 = vmatprep.subr.bf16.mxu0 0
  %3192 = vmatpush1.bf16.msra.mxu0 0
  %3193 = vmatprep.subr.bf16.mxu0 0
  %3194 = vmatpush1.bf16.msra.mxu0 0
  %3195 = vmatprep.subr.bf16.mxu0 0
  %3196 = vmatpush1.bf16.msra.mxu0 0
  %3197 = vmatprep.subr.bf16.mxu0 0
  %3198 = vmatpush1.bf16.msra.mxu0 0
  %3199 = vmatprep.subr.bf16.mxu0 0
  %3200 = vmatpush1.bf16.msra.mxu0 0
  %3201 = vmatprep.subr.bf16.mxu0 0
  %3202 = vmatpush1.bf16.msra.mxu0 0
  %3203 = vmatprep.mubr.bf16.mxu0 0
  %3204 = vmatmul.mubr.bf16.gmra.mrb[0].mxu0 %v3169
  %v3205 = vpop.f32.mrb[0].mxu0
  %v3206 = vadd.f32 0.0, %v3205
  %v3207 = vpop.f32.mrb[0].mxu0
  %v3208 = vadd.f32 0.0, %v3207
  %v3209 = vpop.f32.mrb[0].mxu0
  %v3210 = vpop.f32.mrb[0].mxu0
  %3211 = vdwg.mxu0
  %v3212 = vpack.c.bf16 %v3206, %v3206
  %v3213 = vpack.c.bf16 %v3208, %v3208
  %s3214 = scalar_lea.vmem %s10, 12
  %v3215 = vld [vmem:[%s3214] sm:$0xf]
  %v3217 = vsel %vm1917, %v3215, 0
  %3219 = vmatprep.subr.bf16.mxu0 %v3073
  %3220 = vmatpush1.bf16.msra.mxu0 %v3070
  %3221 = vmatprep.subr.bf16.mxu0 0
  %3222 = vmatpush1.bf16.msra.mxu0 0
  %3223 = vmatprep.subr.bf16.mxu0 0
  %3224 = vmatpush1.bf16.msra.mxu0 0
  %3225 = vmatprep.subr.bf16.mxu0 0
  %3226 = vmatpush1.bf16.msra.mxu0 0
  %3227 = vmatprep.subr.bf16.mxu0 0
  %3228 = vmatpush1.bf16.msra.mxu0 0
  %3229 = vmatprep.subr.bf16.mxu0 0
  %3230 = vmatpush1.bf16.msra.mxu0 0
  %3231 = vmatprep.subr.bf16.mxu0 0
  %3232 = vmatpush1.bf16.msra.mxu0 0
  %3233 = vmatprep.subr.bf16.mxu0 0
  %3234 = vmatpush1.bf16.msra.mxu0 0
  %3235 = vmatprep.subr.bf16.mxu0 0
  %3236 = vmatpush1.bf16.msra.mxu0 0
  %3237 = vmatprep.subr.bf16.mxu0 0
  %3238 = vmatpush1.bf16.msra.mxu0 0
  %3239 = vmatprep.subr.bf16.mxu0 0
  %3240 = vmatpush1.bf16.msra.mxu0 0
  %3241 = vmatprep.subr.bf16.mxu0 0
  %3242 = vmatpush1.bf16.msra.mxu0 0
  %3243 = vmatprep.subr.bf16.mxu0 0
  %3244 = vmatpush1.bf16.msra.mxu0 0
  %3245 = vmatprep.subr.bf16.mxu0 0
  %3246 = vmatpush1.bf16.msra.mxu0 0
  %3247 = vmatprep.subr.bf16.mxu0 0
  %3248 = vmatpush1.bf16.msra.mxu0 0
  %3249 = vmatprep.subr.bf16.mxu0 0
  %3250 = vmatpush1.bf16.msra.mxu0 0
  %3251 = vmatprep.mubr.bf16.mxu0 0
  %3252 = vmatmul.mubr.bf16.gmra.mrb[0].mxu0 %v3217
  %v3253 = vpop.f32.mrb[0].mxu0
  %v3254 = vadd.f32 0.0, %v3253
  %v3255 = vpop.f32.mrb[0].mxu0
  %v3256 = vadd.f32 0.0, %v3255
  %v3257 = vpop.f32.mrb[0].mxu0
  %v3258 = vpop.f32.mrb[0].mxu0
  %3259 = vdwg.mxu0
  %v3260 = vpack.c.bf16 %v3254, %v3254
  %v3261 = vpack.c.bf16 %v3256, %v3256
  %v3262 = vld [vmem:[%s11] sm:$0xff]
  %v3263 = vld [vmem:[%s11 + $0x8] sm:$0xff]
  %v3264 = vld [vmem:[%s11 + $0x10] sm:$0xff]
  %v3265 = vld [vmem:[%s11 + $0x18] sm:$0xff]
  %v3266 = vld [vmem:[%s11 + $0x20] sm:$0xff]
  %v3267 = vld [vmem:[%s11 + $0x28] sm:$0xff]
  %v3268 = vld [vmem:[%s11 + $0x30] sm:$0xff]
  %v3269 = vld [vmem:[%s11 + $0x38] sm:$0xff]
  %v3270 = vld [vmem:[%s11 + $0x40] sm:$0xff]
  %v3271 = vld [vmem:[%s11 + $0x48] sm:$0xff]
  %v3272 = vld [vmem:[%s11 + $0x50] sm:$0xff]
  %v3273 = vld [vmem:[%s11 + $0x58] sm:$0xff]
  %v3274 = vld [vmem:[%s11 + $0x60] sm:$0xff]
  %v3275 = vld [vmem:[%s11 + $0x68] sm:$0xff]
  %v3276 = vld [vmem:[%s11 + $0x70] sm:$0xff]
  %v3277 = vld [vmem:[%s11 + $0x78] sm:$0xff]
  %v3278 = vld [vmem:[%s11 + $0x80] sm:$0xff]
  %v3279 = vld [vmem:[%s11 + $0x88] sm:$0xff]
  %v3280 = vld [vmem:[%s11 + $0x90] sm:$0xff]
  %v3281 = vld [vmem:[%s11 + $0x98] sm:$0xff]
  %v3282 = vld [vmem:[%s11 + $0xa0] sm:$0xff]
  %v3283 = vld [vmem:[%s11 + $0xa8] sm:$0xff]
  %v3284 = vld [vmem:[%s11 + $0xb0] sm:$0xff]
  %v3285 = vld [vmem:[%s11 + $0xb8] sm:$0xff]
  %v3286 = vld [vmem:[%s11 + $0xc0] sm:$0xff]
  %v3287 = vld [vmem:[%s11 + $0xc8] sm:$0xff]
  %v3288 = vld [vmem:[%s11 + $0xd0] sm:$0xff]
  %v3289 = vld [vmem:[%s11 + $0xd8] sm:$0xff]
  %v3290 = vld [vmem:[%s11 + $0xe0] sm:$0xff]
  %v3291 = vld [vmem:[%s11 + $0xe8] sm:$0xff]
  %v3292 = vld [vmem:[%s11 + $0xf0] sm:$0xff]
  %v3293 = vld [vmem:[%s11 + $0xf8] sm:$0xff]
  %v3294 = vld [vmem:[%s11 + $0x100] sm:$0xff]
  %v3295 = vld [vmem:[%s11 + $0x108] sm:$0xff]
  %v3296 = vld [vmem:[%s11 + $0x110] sm:$0xff]
  %v3297 = vld [vmem:[%s11 + $0x118] sm:$0xff]
  %v3298 = vld [vmem:[%s11 + $0x120] sm:$0xff]
  %v3299 = vld [vmem:[%s11 + $0x128] sm:$0xff]
  %v3300 = vld [vmem:[%s11 + $0x130] sm:$0xff]
  %v3301 = vld [vmem:[%s11 + $0x138] sm:$0xff]
  %v3302 = vld [vmem:[%s11 + $0x140] sm:$0xff]
  %v3303 = vld [vmem:[%s11 + $0x148] sm:$0xff]
  %v3304 = vld [vmem:[%s11 + $0x150] sm:$0xff]
  %v3305 = vld [vmem:[%s11 + $0x158] sm:$0xff]
  %v3306 = vld [vmem:[%s11 + $0x160] sm:$0xff]
  %v3307 = vld [vmem:[%s11 + $0x168] sm:$0xff]
  %v3308 = vld [vmem:[%s11 + $0x170] sm:$0xff]
  %v3309 = vld [vmem:[%s11 + $0x178] sm:$0xff]
  %v3310 = vld [vmem:[%s11 + $0x180] sm:$0xff]
  %v3311 = vld [vmem:[%s11 + $0x188] sm:$0xff]
  %v3312 = vld [vmem:[%s11 + $0x190] sm:$0xff]
  %v3313 = vld [vmem:[%s11 + $0x198] sm:$0xff]
  %v3314 = vld [vmem:[%s11 + $0x1a0] sm:$0xff]
  %v3315 = vld [vmem:[%s11 + $0x1a8] sm:$0xff]
  %v3316 = vld [vmem:[%s11 + $0x1b0] sm:$0xff]
  %v3317 = vld [vmem:[%s11 + $0x1b8] sm:$0xff]
  %v3318 = vld [vmem:[%s11 + $0x1c0] sm:$0xff]
  %v3319 = vld [vmem:[%s11 + $0x1c8] sm:$0xff]
  %v3320 = vld [vmem:[%s11 + $0x1d0] sm:$0xff]
  %v3321 = vld [vmem:[%s11 + $0x1d8] sm:$0xff]
  %v3322 = vld [vmem:[%s11 + $0x1e0] sm:$0xff]
  %v3323 = vld [vmem:[%s11 + $0x1e8] sm:$0xff]
  %v3324 = vld [vmem:[%s11 + $0x1f0] sm:$0xff]
  %v3325 = vld [vmem:[%s11 + $0x1f8] sm:$0xff]
  %v3326 = vld [vmem:[%s11 + $0x200] sm:$0xff]
  %v3327 = vld [vmem:[%s11 + $0x208] sm:$0xff]
  %v3328 = vld [vmem:[%s11 + $0x210] sm:$0xff]
  %v3329 = vld [vmem:[%s11 + $0x218] sm:$0xff]
  %v3330 = vld [vmem:[%s11 + $0x220] sm:$0xff]
  %v3331 = vld [vmem:[%s11 + $0x228] sm:$0xff]
  %v3332 = vld [vmem:[%s11 + $0x230] sm:$0xff]
  %v3333 = vld [vmem:[%s11 + $0x238] sm:$0xff]
  %v3334 = vld [vmem:[%s11 + $0x240] sm:$0xff]
  %v3335 = vld [vmem:[%s11 + $0x248] sm:$0xff]
  %v3336 = vld [vmem:[%s11 + $0x250] sm:$0xff]
  %v3337 = vld [vmem:[%s11 + $0x258] sm:$0xff]
  %v3338 = vld [vmem:[%s11 + $0x260] sm:$0xff]
  %v3339 = vld [vmem:[%s11 + $0x268] sm:$0xff]
  %v3340 = vld [vmem:[%s11 + $0x270] sm:$0xff]
  %v3341 = vld [vmem:[%s11 + $0x278] sm:$0xff]
  %v3342 = vld [vmem:[%s11 + $0x280] sm:$0xff]
  %v3343 = vld [vmem:[%s11 + $0x288] sm:$0xff]
  %v3344 = vld [vmem:[%s11 + $0x290] sm:$0xff]
  %v3345 = vld [vmem:[%s11 + $0x298] sm:$0xff]
  %v3346 = vld [vmem:[%s11 + $0x2a0] sm:$0xff]
  %v3347 = vld [vmem:[%s11 + $0x2a8] sm:$0xff]
  %v3348 = vld [vmem:[%s11 + $0x2b0] sm:$0xff]
  %v3349 = vld [vmem:[%s11 + $0x2b8] sm:$0xff]
  %v3350 = vld [vmem:[%s11 + $0x2c0] sm:$0xff]
  %v3351 = vld [vmem:[%s11 + $0x2c8] sm:$0xff]
  %v3352 = vld [vmem:[%s11 + $0x2d0] sm:$0xff]
  %v3353 = vld [vmem:[%s11 + $0x2d8] sm:$0xff]
  %v3354 = vld [vmem:[%s11 + $0x2e0] sm:$0xff]
  %v3355 = vld [vmem:[%s11 + $0x2e8] sm:$0xff]
  %v3356 = vld [vmem:[%s11 + $0x2f0] sm:$0xff]
  %v3357 = vld [vmem:[%s11 + $0x2f8] sm:$0xff]
  %v3358 = vld [vmem:[%s11 + $0x300] sm:$0xff]
  %v3359 = vld [vmem:[%s11 + $0x308] sm:$0xff]
  %v3360 = vld [vmem:[%s11 + $0x310] sm:$0xff]
  %v3361 = vld [vmem:[%s11 + $0x318] sm:$0xff]
  %v3362 = vld [vmem:[%s11 + $0x320] sm:$0xff]
  %v3363 = vld [vmem:[%s11 + $0x328] sm:$0xff]
  %v3364 = vld [vmem:[%s11 + $0x330] sm:$0xff]
  %v3365 = vld [vmem:[%s11 + $0x338] sm:$0xff]
  %v3366 = vld [vmem:[%s11 + $0x340] sm:$0xff]
  %v3367 = vld [vmem:[%s11 + $0x348] sm:$0xff]
  %v3368 = vld [vmem:[%s11 + $0x350] sm:$0xff]
  %v3369 = vld [vmem:[%s11 + $0x358] sm:$0xff]
  %v3370 = vld [vmem:[%s11 + $0x360] sm:$0xff]
  %v3371 = vld [vmem:[%s11 + $0x368] sm:$0xff]
  %v3372 = vld [vmem:[%s11 + $0x370] sm:$0xff]
  %v3373 = vld [vmem:[%s11 + $0x378] sm:$0xff]
  %v3374 = vld [vmem:[%s11 + $0x380] sm:$0xff]
  %v3375 = vld [vmem:[%s11 + $0x388] sm:$0xff]
  %v3376 = vld [vmem:[%s11 + $0x390] sm:$0xff]
  %v3377 = vld [vmem:[%s11 + $0x398] sm:$0xff]
  %v3378 = vld [vmem:[%s11 + $0x3a0] sm:$0xff]
  %v3379 = vld [vmem:[%s11 + $0x3a8] sm:$0xff]
  %v3380 = vld [vmem:[%s11 + $0x3b0] sm:$0xff]
  %v3381 = vld [vmem:[%s11 + $0x3b8] sm:$0xff]
  %v3382 = vld [vmem:[%s11 + $0x3c0] sm:$0xff]
  %v3383 = vld [vmem:[%s11 + $0x3c8] sm:$0xff]
  %v3384 = vld [vmem:[%s11 + $0x3d0] sm:$0xff]
  %v3385 = vld [vmem:[%s11 + $0x3d8] sm:$0xff]
  %v3386 = vld [vmem:[%s11 + $0x3e0] sm:$0xff]
  %v3387 = vld [vmem:[%s11 + $0x3e8] sm:$0xff]
  %v3388 = vld [vmem:[%s11 + $0x3f0] sm:$0xff]
  %v3389 = vld [vmem:[%s11 + $0x3f8] sm:$0xff]
  %v3390 = vld [vmem:[%s12] sm:$0x3]
  %v3392 = vlaneseq
  %v3393 = vshrl.u32 %v3392, 7
  %v3394 = vsub.s32 0, %v3393
  %v3395 = vrot.slane %v3390, %v3394
  %v3396 = vlaneseq
  %v3397 = vshrl.u32 %v3396, 7
  %v3398 = vsub.s32 1, %v3397
  %v3399 = vrot.slane %v3390, %v3398
  %v3530 = vunpack.c.l.b16 %v3262
  %v3531 = vunpack.c.h.b16 %v3262
  %v3532 = vunpack.c.l.b16 %v3263
  %v3533 = vunpack.c.h.b16 %v3263
  %v3534 = vunpack.c.l.b16 %v3264
  %v3535 = vunpack.c.h.b16 %v3264
  %v3536 = vunpack.c.l.b16 %v3265
  %v3537 = vunpack.c.h.b16 %v3265
  %v3538 = vunpack.c.l.b16 %v3266
  %v3539 = vunpack.c.h.b16 %v3266
  %v3540 = vunpack.c.l.b16 %v3267
  %v3541 = vunpack.c.h.b16 %v3267
  %v3542 = vunpack.c.l.b16 %v3268
  %v3543 = vunpack.c.h.b16 %v3268
  %v3544 = vunpack.c.l.b16 %v3269
  %v3545 = vunpack.c.h.b16 %v3269
  %v3546 = vunpack.c.l.b16 %v3270
  %v3547 = vunpack.c.h.b16 %v3270
  %v3548 = vunpack.c.l.b16 %v3271
  %v3549 = vunpack.c.h.b16 %v3271
  %v3550 = vunpack.c.l.b16 %v3272
  %v3551 = vunpack.c.h.b16 %v3272
  %v3552 = vunpack.c.l.b16 %v3273
  %v3553 = vunpack.c.h.b16 %v3273
  %v3554 = vunpack.c.l.b16 %v3274
  %v3555 = vunpack.c.h.b16 %v3274
  %v3556 = vunpack.c.l.b16 %v3275
  %v3557 = vunpack.c.h.b16 %v3275
  %v3558 = vunpack.c.l.b16 %v3276
  %v3559 = vunpack.c.h.b16 %v3276
  %v3560 = vunpack.c.l.b16 %v3277
  %v3561 = vunpack.c.h.b16 %v3277
  %v3562 = vunpack.c.l.b16 %v3278
  %v3563 = vunpack.c.h.b16 %v3278
  %v3564 = vunpack.c.l.b16 %v3279
  %v3565 = vunpack.c.h.b16 %v3279
  %v3566 = vunpack.c.l.b16 %v3280
  %v3567 = vunpack.c.h.b16 %v3280
  %v3568 = vunpack.c.l.b16 %v3281
  %v3569 = vunpack.c.h.b16 %v3281
  %v3570 = vunpack.c.l.b16 %v3282
  %v3571 = vunpack.c.h.b16 %v3282
  %v3572 = vunpack.c.l.b16 %v3283
  %v3573 = vunpack.c.h.b16 %v3283
  %v3574 = vunpack.c.l.b16 %v3284
  %v3575 = vunpack.c.h.b16 %v3284
  %v3576 = vunpack.c.l.b16 %v3285
  %v3577 = vunpack.c.h.b16 %v3285
  %v3578 = vunpack.c.l.b16 %v3286
  %v3579 = vunpack.c.h.b16 %v3286
  %v3580 = vunpack.c.l.b16 %v3287
  %v3581 = vunpack.c.h.b16 %v3287
  %v3582 = vunpack.c.l.b16 %v3288
  %v3583 = vunpack.c.h.b16 %v3288
  %v3584 = vunpack.c.l.b16 %v3289
  %v3585 = vunpack.c.h.b16 %v3289
  %v3586 = vunpack.c.l.b16 %v3290
  %v3587 = vunpack.c.h.b16 %v3290
  %v3588 = vunpack.c.l.b16 %v3291
  %v3589 = vunpack.c.h.b16 %v3291
  %v3590 = vunpack.c.l.b16 %v3292
  %v3591 = vunpack.c.h.b16 %v3292
  %v3592 = vunpack.c.l.b16 %v3293
  %v3593 = vunpack.c.h.b16 %v3293
  %v3594 = vunpack.c.l.b16 %v3294
  %v3595 = vunpack.c.h.b16 %v3294
  %v3596 = vunpack.c.l.b16 %v3295
  %v3597 = vunpack.c.h.b16 %v3295
  %v3598 = vunpack.c.l.b16 %v3296
  %v3599 = vunpack.c.h.b16 %v3296
  %v3600 = vunpack.c.l.b16 %v3297
  %v3601 = vunpack.c.h.b16 %v3297
  %v3602 = vunpack.c.l.b16 %v3298
  %v3603 = vunpack.c.h.b16 %v3298
  %v3604 = vunpack.c.l.b16 %v3299
  %v3605 = vunpack.c.h.b16 %v3299
  %v3606 = vunpack.c.l.b16 %v3300
  %v3607 = vunpack.c.h.b16 %v3300
  %v3608 = vunpack.c.l.b16 %v3301
  %v3609 = vunpack.c.h.b16 %v3301
  %v3610 = vunpack.c.l.b16 %v3302
  %v3611 = vunpack.c.h.b16 %v3302
  %v3612 = vunpack.c.l.b16 %v3303
  %v3613 = vunpack.c.h.b16 %v3303
  %v3614 = vunpack.c.l.b16 %v3304
  %v3615 = vunpack.c.h.b16 %v3304
  %v3616 = vunpack.c.l.b16 %v3305
  %v3617 = vunpack.c.h.b16 %v3305
  %v3618 = vunpack.c.l.b16 %v3306
  %v3619 = vunpack.c.h.b16 %v3306
  %v3620 = vunpack.c.l.b16 %v3307
  %v3621 = vunpack.c.h.b16 %v3307
  %v3622 = vunpack.c.l.b16 %v3308
  %v3623 = vunpack.c.h.b16 %v3308
  %v3624 = vunpack.c.l.b16 %v3309
  %v3625 = vunpack.c.h.b16 %v3309
  %v3626 = vunpack.c.l.b16 %v3310
  %v3627 = vunpack.c.h.b16 %v3310
  %v3628 = vunpack.c.l.b16 %v3311
  %v3629 = vunpack.c.h.b16 %v3311
  %v3630 = vunpack.c.l.b16 %v3312
  %v3631 = vunpack.c.h.b16 %v3312
  %v3632 = vunpack.c.l.b16 %v3313
  %v3633 = vunpack.c.h.b16 %v3313
  %v3634 = vunpack.c.l.b16 %v3314
  %v3635 = vunpack.c.h.b16 %v3314
  %v3636 = vunpack.c.l.b16 %v3315
  %v3637 = vunpack.c.h.b16 %v3315
  %v3638 = vunpack.c.l.b16 %v3316
  %v3639 = vunpack.c.h.b16 %v3316
  %v3640 = vunpack.c.l.b16 %v3317
  %v3641 = vunpack.c.h.b16 %v3317
  %v3642 = vunpack.c.l.b16 %v3318
  %v3643 = vunpack.c.h.b16 %v3318
  %v3644 = vunpack.c.l.b16 %v3319
  %v3645 = vunpack.c.h.b16 %v3319
  %v3646 = vunpack.c.l.b16 %v3320
  %v3647 = vunpack.c.h.b16 %v3320
  %v3648 = vunpack.c.l.b16 %v3321
  %v3649 = vunpack.c.h.b16 %v3321
  %v3650 = vunpack.c.l.b16 %v3322
  %v3651 = vunpack.c.h.b16 %v3322
  %v3652 = vunpack.c.l.b16 %v3323
  %v3653 = vunpack.c.h.b16 %v3323
  %v3654 = vunpack.c.l.b16 %v3324
  %v3655 = vunpack.c.h.b16 %v3324
  %v3656 = vunpack.c.l.b16 %v3325
  %v3657 = vunpack.c.h.b16 %v3325
  %v3658 = vunpack.c.l.b16 %v3326
  %v3659 = vunpack.c.h.b16 %v3326
  %v3660 = vunpack.c.l.b16 %v3327
  %v3661 = vunpack.c.h.b16 %v3327
  %v3662 = vunpack.c.l.b16 %v3328
  %v3663 = vunpack.c.h.b16 %v3328
  %v3664 = vunpack.c.l.b16 %v3329
  %v3665 = vunpack.c.h.b16 %v3329
  %v3666 = vunpack.c.l.b16 %v3330
  %v3667 = vunpack.c.h.b16 %v3330
  %v3668 = vunpack.c.l.b16 %v3331
  %v3669 = vunpack.c.h.b16 %v3331
  %v3670 = vunpack.c.l.b16 %v3332
  %v3671 = vunpack.c.h.b16 %v3332
  %v3672 = vunpack.c.l.b16 %v3333
  %v3673 = vunpack.c.h.b16 %v3333
  %v3674 = vunpack.c.l.b16 %v3334
  %v3675 = vunpack.c.h.b16 %v3334
  %v3676 = vunpack.c.l.b16 %v3335
  %v3677 = vunpack.c.h.b16 %v3335
  %v3678 = vunpack.c.l.b16 %v3336
  %v3679 = vunpack.c.h.b16 %v3336
  %v3680 = vunpack.c.l.b16 %v3337
  %v3681 = vunpack.c.h.b16 %v3337
  %v3682 = vunpack.c.l.b16 %v3338
  %v3683 = vunpack.c.h.b16 %v3338
  %v3684 = vunpack.c.l.b16 %v3339
  %v3685 = vunpack.c.h.b16 %v3339
  %v3686 = vunpack.c.l.b16 %v3340
  %v3687 = vunpack.c.h.b16 %v3340
  %v3688 = vunpack.c.l.b16 %v3341
  %v3689 = vunpack.c.h.b16 %v3341
  %v3690 = vunpack.c.l.b16 %v3342
  %v3691 = vunpack.c.h.b16 %v3342
  %v3692 = vunpack.c.l.b16 %v3343
  %v3693 = vunpack.c.h.b16 %v3343
  %v3694 = vunpack.c.l.b16 %v3344
  %v3695 = vunpack.c.h.b16 %v3344
  %v3696 = vunpack.c.l.b16 %v3345
  %v3697 = vunpack.c.h.b16 %v3345
  %v3698 = vunpack.c.l.b16 %v3346
  %v3699 = vunpack.c.h.b16 %v3346
  %v3700 = vunpack.c.l.b16 %v3347
  %v3701 = vunpack.c.h.b16 %v3347
  %v3702 = vunpack.c.l.b16 %v3348
  %v3703 = vunpack.c.h.b16 %v3348
  %v3704 = vunpack.c.l.b16 %v3349
  %v3705 = vunpack.c.h.b16 %v3349
  %v3706 = vunpack.c.l.b16 %v3350
  %v3707 = vunpack.c.h.b16 %v3350
  %v3708 = vunpack.c.l.b16 %v3351
  %v3709 = vunpack.c.h.b16 %v3351
  %v3710 = vunpack.c.l.b16 %v3352
  %v3711 = vunpack.c.h.b16 %v3352
  %v3712 = vunpack.c.l.b16 %v3353
  %v3713 = vunpack.c.h.b16 %v3353
  %v3714 = vunpack.c.l.b16 %v3354
  %v3715 = vunpack.c.h.b16 %v3354
  %v3716 = vunpack.c.l.b16 %v3355
  %v3717 = vunpack.c.h.b16 %v3355
  %v3718 = vunpack.c.l.b16 %v3356
  %v3719 = vunpack.c.h.b16 %v3356
  %v3720 = vunpack.c.l.b16 %v3357
  %v3721 = vunpack.c.h.b16 %v3357
  %v3722 = vunpack.c.l.b16 %v3358
  %v3723 = vunpack.c.h.b16 %v3358
  %v3724 = vunpack.c.l.b16 %v3359
  %v3725 = vunpack.c.h.b16 %v3359
  %v3726 = vunpack.c.l.b16 %v3360
  %v3727 = vunpack.c.h.b16 %v3360
  %v3728 = vunpack.c.l.b16 %v3361
  %v3729 = vunpack.c.h.b16 %v3361
  %v3730 = vunpack.c.l.b16 %v3362
  %v3731 = vunpack.c.h.b16 %v3362
  %v3732 = vunpack.c.l.b16 %v3363
  %v3733 = vunpack.c.h.b16 %v3363
  %v3734 = vunpack.c.l.b16 %v3364
  %v3735 = vunpack.c.h.b16 %v3364
  %v3736 = vunpack.c.l.b16 %v3365
  %v3737 = vunpack.c.h.b16 %v3365
  %v3738 = vunpack.c.l.b16 %v3366
  %v3739 = vunpack.c.h.b16 %v3366
  %v3740 = vunpack.c.l.b16 %v3367
  %v3741 = vunpack.c.h.b16 %v3367
  %v3742 = vunpack.c.l.b16 %v3368
  %v3743 = vunpack.c.h.b16 %v3368
  %v3744 = vunpack.c.l.b16 %v3369
  %v3745 = vunpack.c.h.b16 %v3369
  %v3746 = vunpack.c.l.b16 %v3370
  %v3747 = vunpack.c.h.b16 %v3370
  %v3748 = vunpack.c.l.b16 %v3371
  %v3749 = vunpack.c.h.b16 %v3371
  %v3750 = vunpack.c.l.b16 %v3372
  %v3751 = vunpack.c.h.b16 %v3372
  %v3752 = vunpack.c.l.b16 %v3373
  %v3753 = vunpack.c.h.b16 %v3373
  %v3754 = vunpack.c.l.b16 %v3374
  %v3755 = vunpack.c.h.b16 %v3374
  %v3756 = vunpack.c.l.b16 %v3375
  %v3757 = vunpack.c.h.b16 %v3375
  %v3758 = vunpack.c.l.b16 %v3376
  %v3759 = vunpack.c.h.b16 %v3376
  %v3760 = vunpack.c.l.b16 %v3377
  %v3761 = vunpack.c.h.b16 %v3377
  %v3762 = vunpack.c.l.b16 %v3378
  %v3763 = vunpack.c.h.b16 %v3378
  %v3764 = vunpack.c.l.b16 %v3379
  %v3765 = vunpack.c.h.b16 %v3379
  %v3766 = vunpack.c.l.b16 %v3380
  %v3767 = vunpack.c.h.b16 %v3380
  %v3768 = vunpack.c.l.b16 %v3381
  %v3769 = vunpack.c.h.b16 %v3381
  %v3770 = vunpack.c.l.b16 %v3382
  %v3771 = vunpack.c.h.b16 %v3382
  %v3772 = vunpack.c.l.b16 %v3383
  %v3773 = vunpack.c.h.b16 %v3383
  %v3774 = vunpack.c.l.b16 %v3384
  %v3775 = vunpack.c.h.b16 %v3384
  %v3776 = vunpack.c.l.b16 %v3385
  %v3777 = vunpack.c.h.b16 %v3385
  %v3778 = vunpack.c.l.b16 %v3386
  %v3779 = vunpack.c.h.b16 %v3386
  %v3780 = vunpack.c.l.b16 %v3387
  %v3781 = vunpack.c.h.b16 %v3387
  %v3782 = vunpack.c.l.b16 %v3388
  %v3783 = vunpack.c.h.b16 %v3388
  %v3784 = vunpack.c.l.b16 %v3389
  %v3785 = vunpack.c.h.b16 %v3389
  %v3786 = vpack.c.b16 %v3532, %v3530
  %v3787 = vpack.c.b16 %v3533, %v3531
  %v3788 = vpack.c.b16 %v3536, %v3534
  %v3789 = vpack.c.b16 %v3537, %v3535
  %v3790 = vpack.c.b16 %v3540, %v3538
  %v3791 = vpack.c.b16 %v3541, %v3539
  %v3792 = vpack.c.b16 %v3544, %v3542
  %v3793 = vpack.c.b16 %v3545, %v3543
  %v3794 = vpack.c.b16 %v3548, %v3546
  %v3795 = vpack.c.b16 %v3549, %v3547
  %v3796 = vpack.c.b16 %v3552, %v3550
  %v3797 = vpack.c.b16 %v3553, %v3551
  %v3798 = vpack.c.b16 %v3556, %v3554
  %v3799 = vpack.c.b16 %v3557, %v3555
  %v3800 = vpack.c.b16 %v3560, %v3558
  %v3801 = vpack.c.b16 %v3561, %v3559
  %v3802 = vpack.c.b16 %v3564, %v3562
  %v3803 = vpack.c.b16 %v3565, %v3563
  %v3804 = vpack.c.b16 %v3568, %v3566
  %v3805 = vpack.c.b16 %v3569, %v3567
  %v3806 = vpack.c.b16 %v3572, %v3570
  %v3807 = vpack.c.b16 %v3573, %v3571
  %v3808 = vpack.c.b16 %v3576, %v3574
  %v3809 = vpack.c.b16 %v3577, %v3575
  %v3810 = vpack.c.b16 %v3580, %v3578
  %v3811 = vpack.c.b16 %v3581, %v3579
  %v3812 = vpack.c.b16 %v3584, %v3582
  %v3813 = vpack.c.b16 %v3585, %v3583
  %v3814 = vpack.c.b16 %v3588, %v3586
  %v3815 = vpack.c.b16 %v3589, %v3587
  %v3816 = vpack.c.b16 %v3592, %v3590
  %v3817 = vpack.c.b16 %v3593, %v3591
  %v3818 = vpack.c.b16 %v3596, %v3594
  %v3819 = vpack.c.b16 %v3597, %v3595
  %v3820 = vpack.c.b16 %v3600, %v3598
  %v3821 = vpack.c.b16 %v3601, %v3599
  %v3822 = vpack.c.b16 %v3604, %v3602
  %v3823 = vpack.c.b16 %v3605, %v3603
  %v3824 = vpack.c.b16 %v3608, %v3606
  %v3825 = vpack.c.b16 %v3609, %v3607
  %v3826 = vpack.c.b16 %v3612, %v3610
  %v3827 = vpack.c.b16 %v3613, %v3611
  %v3828 = vpack.c.b16 %v3616, %v3614
  %v3829 = vpack.c.b16 %v3617, %v3615
  %v3830 = vpack.c.b16 %v3620, %v3618
  %v3831 = vpack.c.b16 %v3621, %v3619
  %v3832 = vpack.c.b16 %v3624, %v3622
  %v3833 = vpack.c.b16 %v3625, %v3623
  %v3834 = vpack.c.b16 %v3628, %v3626
  %v3835 = vpack.c.b16 %v3629, %v3627
  %v3836 = vpack.c.b16 %v3632, %v3630
  %v3837 = vpack.c.b16 %v3633, %v3631
  %v3838 = vpack.c.b16 %v3636, %v3634
  %v3839 = vpack.c.b16 %v3637, %v3635
  %v3840 = vpack.c.b16 %v3640, %v3638
  %v3841 = vpack.c.b16 %v3641, %v3639
  %v3842 = vpack.c.b16 %v3644, %v3642
  %v3843 = vpack.c.b16 %v3645, %v3643
  %v3844 = vpack.c.b16 %v3648, %v3646
  %v3845 = vpack.c.b16 %v3649, %v3647
  %v3846 = vpack.c.b16 %v3652, %v3650
  %v3847 = vpack.c.b16 %v3653, %v3651
  %v3848 = vpack.c.b16 %v3656, %v3654
  %v3849 = vpack.c.b16 %v3657, %v3655
  %v3850 = vpack.c.b16 %v3660, %v3658
  %v3851 = vpack.c.b16 %v3661, %v3659
  %v3852 = vpack.c.b16 %v3664, %v3662
  %v3853 = vpack.c.b16 %v3665, %v3663
  %v3854 = vpack.c.b16 %v3668, %v3666
  %v3855 = vpack.c.b16 %v3669, %v3667
  %v3856 = vpack.c.b16 %v3672, %v3670
  %v3857 = vpack.c.b16 %v3673, %v3671
  %v3858 = vpack.c.b16 %v3676, %v3674
  %v3859 = vpack.c.b16 %v3677, %v3675
  %v3860 = vpack.c.b16 %v3680, %v3678
  %v3861 = vpack.c.b16 %v3681, %v3679
  %v3862 = vpack.c.b16 %v3684, %v3682
  %v3863 = vpack.c.b16 %v3685, %v3683
  %v3864 = vpack.c.b16 %v3688, %v3686
  %v3865 = vpack.c.b16 %v3689, %v3687
  %v3866 = vpack.c.b16 %v3692, %v3690
  %v3867 = vpack.c.b16 %v3693, %v3691
  %v3868 = vpack.c.b16 %v3696, %v3694
  %v3869 = vpack.c.b16 %v3697, %v3695
  %v3870 = vpack.c.b16 %v3700, %v3698
  %v3871 = vpack.c.b16 %v3701, %v3699
  %v3872 = vpack.c.b16 %v3704, %v3702
  %v3873 = vpack.c.b16 %v3705, %v3703
  %v3874 = vpack.c.b16 %v3708, %v3706
  %v3875 = vpack.c.b16 %v3709, %v3707
  %v3876 = vpack.c.b16 %v3712, %v3710
  %v3877 = vpack.c.b16 %v3713, %v3711
  %v3878 = vpack.c.b16 %v3716, %v3714
  %v3879 = vpack.c.b16 %v3717, %v3715
  %v3880 = vpack.c.b16 %v3720, %v3718
  %v3881 = vpack.c.b16 %v3721, %v3719
  %v3882 = vpack.c.b16 %v3724, %v3722
  %v3883 = vpack.c.b16 %v3725, %v3723
  %v3884 = vpack.c.b16 %v3728, %v3726
  %v3885 = vpack.c.b16 %v3729, %v3727
  %v3886 = vpack.c.b16 %v3732, %v3730
  %v3887 = vpack.c.b16 %v3733, %v3731
  %v3888 = vpack.c.b16 %v3736, %v3734
  %v3889 = vpack.c.b16 %v3737, %v3735
  %v3890 = vpack.c.b16 %v3740, %v3738
  %v3891 = vpack.c.b16 %v3741, %v3739
  %v3892 = vpack.c.b16 %v3744, %v3742
  %v3893 = vpack.c.b16 %v3745, %v3743
  %v3894 = vpack.c.b16 %v3748, %v3746
  %v3895 = vpack.c.b16 %v3749, %v3747
  %v3896 = vpack.c.b16 %v3752, %v3750
  %v3897 = vpack.c.b16 %v3753, %v3751
  %v3898 = vpack.c.b16 %v3756, %v3754
  %v3899 = vpack.c.b16 %v3757, %v3755
  %v3900 = vpack.c.b16 %v3760, %v3758
  %v3901 = vpack.c.b16 %v3761, %v3759
  %v3902 = vpack.c.b16 %v3764, %v3762
  %v3903 = vpack.c.b16 %v3765, %v3763
  %v3904 = vpack.c.b16 %v3768, %v3766
  %v3905 = vpack.c.b16 %v3769, %v3767
  %v3906 = vpack.c.b16 %v3772, %v3770
  %v3907 = vpack.c.b16 %v3773, %v3771
  %v3908 = vpack.c.b16 %v3776, %v3774
  %v3909 = vpack.c.b16 %v3777, %v3775
  %v3910 = vpack.c.b16 %v3780, %v3778
  %v3911 = vpack.c.b16 %v3781, %v3779
  %v3912 = vpack.c.b16 %v3784, %v3782
  %v3913 = vpack.c.b16 %v3785, %v3783
  %4042 = vmatprep.subr.bf16.mxu0 %v3787
  %4043 = vmatpush1.bf16.msra.mxu0 %v3786
  %4044 = vmatprep.subr.bf16.mxu0 %v3789
  %4045 = vmatpush1.bf16.msra.mxu0 %v3788
  %4046 = vmatprep.subr.bf16.mxu0 %v3791
  %4047 = vmatpush1.bf16.msra.mxu0 %v3790
  %4048 = vmatprep.subr.bf16.mxu0 %v3793
  %4049 = vmatpush1.bf16.msra.mxu0 %v3792
  %4050 = vmatprep.subr.bf16.mxu0 %v3795
  %4051 = vmatpush1.bf16.msra.mxu0 %v3794
  %4052 = vmatprep.subr.bf16.mxu0 %v3797
  %4053 = vmatpush1.bf16.msra.mxu0 %v3796
  %4054 = vmatprep.subr.bf16.mxu0 %v3799
  %4055 = vmatpush1.bf16.msra.mxu0 %v3798
  %4056 = vmatprep.subr.bf16.mxu0 %v3801
  %4057 = vmatpush1.bf16.msra.mxu0 %v3800
  %4058 = vmatprep.subr.bf16.mxu0 %v3803
  %4059 = vmatpush1.bf16.msra.mxu0 %v3802
  %4060 = vmatprep.subr.bf16.mxu0 %v3805
  %4061 = vmatpush1.bf16.msra.mxu0 %v3804
  %4062 = vmatprep.subr.bf16.mxu0 %v3807
  %4063 = vmatpush1.bf16.msra.mxu0 %v3806
  %4064 = vmatprep.subr.bf16.mxu0 %v3809
  %4065 = vmatpush1.bf16.msra.mxu0 %v3808
  %4066 = vmatprep.subr.bf16.mxu0 %v3811
  %4067 = vmatpush1.bf16.msra.mxu0 %v3810
  %4068 = vmatprep.subr.bf16.mxu0 %v3813
  %4069 = vmatpush1.bf16.msra.mxu0 %v3812
  %4070 = vmatprep.subr.bf16.mxu0 %v3815
  %4071 = vmatpush1.bf16.msra.mxu0 %v3814
  %4072 = vmatprep.subr.bf16.mxu0 %v3817
  %4073 = vmatpush1.bf16.msra.mxu0 %v3816
  %4074 = vmatprep.mubr.bf16.mxu0 %v3117
  %4075 = vmatmul.mubr.bf16.gmra.mrb[0].mxu0 %v3116
  %v4076 = vpop.f32.mrb[0].mxu0
  %v4077 = vadd.f32 %v3395, %v4076
  %v4078 = vpop.f32.mrb[0].mxu0
  %v4079 = vadd.f32 %v3399, %v4078
  %v4080 = vpop.f32.mrb[0].mxu0
  %v4081 = vpop.f32.mrb[0].mxu0
  %4082 = vdwg.mxu0
  %4083 = vmatprep.subr.bf16.mxu0 %v3819
  %4084 = vmatpush1.bf16.msra.mxu0 %v3818
  %4085 = vmatprep.subr.bf16.mxu0 %v3821
  %4086 = vmatpush1.bf16.msra.mxu0 %v3820
  %4087 = vmatprep.subr.bf16.mxu0 %v3823
  %4088 = vmatpush1.bf16.msra.mxu0 %v3822
  %4089 = vmatprep.subr.bf16.mxu0 %v3825
  %4090 = vmatpush1.bf16.msra.mxu0 %v3824
  %4091 = vmatprep.subr.bf16.mxu0 %v3827
  %4092 = vmatpush1.bf16.msra.mxu0 %v3826
  %4093 = vmatprep.subr.bf16.mxu0 %v3829
  %4094 = vmatpush1.bf16.msra.mxu0 %v3828
  %4095 = vmatprep.subr.bf16.mxu0 %v3831
  %4096 = vmatpush1.bf16.msra.mxu0 %v3830
  %4097 = vmatprep.subr.bf16.mxu0 %v3833
  %4098 = vmatpush1.bf16.msra.mxu0 %v3832
  %4099 = vmatprep.subr.bf16.mxu0 %v3835
  %4100 = vmatpush1.bf16.msra.mxu0 %v3834
  %4101 = vmatprep.subr.bf16.mxu0 %v3837
  %4102 = vmatpush1.bf16.msra.mxu0 %v3836
  %4103 = vmatprep.subr.bf16.mxu0 %v3839
  %4104 = vmatpush1.bf16.msra.mxu0 %v3838
  %4105 = vmatprep.subr.bf16.mxu0 %v3841
  %4106 = vmatpush1.bf16.msra.mxu0 %v3840
  %4107 = vmatprep.subr.bf16.mxu0 %v3843
  %4108 = vmatpush1.bf16.msra.mxu0 %v3842
  %4109 = vmatprep.subr.bf16.mxu0 %v3845
  %4110 = vmatpush1.bf16.msra.mxu0 %v3844
  %4111 = vmatprep.subr.bf16.mxu0 %v3847
  %4112 = vmatpush1.bf16.msra.mxu0 %v3846
  %4113 = vmatprep.subr.bf16.mxu0 %v3849
  %4114 = vmatpush1.bf16.msra.mxu0 %v3848
  %4115 = vmatprep.mubr.bf16.mxu0 %v3165
  %4116 = vmatmul.mubr.bf16.gmra.mrb[0].mxu0 %v3164
  %v4117 = vpop.f32.mrb[0].mxu0
  %v4118 = vadd.f32 %v4077, %v4117
  %v4119 = vpop.f32.mrb[0].mxu0
  %v4120 = vadd.f32 %v4079, %v4119
  %v4121 = vpop.f32.mrb[0].mxu0
  %v4122 = vpop.f32.mrb[0].mxu0
  %4123 = vdwg.mxu0
  %4124 = vmatprep.subr.bf16.mxu0 %v3851
  %4125 = vmatpush1.bf16.msra.mxu0 %v3850
  %4126 = vmatprep.subr.bf16.mxu0 %v3853
  %4127 = vmatpush1.bf16.msra.mxu0 %v3852
  %4128 = vmatprep.subr.bf16.mxu0 %v3855
  %4129 = vmatpush1.bf16.msra.mxu0 %v3854
  %4130 = vmatprep.subr.bf16.mxu0 %v3857
  %4131 = vmatpush1.bf16.msra.mxu0 %v3856
  %4132 = vmatprep.subr.bf16.mxu0 %v3859
  %4133 = vmatpush1.bf16.msra.mxu0 %v3858
  %4134 = vmatprep.subr.bf16.mxu0 %v3861
  %4135 = vmatpush1.bf16.msra.mxu0 %v3860
  %4136 = vmatprep.subr.bf16.mxu0 %v3863
  %4137 = vmatpush1.bf16.msra.mxu0 %v3862
  %4138 = vmatprep.subr.bf16.mxu0 %v3865
  %4139 = vmatpush1.bf16.msra.mxu0 %v3864
  %4140 = vmatprep.subr.bf16.mxu0 %v3867
  %4141 = vmatpush1.bf16.msra.mxu0 %v3866
  %4142 = vmatprep.subr.bf16.mxu0 %v3869
  %4143 = vmatpush1.bf16.msra.mxu0 %v3868
  %4144 = vmatprep.subr.bf16.mxu0 %v3871
  %4145 = vmatpush1.bf16.msra.mxu0 %v3870
  %4146 = vmatprep.subr.bf16.mxu0 %v3873
  %4147 = vmatpush1.bf16.msra.mxu0 %v3872
  %4148 = vmatprep.subr.bf16.mxu0 %v3875
  %4149 = vmatpush1.bf16.msra.mxu0 %v3874
  %4150 = vmatprep.subr.bf16.mxu0 %v3877
  %4151 = vmatpush1.bf16.msra.mxu0 %v3876
  %4152 = vmatprep.subr.bf16.mxu0 %v3879
  %4153 = vmatpush1.bf16.msra.mxu0 %v3878
  %4154 = vmatprep.subr.bf16.mxu0 %v3881
  %4155 = vmatpush1.bf16.msra.mxu0 %v3880
  %4156 = vmatprep.mubr.bf16.mxu0 %v3213
  %4157 = vmatmul.mubr.bf16.gmra.mrb[0].mxu0 %v3212
  %v4158 = vpop.f32.mrb[0].mxu0
  %v4159 = vadd.f32 %v4118, %v4158
  %v4160 = vpop.f32.mrb[0].mxu0
  %v4161 = vadd.f32 %v4120, %v4160
  %v4162 = vpop.f32.mrb[0].mxu0
  %v4163 = vpop.f32.mrb[0].mxu0
  %4164 = vdwg.mxu0
  %4165 = vmatprep.subr.bf16.mxu0 %v3883
  %4166 = vmatpush1.bf16.msra.mxu0 %v3882
  %4167 = vmatprep.subr.bf16.mxu0 %v3885
  %4168 = vmatpush1.bf16.msra.mxu0 %v3884
  %4169 = vmatprep.subr.bf16.mxu0 %v3887
  %4170 = vmatpush1.bf16.msra.mxu0 %v3886
  %4171 = vmatprep.subr.bf16.mxu0 %v3889
  %4172 = vmatpush1.bf16.msra.mxu0 %v3888
  %4173 = vmatprep.subr.bf16.mxu0 %v3891
  %4174 = vmatpush1.bf16.msra.mxu0 %v3890
  %4175 = vmatprep.subr.bf16.mxu0 %v3893
  %4176 = vmatpush1.bf16.msra.mxu0 %v3892
  %4177 = vmatprep.subr.bf16.mxu0 %v3895
  %4178 = vmatpush1.bf16.msra.mxu0 %v3894
  %4179 = vmatprep.subr.bf16.mxu0 %v3897
  %4180 = vmatpush1.bf16.msra.mxu0 %v3896
  %4181 = vmatprep.subr.bf16.mxu0 %v3899
  %4182 = vmatpush1.bf16.msra.mxu0 %v3898
  %4183 = vmatprep.subr.bf16.mxu0 %v3901
  %4184 = vmatpush1.bf16.msra.mxu0 %v3900
  %4185 = vmatprep.subr.bf16.mxu0 %v3903
  %4186 = vmatpush1.bf16.msra.mxu0 %v3902
  %4187 = vmatprep.subr.bf16.mxu0 %v3905
  %4188 = vmatpush1.bf16.msra.mxu0 %v3904
  %4189 = vmatprep.subr.bf16.mxu0 %v3907
  %4190 = vmatpush1.bf16.msra.mxu0 %v3906
  %4191 = vmatprep.subr.bf16.mxu0 %v3909
  %4192 = vmatpush1.bf16.msra.mxu0 %v3908
  %4193 = vmatprep.subr.bf16.mxu0 %v3911
  %4194 = vmatpush1.bf16.msra.mxu0 %v3910
  %4195 = vmatprep.subr.bf16.mxu0 %v3913
  %4196 = vmatpush1.bf16.msra.mxu0 %v3912
  %4197 = vmatprep.mubr.bf16.mxu0 %v3261
  %4198 = vmatmul.mubr.bf16.gmra.mrb[0].mxu0 %v3260
  %v4199 = vpop.f32.mrb[0].mxu0
  %v4200 = vadd.f32 %v4159, %v4199
  %v4201 = vpop.f32.mrb[0].mxu0
  %v4202 = vadd.f32 %v4161, %v4201
  %v4203 = vpop.f32.mrb[0].mxu0
  %v4204 = vpop.f32.mrb[0].mxu0
  %4205 = vdwg.mxu0
  %v4206 = vmul.f32 %v4200, 0.2
  %v4207 = vmul.f32 %v4202, 0.2
  %v4208 = vmax.f32 %v4200, %v4206
  %v4209 = vmax.f32 %v4202, %v4207
  %v4210 = vpack.c.bf16 %v4208, %v4208
  %v4211 = vpack.c.bf16 %v4209, %v4209
  %v4212 = vld [vmem:[%s13] sm:$0xf]
  %v4214 = vsel %vm1917, %v4212, 0
  %v4217 = vsel %vm1921, %v4210, 0
  %v4220 = vsel %vm1921, %v4211, 0
  %4222 = vmatprep.subr.bf16.mxu0 %v4220
  %4223 = vmatpush1.bf16.msra.mxu0 %v4217
  %4224 = vmatprep.subr.bf16.mxu0 0
  %4225 = vmatpush1.bf16.msra.mxu0 0
  %4226 = vmatprep.subr.bf16.mxu0 0
  %4227 = vmatpush1.bf16.msra.mxu0 0
  %4228 = vmatprep.subr.bf16.mxu0 0
  %4229 = vmatpush1.bf16.msra.mxu0 0
  %4230 = vmatprep.subr.bf16.mxu0 0
  %4231 = vmatpush1.bf16.msra.mxu0 0
  %4232 = vmatprep.subr.bf16.mxu0 0
  %4233 = vmatpush1.bf16.msra.mxu0 0
  %4234 = vmatprep.subr.bf16.mxu0 0
  %4235 = vmatpush1.bf16.msra.mxu0 0
  %4236 = vmatprep.subr.bf16.mxu0 0
  %4237 = vmatpush1.bf16.msra.mxu0 0
  %4238 = vmatprep.subr.bf16.mxu0 0
  %4239 = vmatpush1.bf16.msra.mxu0 0
  %4240 = vmatprep.subr.bf16.mxu0 0
  %4241 = vmatpush1.bf16.msra.mxu0 0
  %4242 = vmatprep.subr.bf16.mxu0 0
  %4243 = vmatpush1.bf16.msra.mxu0 0
  %4244 = vmatprep.subr.bf16.mxu0 0
  %4245 = vmatpush1.bf16.msra.mxu0 0
  %4246 = vmatprep.subr.bf16.mxu0 0
  %4247 = vmatpush1.bf16.msra.mxu0 0
  %4248 = vmatprep.subr.bf16.mxu0 0
  %4249 = vmatpush1.bf16.msra.mxu0 0
  %4250 = vmatprep.subr.bf16.mxu0 0
  %4251 = vmatpush1.bf16.msra.mxu0 0
  %4252 = vmatprep.subr.bf16.mxu0 0
  %4253 = vmatpush1.bf16.msra.mxu0 0
  %4254 = vmatprep.mubr.bf16.mxu0 0
  %4255 = vmatmul.mubr.bf16.gmra.mrb[0].mxu0 %v4214
  %v4256 = vpop.f32.mrb[0].mxu0
  %v4257 = vadd.f32 0.0, %v4256
  %v4258 = vpop.f32.mrb[0].mxu0
  %v4259 = vadd.f32 0.0, %v4258
  %v4260 = vpop.f32.mrb[0].mxu0
  %v4261 = vpop.f32.mrb[0].mxu0
  %4262 = vdwg.mxu0
  %v4263 = vpack.c.bf16 %v4257, %v4257
  %v4264 = vpack.c.bf16 %v4259, %v4259
  %s4265 = scalar_lea.vmem %s13, 4
  %v4266 = vld [vmem:[%s4265] sm:$0xf]
  %v4268 = vsel %vm1917, %v4266, 0
  %4270 = vmatprep.subr.bf16.mxu0 %v4220
  %4271 = vmatpush1.bf16.msra.mxu0 %v4217
  %4272 = vmatprep.subr.bf16.mxu0 0
  %4273 = vmatpush1.bf16.msra.mxu0 0
  %4274 = vmatprep.subr.bf16.mxu0 0
  %4275 = vmatpush1.bf16.msra.mxu0 0
  %4276 = vmatprep.subr.bf16.mxu0 0
  %4277 = vmatpush1.bf16.msra.mxu0 0
  %4278 = vmatprep.subr.bf16.mxu0 0
  %4279 = vmatpush1.bf16.msra.mxu0 0
  %4280 = vmatprep.subr.bf16.mxu0 0
  %4281 = vmatpush1.bf16.msra.mxu0 0
  %4282 = vmatprep.subr.bf16.mxu0 0
  %4283 = vmatpush1.bf16.msra.mxu0 0
  %4284 = vmatprep.subr.bf16.mxu0 0
  %4285 = vmatpush1.bf16.msra.mxu0 0
  %4286 = vmatprep.subr.bf16.mxu0 0
  %4287 = vmatpush1.bf16.msra.mxu0 0
  %4288 = vmatprep.subr.bf16.mxu0 0
  %4289 = vmatpush1.bf16.msra.mxu0 0
  %4290 = vmatprep.subr.bf16.mxu0 0
  %4291 = vmatpush1.bf16.msra.mxu0 0
  %4292 = vmatprep.subr.bf16.mxu0 0
  %4293 = vmatpush1.bf16.msra.mxu0 0
  %4294 = vmatprep.subr.bf16.mxu0 0
  %4295 = vmatpush1.bf16.msra.mxu0 0
  %4296 = vmatprep.subr.bf16.mxu0 0
  %4297 = vmatpush1.bf16.msra.mxu0 0
  %4298 = vmatprep.subr.bf16.mxu0 0
  %4299 = vmatpush1.bf16.msra.mxu0 0
  %4300 = vmatprep.subr.bf16.mxu0 0
  %4301 = vmatpush1.bf16.msra.mxu0 0
  %4302 = vmatprep.mubr.bf16.mxu0 0
  %4303 = vmatmul.mubr.bf16.gmra.mrb[0].mxu0 %v4268
  %v4304 = vpop.f32.mrb[0].mxu0
  %v4305 = vadd.f32 0.0, %v4304
  %v4306 = vpop.f32.mrb[0].mxu0
  %v4307 = vadd.f32 0.0, %v4306
  %v4308 = vpop.f32.mrb[0].mxu0
  %v4309 = vpop.f32.mrb[0].mxu0
  %4310 = vdwg.mxu0
  %v4311 = vpack.c.bf16 %v4305, %v4305
  %v4312 = vpack.c.bf16 %v4307, %v4307
  %s4313 = scalar_lea.vmem %s13, 8
  %v4314 = vld [vmem:[%s4313] sm:$0xf]
  %v4316 = vsel %vm1917, %v4314, 0
  %4318 = vmatprep.subr.bf16.mxu0 %v4220
  %4319 = vmatpush1.bf16.msra.mxu0 %v4217
  %4320 = vmatprep.subr.bf16.mxu0 0
  %4321 = vmatpush1.bf16.msra.mxu0 0
  %4322 = vmatprep.subr.bf16.mxu0 0
  %4323 = vmatpush1.bf16.msra.mxu0 0
  %4324 = vmatprep.subr.bf16.mxu0 0
  %4325 = vmatpush1.bf16.msra.mxu0 0
  %4326 = vmatprep.subr.bf16.mxu0 0
  %4327 = vmatpush1.bf16.msra.mxu0 0
  %4328 = vmatprep.subr.bf16.mxu0 0
  %4329 = vmatpush1.bf16.msra.mxu0 0
  %4330 = vmatprep.subr.bf16.mxu0 0
  %4331 = vmatpush1.bf16.msra.mxu0 0
  %4332 = vmatprep.subr.bf16.mxu0 0
  %4333 = vmatpush1.bf16.msra.mxu0 0
  %4334 = vmatprep.subr.bf16.mxu0 0
  %4335 = vmatpush1.bf16.msra.mxu0 0
  %4336 = vmatprep.subr.bf16.mxu0 0
  %4337 = vmatpush1.bf16.msra.mxu0 0
  %4338 = vmatprep.subr.bf16.mxu0 0
  %4339 = vmatpush1.bf16.msra.mxu0 0
  %4340 = vmatprep.subr.bf16.mxu0 0
  %4341 = vmatpush1.bf16.msra.mxu0 0
  %4342 = vmatprep.subr.bf16.mxu0 0
  %4343 = vmatpush1.bf16.msra.mxu0 0
  %4344 = vmatprep.subr.bf16.mxu0 0
  %4345 = vmatpush1.bf16.msra.mxu0 0
  %4346 = vmatprep.subr.bf16.mxu0 0
  %4347 = vmatpush1.bf16.msra.mxu0 0
  %4348 = vmatprep.subr.bf16.mxu0 0
  %4349 = vmatpush1.bf16.msra.mxu0 0
  %4350 = vmatprep.mubr.bf16.mxu0 0
  %4351 = vmatmul.mubr.bf16.gmra.mrb[0].mxu0 %v4316
  %v4352 = vpop.f32.mrb[0].mxu0
  %v4353 = vadd.f32 0.0, %v4352
  %v4354 = vpop.f32.mrb[0].mxu0
  %v4355 = vadd.f32 0.0, %v4354
  %v4356 = vpop.f32.mrb[0].mxu0
  %v4357 = vpop.f32.mrb[0].mxu0
  %4358 = vdwg.mxu0
  %v4359 = vpack.c.bf16 %v4353, %v4353
  %v4360 = vpack.c.bf16 %v4355, %v4355
  %v4361 = vld [vmem:[%s14] sm:$0xf]
  %v4362 = vld [vmem:[%s14 + $0x4] sm:$0xf]
  %v4363 = vld [vmem:[%s14 + $0x8] sm:$0xf]
  %v4364 = vld [vmem:[%s14 + $0xc] sm:$0xf]
  %v4365 = vld [vmem:[%s14 + $0x10] sm:$0xf]
  %v4366 = vld [vmem:[%s14 + $0x14] sm:$0xf]
  %v4367 = vld [vmem:[%s14 + $0x18] sm:$0xf]
  %v4368 = vld [vmem:[%s14 + $0x1c] sm:$0xf]
  %v4369 = vld [vmem:[%s14 + $0x20] sm:$0xf]
  %v4370 = vld [vmem:[%s14 + $0x24] sm:$0xf]
  %v4371 = vld [vmem:[%s14 + $0x28] sm:$0xf]
  %v4372 = vld [vmem:[%s14 + $0x2c] sm:$0xf]
  %v4373 = vld [vmem:[%s14 + $0x30] sm:$0xf]
  %v4374 = vld [vmem:[%s14 + $0x34] sm:$0xf]
  %v4375 = vld [vmem:[%s14 + $0x38] sm:$0xf]
  %v4376 = vld [vmem:[%s14 + $0x3c] sm:$0xf]
  %v4377 = vld [vmem:[%s14 + $0x40] sm:$0xf]
  %v4378 = vld [vmem:[%s14 + $0x44] sm:$0xf]
  %v4379 = vld [vmem:[%s14 + $0x48] sm:$0xf]
  %v4380 = vld [vmem:[%s14 + $0x4c] sm:$0xf]
  %v4381 = vld [vmem:[%s14 + $0x50] sm:$0xf]
  %v4382 = vld [vmem:[%s14 + $0x54] sm:$0xf]
  %v4383 = vld [vmem:[%s14 + $0x58] sm:$0xf]
  %v4384 = vld [vmem:[%s14 + $0x5c] sm:$0xf]
  %v4385 = vld [vmem:[%s14 + $0x60] sm:$0xf]
  %v4386 = vld [vmem:[%s14 + $0x64] sm:$0xf]
  %v4387 = vld [vmem:[%s14 + $0x68] sm:$0xf]
  %v4388 = vld [vmem:[%s14 + $0x6c] sm:$0xf]
  %v4389 = vld [vmem:[%s14 + $0x70] sm:$0xf]
  %v4390 = vld [vmem:[%s14 + $0x74] sm:$0xf]
  %v4391 = vld [vmem:[%s14 + $0x78] sm:$0xf]
  %v4392 = vld [vmem:[%s14 + $0x7c] sm:$0xf]
  %v4393 = vld [vmem:[%s14 + $0x80] sm:$0xf]
  %v4394 = vld [vmem:[%s14 + $0x84] sm:$0xf]
  %v4395 = vld [vmem:[%s14 + $0x88] sm:$0xf]
  %v4396 = vld [vmem:[%s14 + $0x8c] sm:$0xf]
  %v4397 = vld [vmem:[%s14 + $0x90] sm:$0xf]
  %v4398 = vld [vmem:[%s14 + $0x94] sm:$0xf]
  %v4399 = vld [vmem:[%s14 + $0x98] sm:$0xf]
  %v4400 = vld [vmem:[%s14 + $0x9c] sm:$0xf]
  %v4401 = vld [vmem:[%s14 + $0xa0] sm:$0xf]
  %v4402 = vld [vmem:[%s14 + $0xa4] sm:$0xf]
  %v4403 = vld [vmem:[%s14 + $0xa8] sm:$0xf]
  %v4404 = vld [vmem:[%s14 + $0xac] sm:$0xf]
  %v4405 = vld [vmem:[%s14 + $0xb0] sm:$0xf]
  %v4406 = vld [vmem:[%s14 + $0xb4] sm:$0xf]
  %v4407 = vld [vmem:[%s14 + $0xb8] sm:$0xf]
  %v4408 = vld [vmem:[%s14 + $0xbc] sm:$0xf]
  %v4409 = vld [vmem:[%s14 + $0xc0] sm:$0xf]
  %v4410 = vld [vmem:[%s14 + $0xc4] sm:$0xf]
  %v4411 = vld [vmem:[%s14 + $0xc8] sm:$0xf]
  %v4412 = vld [vmem:[%s14 + $0xcc] sm:$0xf]
  %v4413 = vld [vmem:[%s14 + $0xd0] sm:$0xf]
  %v4414 = vld [vmem:[%s14 + $0xd4] sm:$0xf]
  %v4415 = vld [vmem:[%s14 + $0xd8] sm:$0xf]
  %v4416 = vld [vmem:[%s14 + $0xdc] sm:$0xf]
  %v4417 = vld [vmem:[%s14 + $0xe0] sm:$0xf]
  %v4418 = vld [vmem:[%s14 + $0xe4] sm:$0xf]
  %v4419 = vld [vmem:[%s14 + $0xe8] sm:$0xf]
  %v4420 = vld [vmem:[%s14 + $0xec] sm:$0xf]
  %v4421 = vld [vmem:[%s14 + $0xf0] sm:$0xf]
  %v4422 = vld [vmem:[%s14 + $0xf4] sm:$0xf]
  %v4423 = vld [vmem:[%s14 + $0xf8] sm:$0xf]
  %v4424 = vld [vmem:[%s14 + $0xfc] sm:$0xf]
  %v4425 = vld [vmem:[%s14 + $0x100] sm:$0xf]
  %v4426 = vld [vmem:[%s14 + $0x104] sm:$0xf]
  %v4427 = vld [vmem:[%s14 + $0x108] sm:$0xf]
  %v4428 = vld [vmem:[%s14 + $0x10c] sm:$0xf]
  %v4429 = vld [vmem:[%s14 + $0x110] sm:$0xf]
  %v4430 = vld [vmem:[%s14 + $0x114] sm:$0xf]
  %v4431 = vld [vmem:[%s14 + $0x118] sm:$0xf]
  %v4432 = vld [vmem:[%s14 + $0x11c] sm:$0xf]
  %v4433 = vld [vmem:[%s14 + $0x120] sm:$0xf]
  %v4434 = vld [vmem:[%s14 + $0x124] sm:$0xf]
  %v4435 = vld [vmem:[%s14 + $0x128] sm:$0xf]
  %v4436 = vld [vmem:[%s14 + $0x12c] sm:$0xf]
  %v4437 = vld [vmem:[%s14 + $0x130] sm:$0xf]
  %v4438 = vld [vmem:[%s14 + $0x134] sm:$0xf]
  %v4439 = vld [vmem:[%s14 + $0x138] sm:$0xf]
  %v4440 = vld [vmem:[%s14 + $0x13c] sm:$0xf]
  %v4441 = vld [vmem:[%s14 + $0x140] sm:$0xf]
  %v4442 = vld [vmem:[%s14 + $0x144] sm:$0xf]
  %v4443 = vld [vmem:[%s14 + $0x148] sm:$0xf]
  %v4444 = vld [vmem:[%s14 + $0x14c] sm:$0xf]
  %v4445 = vld [vmem:[%s14 + $0x150] sm:$0xf]
  %v4446 = vld [vmem:[%s14 + $0x154] sm:$0xf]
  %v4447 = vld [vmem:[%s14 + $0x158] sm:$0xf]
  %v4448 = vld [vmem:[%s14 + $0x15c] sm:$0xf]
  %v4449 = vld [vmem:[%s14 + $0x160] sm:$0xf]
  %v4450 = vld [vmem:[%s14 + $0x164] sm:$0xf]
  %v4451 = vld [vmem:[%s14 + $0x168] sm:$0xf]
  %v4452 = vld [vmem:[%s14 + $0x16c] sm:$0xf]
  %v4453 = vld [vmem:[%s14 + $0x170] sm:$0xf]
  %v4454 = vld [vmem:[%s14 + $0x174] sm:$0xf]
  %v4455 = vld [vmem:[%s14 + $0x178] sm:$0xf]
  %v4456 = vld [vmem:[%s14 + $0x17c] sm:$0xf]
  %v4457 = vld [vmem:[%s15] sm:$0x1]
  %v4459 = vlaneseq
  %v4460 = vshrl.u32 %v4459, 7
  %v4461 = vsub.s32 0, %v4460
  %v4462 = vrot.slane %v4457, %v4461
  %v4560 = vunpack.c.l.b16 %v4361
  %v4561 = vunpack.c.l.b16 %v4362
  %v4562 = vunpack.c.l.b16 %v4363
  %v4563 = vunpack.c.l.b16 %v4364
  %v4564 = vunpack.c.l.b16 %v4365
  %v4565 = vunpack.c.l.b16 %v4366
  %v4566 = vunpack.c.l.b16 %v4367
  %v4567 = vunpack.c.l.b16 %v4368
  %v4568 = vunpack.c.l.b16 %v4369
  %v4569 = vunpack.c.l.b16 %v4370
  %v4570 = vunpack.c.l.b16 %v4371
  %v4571 = vunpack.c.l.b16 %v4372
  %v4572 = vunpack.c.l.b16 %v4373
  %v4573 = vunpack.c.l.b16 %v4374
  %v4574 = vunpack.c.l.b16 %v4375
  %v4575 = vunpack.c.l.b16 %v4376
  %v4576 = vunpack.c.l.b16 %v4377
  %v4577 = vunpack.c.l.b16 %v4378
  %v4578 = vunpack.c.l.b16 %v4379
  %v4579 = vunpack.c.l.b16 %v4380
  %v4580 = vunpack.c.l.b16 %v4381
  %v4581 = vunpack.c.l.b16 %v4382
  %v4582 = vunpack.c.l.b16 %v4383
  %v4583 = vunpack.c.l.b16 %v4384
  %v4584 = vunpack.c.l.b16 %v4385
  %v4585 = vunpack.c.l.b16 %v4386
  %v4586 = vunpack.c.l.b16 %v4387
  %v4587 = vunpack.c.l.b16 %v4388
  %v4588 = vunpack.c.l.b16 %v4389
  %v4589 = vunpack.c.l.b16 %v4390
  %v4590 = vunpack.c.l.b16 %v4391
  %v4591 = vunpack.c.l.b16 %v4392
  %v4592 = vunpack.c.l.b16 %v4393
  %v4593 = vunpack.c.l.b16 %v4394
  %v4594 = vunpack.c.l.b16 %v4395
  %v4595 = vunpack.c.l.b16 %v4396
  %v4596 = vunpack.c.l.b16 %v4397
  %v4597 = vunpack.c.l.b16 %v4398
  %v4598 = vunpack.c.l.b16 %v4399
  %v4599 = vunpack.c.l.b16 %v4400
  %v4600 = vunpack.c.l.b16 %v4401
  %v4601 = vunpack.c.l.b16 %v4402
  %v4602 = vunpack.c.l.b16 %v4403
  %v4603 = vunpack.c.l.b16 %v4404
  %v4604 = vunpack.c.l.b16 %v4405
  %v4605 = vunpack.c.l.b16 %v4406
  %v4606 = vunpack.c.l.b16 %v4407
  %v4607 = vunpack.c.l.b16 %v4408
  %v4608 = vunpack.c.l.b16 %v4409
  %v4609 = vunpack.c.l.b16 %v4410
  %v4610 = vunpack.c.l.b16 %v4411
  %v4611 = vunpack.c.l.b16 %v4412
  %v4612 = vunpack.c.l.b16 %v4413
  %v4613 = vunpack.c.l.b16 %v4414
  %v4614 = vunpack.c.l.b16 %v4415
  %v4615 = vunpack.c.l.b16 %v4416
  %v4616 = vunpack.c.l.b16 %v4417
  %v4617 = vunpack.c.l.b16 %v4418
  %v4618 = vunpack.c.l.b16 %v4419
  %v4619 = vunpack.c.l.b16 %v4420
  %v4620 = vunpack.c.l.b16 %v4421
  %v4621 = vunpack.c.l.b16 %v4422
  %v4622 = vunpack.c.l.b16 %v4423
  %v4623 = vunpack.c.l.b16 %v4424
  %v4624 = vunpack.c.l.b16 %v4425
  %v4625 = vunpack.c.l.b16 %v4426
  %v4626 = vunpack.c.l.b16 %v4427
  %v4627 = vunpack.c.l.b16 %v4428
  %v4628 = vunpack.c.l.b16 %v4429
  %v4629 = vunpack.c.l.b16 %v4430
  %v4630 = vunpack.c.l.b16 %v4431
  %v4631 = vunpack.c.l.b16 %v4432
  %v4632 = vunpack.c.l.b16 %v4433
  %v4633 = vunpack.c.l.b16 %v4434
  %v4634 = vunpack.c.l.b16 %v4435
  %v4635 = vunpack.c.l.b16 %v4436
  %v4636 = vunpack.c.l.b16 %v4437
  %v4637 = vunpack.c.l.b16 %v4438
  %v4638 = vunpack.c.l.b16 %v4439
  %v4639 = vunpack.c.l.b16 %v4440
  %v4640 = vunpack.c.l.b16 %v4441
  %v4641 = vunpack.c.l.b16 %v4442
  %v4642 = vunpack.c.l.b16 %v4443
  %v4643 = vunpack.c.l.b16 %v4444
  %v4644 = vunpack.c.l.b16 %v4445
  %v4645 = vunpack.c.l.b16 %v4446
  %v4646 = vunpack.c.l.b16 %v4447
  %v4647 = vunpack.c.l.b16 %v4448
  %v4648 = vunpack.c.l.b16 %v4449
  %v4649 = vunpack.c.l.b16 %v4450
  %v4650 = vunpack.c.l.b16 %v4451
  %v4651 = vunpack.c.l.b16 %v4452
  %v4652 = vunpack.c.l.b16 %v4453
  %v4653 = vunpack.c.l.b16 %v4454
  %v4654 = vunpack.c.l.b16 %v4455
  %v4655 = vunpack.c.l.b16 %v4456
  %v4656 = vpack.c.b16 %v4561, %v4560
  %v4657 = vpack.c.b16 %v4563, %v4562
  %v4658 = vpack.c.b16 %v4565, %v4564
  %v4659 = vpack.c.b16 %v4567, %v4566
  %v4660 = vpack.c.b16 %v4569, %v4568
  %v4661 = vpack.c.b16 %v4571, %v4570
  %v4662 = vpack.c.b16 %v4573, %v4572
  %v4663 = vpack.c.b16 %v4575, %v4574
  %v4664 = vpack.c.b16 %v4577, %v4576
  %v4665 = vpack.c.b16 %v4579, %v4578
  %v4666 = vpack.c.b16 %v4581, %v4580
  %v4667 = vpack.c.b16 %v4583, %v4582
  %v4668 = vpack.c.b16 %v4585, %v4584
  %v4669 = vpack.c.b16 %v4587, %v4586
  %v4670 = vpack.c.b16 %v4589, %v4588
  %v4671 = vpack.c.b16 %v4591, %v4590
  %v4672 = vpack.c.b16 %v4593, %v4592
  %v4673 = vpack.c.b16 %v4595, %v4594
  %v4674 = vpack.c.b16 %v4597, %v4596
  %v4675 = vpack.c.b16 %v4599, %v4598
  %v4676 = vpack.c.b16 %v4601, %v4600
  %v4677 = vpack.c.b16 %v4603, %v4602
  %v4678 = vpack.c.b16 %v4605, %v4604
  %v4679 = vpack.c.b16 %v4607, %v4606
  %v4680 = vpack.c.b16 %v4609, %v4608
  %v4681 = vpack.c.b16 %v4611, %v4610
  %v4682 = vpack.c.b16 %v4613, %v4612
  %v4683 = vpack.c.b16 %v4615, %v4614
  %v4684 = vpack.c.b16 %v4617, %v4616
  %v4685 = vpack.c.b16 %v4619, %v4618
  %v4686 = vpack.c.b16 %v4621, %v4620
  %v4687 = vpack.c.b16 %v4623, %v4622
  %v4688 = vpack.c.b16 %v4625, %v4624
  %v4689 = vpack.c.b16 %v4627, %v4626
  %v4690 = vpack.c.b16 %v4629, %v4628
  %v4691 = vpack.c.b16 %v4631, %v4630
  %v4692 = vpack.c.b16 %v4633, %v4632
  %v4693 = vpack.c.b16 %v4635, %v4634
  %v4694 = vpack.c.b16 %v4637, %v4636
  %v4695 = vpack.c.b16 %v4639, %v4638
  %v4696 = vpack.c.b16 %v4641, %v4640
  %v4697 = vpack.c.b16 %v4643, %v4642
  %v4698 = vpack.c.b16 %v4645, %v4644
  %v4699 = vpack.c.b16 %v4647, %v4646
  %v4700 = vpack.c.b16 %v4649, %v4648
  %v4701 = vpack.c.b16 %v4651, %v4650
  %v4702 = vpack.c.b16 %v4653, %v4652
  %v4703 = vpack.c.b16 %v4655, %v4654
  %4752 = vmatprep.subr.bf16.mxu0 0
  %4753 = vmatpush1.bf16.msra.mxu0 %v4656
  %4754 = vmatprep.subr.bf16.mxu0 0
  %4755 = vmatpush1.bf16.msra.mxu0 %v4657
  %4756 = vmatprep.subr.bf16.mxu0 0
  %4757 = vmatpush1.bf16.msra.mxu0 %v4658
  %4758 = vmatprep.subr.bf16.mxu0 0
  %4759 = vmatpush1.bf16.msra.mxu0 %v4659
  %4760 = vmatprep.subr.bf16.mxu0 0
  %4761 = vmatpush1.bf16.msra.mxu0 %v4660
  %4762 = vmatprep.subr.bf16.mxu0 0
  %4763 = vmatpush1.bf16.msra.mxu0 %v4661
  %4764 = vmatprep.subr.bf16.mxu0 0
  %4765 = vmatpush1.bf16.msra.mxu0 %v4662
  %4766 = vmatprep.subr.bf16.mxu0 0
  %4767 = vmatpush1.bf16.msra.mxu0 %v4663
  %4768 = vmatprep.subr.bf16.mxu0 0
  %4769 = vmatpush1.bf16.msra.mxu0 %v4664
  %4770 = vmatprep.subr.bf16.mxu0 0
  %4771 = vmatpush1.bf16.msra.mxu0 %v4665
  %4772 = vmatprep.subr.bf16.mxu0 0
  %4773 = vmatpush1.bf16.msra.mxu0 %v4666
  %4774 = vmatprep.subr.bf16.mxu0 0
  %4775 = vmatpush1.bf16.msra.mxu0 %v4667
  %4776 = vmatprep.subr.bf16.mxu0 0
  %4777 = vmatpush1.bf16.msra.mxu0 %v4668
  %4778 = vmatprep.subr.bf16.mxu0 0
  %4779 = vmatpush1.bf16.msra.mxu0 %v4669
  %4780 = vmatprep.subr.bf16.mxu0 0
  %4781 = vmatpush1.bf16.msra.mxu0 %v4670
  %4782 = vmatprep.subr.bf16.mxu0 0
  %4783 = vmatpush1.bf16.msra.mxu0 %v4671
  %4784 = vmatprep.mubr.bf16.mxu0 %v4264
  %4785 = vmatmul.mubr.bf16.gmra.mrb[0].mxu0 %v4263
  %v4786 = vpop.f32.mrb[0].mxu0
  %v4787 = vadd.f32 %v4462, %v4786
  %v4788 = vpop.f32.mrb[0].mxu0
  %v4789 = vpop.f32.mrb[0].mxu0
  %v4790 = vpop.f32.mrb[0].mxu0
  %4791 = vdwg.mxu0
  %4792 = vmatprep.subr.bf16.mxu0 0
  %4793 = vmatpush1.bf16.msra.mxu0 %v4672
  %4794 = vmatprep.subr.bf16.mxu0 0
  %4795 = vmatpush1.bf16.msra.mxu0 %v4673
  %4796 = vmatprep.subr.bf16.mxu0 0
  %4797 = vmatpush1.bf16.msra.mxu0 %v4674
  %4798 = vmatprep.subr.bf16.mxu0 0
  %4799 = vmatpush1.bf16.msra.mxu0 %v4675
  %4800 = vmatprep.subr.bf16.mxu0 0
  %4801 = vmatpush1.bf16.msra.mxu0 %v4676
  %4802 = vmatprep.subr.bf16.mxu0 0
  %4803 = vmatpush1.bf16.msra.mxu0 %v4677
  %4804 = vmatprep.subr.bf16.mxu0 0
  %4805 = vmatpush1.bf16.msra.mxu0 %v4678
  %4806 = vmatprep.subr.bf16.mxu0 0
  %4807 = vmatpush1.bf16.msra.mxu0 %v4679
  %4808 = vmatprep.subr.bf16.mxu0 0
  %4809 = vmatpush1.bf16.msra.mxu0 %v4680
  %4810 = vmatprep.subr.bf16.mxu0 0
  %4811 = vmatpush1.bf16.msra.mxu0 %v4681
  %4812 = vmatprep.subr.bf16.mxu0 0
  %4813 = vmatpush1.bf16.msra.mxu0 %v4682
  %4814 = vmatprep.subr.bf16.mxu0 0
  %4815 = vmatpush1.bf16.msra.mxu0 %v4683
  %4816 = vmatprep.subr.bf16.mxu0 0
  %4817 = vmatpush1.bf16.msra.mxu0 %v4684
  %4818 = vmatprep.subr.bf16.mxu0 0
  %4819 = vmatpush1.bf16.msra.mxu0 %v4685
  %4820 = vmatprep.subr.bf16.mxu0 0
  %4821 = vmatpush1.bf16.msra.mxu0 %v4686
  %4822 = vmatprep.subr.bf16.mxu0 0
  %4823 = vmatpush1.bf16.msra.mxu0 %v4687
  %4824 = vmatprep.mubr.bf16.mxu0 %v4312
  %4825 = vmatmul.mubr.bf16.gmra.mrb[0].mxu0 %v4311
  %v4826 = vpop.f32.mrb[0].mxu0
  %v4827 = vadd.f32 %v4787, %v4826
  %v4828 = vpop.f32.mrb[0].mxu0
  %v4829 = vpop.f32.mrb[0].mxu0
  %v4830 = vpop.f32.mrb[0].mxu0
  %4831 = vdwg.mxu0
  %4832 = vmatprep.subr.bf16.mxu0 0
  %4833 = vmatpush1.bf16.msra.mxu0 %v4688
  %4834 = vmatprep.subr.bf16.mxu0 0
  %4835 = vmatpush1.bf16.msra.mxu0 %v4689
  %4836 = vmatprep.subr.bf16.mxu0 0
  %4837 = vmatpush1.bf16.msra.mxu0 %v4690
  %4838 = vmatprep.subr.bf16.mxu0 0
  %4839 = vmatpush1.bf16.msra.mxu0 %v4691
  %4840 = vmatprep.subr.bf16.mxu0 0
  %4841 = vmatpush1.bf16.msra.mxu0 %v4692
  %4842 = vmatprep.subr.bf16.mxu0 0
  %4843 = vmatpush1.bf16.msra.mxu0 %v4693
  %4844 = vmatprep.subr.bf16.mxu0 0
  %4845 = vmatpush1.bf16.msra.mxu0 %v4694
  %4846 = vmatprep.subr.bf16.mxu0 0
  %4847 = vmatpush1.bf16.msra.mxu0 %v4695
  %4848 = vmatprep.subr.bf16.mxu0 0
  %4849 = vmatpush1.bf16.msra.mxu0 %v4696
  %4850 = vmatprep.subr.bf16.mxu0 0
  %4851 = vmatpush1.bf16.msra.mxu0 %v4697
  %4852 = vmatprep.subr.bf16.mxu0 0
  %4853 = vmatpush1.bf16.msra.mxu0 %v4698
  %4854 = vmatprep.subr.bf16.mxu0 0
  %4855 = vmatpush1.bf16.msra.mxu0 %v4699
  %4856 = vmatprep.subr.bf16.mxu0 0
  %4857 = vmatpush1.bf16.msra.mxu0 %v4700
  %4858 = vmatprep.subr.bf16.mxu0 0
  %4859 = vmatpush1.bf16.msra.mxu0 %v4701
  %4860 = vmatprep.subr.bf16.mxu0 0
  %4861 = vmatpush1.bf16.msra.mxu0 %v4702
  %4862 = vmatprep.subr.bf16.mxu0 0
  %4863 = vmatpush1.bf16.msra.mxu0 %v4703
  %4864 = vmatprep.mubr.bf16.mxu0 %v4360
  %4865 = vmatmul.mubr.bf16.gmra.mrb[0].mxu0 %v4359
  %v4866 = vpop.f32.mrb[0].mxu0
  %v4867 = vadd.f32 %v4827, %v4866
  %v4868 = vpop.f32.mrb[0].mxu0
  %v4869 = vpop.f32.mrb[0].mxu0
  %v4870 = vpop.f32.mrb[0].mxu0
  %4871 = vdwg.mxu0
  %4872 = vst [vmem:[%s16] sm:$0xff] %v4867
  // Predicated region
  $region66: #{_lambda_.1} parent=0 // pred_check
    _
  $region67: #{_lambda_.1} parent=0 // pred_check_branch
    %4874 = sbr.rel (0) target = $region69
  $region68: #{_lambda_.1} parent=0 // pred_region
    _
  $region69: #{_lambda_.1} parent=0 // pred_fallthru
    _
  // Predicated region
  $region70: #{_lambda_.1} parent=0 // pred_check
    _
  $region71: #{_lambda_.1} parent=0 // pred_check_branch
    %4876 = sbr.rel (0) target = $region73
  $region72: #{_lambda_.1} parent=0 // pred_region
    _
  $region73: #{_lambda_.1} parent=0 // pred_fallthru
    _

</llo_original>
